<compile_context>
chip_gen: v5e
topology: v5e:2x2
jax: 0.10.0
libtpu: 0.0.40
codegen_flags: <defaults>
</compile_context>

<pallas_src>
import functools

import jax
import jax.numpy as jnp
import numpy as np
from jax.experimental import pallas as pl
from jax.experimental.pallas import tpu as pltpu


def _cdiv(a, b):
    return -(-a // b)


def _round_up(a, m):
    return _cdiv(a, m) * m


# ---------------------------------------------------------------------------
# Kernel 1: LSTM recurrence.  Grid = (batch_shards, time_chunks).
#   pre_ref : (Tc, Bs, 4H) f32   precomputed x@W_ih + bias for this chunk
#   whh_ref : (H, 4H)      bf16  hidden->gates weight (only per-step GEMM)
#   hout_ref: (Tc, Bs, H)  bf16  hidden states emitted per step
# ---------------------------------------------------------------------------
def lstm_kernel(pre_ref, h0_ref, c0_ref, whh_ref, hout_ref, h_sc, c_sc, *,
                act_dtype):
    @pl.when(pl.program_id(1) == 0)
    def _():
        # PyTorch forward passes (cnn_to_c0(img), cnn_to_h0(img)) as (h0, c0).
        h_sc[...] = h0_ref[...]
        c_sc[...] = c0_ref[...]

    tc = pre_ref.shape[0]
    H = h_sc.shape[-1]

    def step(t, carry):
        # Only the hidden-state GEMM remains inside the serial loop.
        gates = pre_ref[t] + jnp.dot(
            h_sc[...].astype(jnp.bfloat16), whh_ref[...],
            preferred_element_type=jnp.float32)                  # (Bs, 4H) f32
        ga = gates.astype(act_dtype)       # bf16 EUP path on v6e/v7x, f32 on v5e
        i_g = jax.nn.sigmoid(ga[:, 0 * H:1 * H]).astype(jnp.float32)
        f_g = jax.nn.sigmoid(ga[:, 1 * H:2 * H]).astype(jnp.float32)
        g_g = jnp.tanh(ga[:, 2 * H:3 * H]).astype(jnp.float32)
        o_g = jax.nn.sigmoid(ga[:, 3 * H:4 * H]).astype(jnp.float32)
        # State math stays f32.
        c_new = f_g * c_sc[...] + i_g * g_g
        h_new = o_g * jnp.tanh(c_new)
        c_sc[...] = c_new
        h_sc[...] = h_new
        hout_ref[t] = h_new.astype(hout_ref.dtype)
        return carry

    jax.lax.fori_loop(0, tc, step, 0, unroll=True)


# ---------------------------------------------------------------------------
# Kernel 2: output projection  logits = h @ W_out + b   (fully parallel grid)
# ---------------------------------------------------------------------------
def proj_kernel(h_ref, w_ref, b_ref, out_ref):
    out_ref[...] = (jnp.dot(h_ref[...], w_ref[...],
                            preferred_element_type=jnp.float32)
                    + b_ref[...]).astype(out_ref.dtype)


# ---------------------------------------------------------------------------
# Wrapper
# ---------------------------------------------------------------------------
def caption_net_forward(params, image_vectors, captions_ix):
    """image_vectors: [B, F] f32, captions_ix: [B, T] int32 -> logits [B, T, V] bf16."""
    B, _ = image_vectors.shape
    T = captions_ix.shape[1]
    E = params["emb"].shape[1]
    H = params["b_c0"].shape[-1]
    V = params["b_out"].shape[-1]

    assert B % 8 == 0, "batch must be a multiple of 8 (f32 sublane)"
    assert H % 128 == 0 and E % 128 == 0, "E and H must be lane-aligned (x128)"

    # --- generation-aware knobs (trace-time, not traced) ---------------------
    kind = jax.devices()[0].device_kind.lower()
    # bf16 gate nonlinearities only where a bf16 VPU/EUP exists (v6e/v7x+).
    no_bf16_eup = any(tag in kind for tag in ("v2", "v3", "v4", "v5"))
    act_dtype = jnp.float32 if no_bf16_eup else jnp.bfloat16
    # Batch-shard the recurrence across TensorCores only on 2-TC chips.
    two_tc = any(tag in kind for tag in ("v7", "tpu7", "v5p", "v4"))
    nb = 2 if (two_tc and B % 16 == 0) else 1
    Bs = B // nb

    # --- plain-XLA glue (cheap / one-shot) -----------------------------------
    # Embedding gather, built time-major directly (no HBM transpose of x_emb).
    # TODO(synk): move the embedding gather in-kernel via scalar prefetch.
    x_emb_t = jnp.take(params["emb"], captions_ix.T, axis=0).astype(jnp.bfloat16)

    # One-shot initial state; note the intentional (c0, h0) swap of the module.
    h0 = (image_vectors @ params["w_c0_T"] + params["b_c0"]).astype(jnp.float32)
    c0 = (image_vectors @ params["w_h0_T"] + params["b_h0"]).astype(jnp.float32)

    # Hoisted input GEMM: pre[t] = x_t @ W_ih + (b_ih + b_hh) for all T steps.
    w_ih = params["w_ih_T"].astype(jnp.bfloat16)
    pre = (jnp.einsum("tbe,eg->tbg", x_emb_t, w_ih,
                      preferred_element_type=jnp.float32)
           + params["b_lstm"].astype(jnp.float32))               # (T, B, 4H) f32

    w_hh = params["w_hh_T"].astype(jnp.bfloat16)                 # (H, 4H)

    # Pad time to a multiple of Tc so the recurrent grid has no partial chunks
    # (padded steps see zero pre-gates; their outputs are sliced off below).
    Tc = 8
    Tp = _round_up(T, Tc)
    if Tp != T:
        pre = jnp.pad(pre, ((0, Tp - T), (0, 0), (0, 0)))

    # --- recurrent kernel: emit hidden states [Tp, B, H] bf16 ----------------
    h_all = pl.pallas_call(
        functools.partial(lstm_kernel, act_dtype=act_dtype),
        out_shape=jax.ShapeDtypeStruct((Tp, B, H), jnp.bfloat16),
        grid_spec=pltpu.PrefetchScalarGridSpec(
            num_scalar_prefetch=0,
            grid=(nb, Tp // Tc),
            in_specs=[
                pl.BlockSpec((Tc, Bs, 4 * H), lambda s, g: (g, s, 0)),  # pre-gates
                pl.BlockSpec((Bs, H), lambda s, g: (s, 0)),             # h0
                pl.BlockSpec((Bs, H), lambda s, g: (s, 0)),             # c0
                pl.BlockSpec((H, 4 * H), lambda s, g: (0, 0)),          # W_hh
            ],
            out_specs=pl.BlockSpec((Tc, Bs, H), lambda s, g: (g, s, 0)),
            scratch_shapes=[pltpu.VMEM((Bs, H), jnp.float32),           # h state
                            pltpu.VMEM((Bs, H), jnp.float32)],          # c state
        ),
        compiler_params=pltpu.CompilerParams(
            dimension_semantics=("parallel", "arbitrary"),
            vmem_limit_bytes=32 * 1024 * 1024),
    )(pre, h0, c0, w_hh)

    # --- hoisted projection: [B*T, H] @ [H, V] parallel tiled matmul ---------
    # Small reorder of the H-wide hidden states so logits come out batch-first
    # (~B*T*H*2 bytes -- negligible vs. the logits tensor itself).
    M = B * T
    h_bt = jnp.transpose(h_all[:T], (1, 0, 2)).reshape(M, H)

    # Large cdiv-based tiles: tm balanced up to ~1024 rows, tv lane-dense 1024.
    n_mb = _cdiv(M, 1024)
    tm = min(M, _round_up(_cdiv(M, n_mb), 8))
    tv = min(1024, _round_up(V, 128))
    gm = _cdiv(M, tm)
    gv = _cdiv(V, tv)

    # Keep W/b padded to whole tv blocks so reads stay clean; the OUTPUT is
    # unpadded (M, V) -- Pallas clips the partial last vocab block on store,
    # so no post-kernel slice of the big logits tensor is needed.
    w_cols = gv * tv
    w_out = params["w_out_T"]
    b_out = params["b_out"].astype(jnp.float32)
    if w_cols != V:
        w_out = jnp.pad(w_out, ((0, 0), (0, w_cols - V)))
        b_out = jnp.pad(b_out, ((0, 0), (0, w_cols - V)))
    w_out = w_out.astype(jnp.bfloat16)

    # VMEM: double-buffered tiles + headroom, capped well under v7x's 64 MiB.
    vmem_need = 2 * (tm * H * 2 + H * tv * 2 + tv * 4 + tm * tv * 2) + (4 << 20)
    vmem_limit = int(min(48 * 1024 * 1024, max(vmem_need, 16 * 1024 * 1024)))

    logits_flat = pl.pallas_call(
        proj_kernel,
        out_shape=jax.ShapeDtypeStruct((M, V), jnp.bfloat16),   # bf16 logits
        grid_spec=pltpu.PrefetchScalarGridSpec(
            num_scalar_prefetch=0,
            grid=(gm, gv),
            in_specs=[
                pl.BlockSpec((tm, H), lambda i, j: (i, 0)),
                pl.BlockSpec((H, tv), lambda i, j: (0, j)),
                pl.BlockSpec((1, tv), lambda i, j: (0, j)),
            ],
            out_specs=pl.BlockSpec((tm, tv), lambda i, j: (i, j)),
        ),
        compiler_params=pltpu.CompilerParams(
            dimension_semantics=("parallel", "parallel"),
            vmem_limit_bytes=vmem_limit),
    )(h_bt, w_out, b_out)

    return logits_flat.reshape(B, T, V)


def init_params(key, n_tokens, emb_size, lstm_units, cnn_feature_size):
    H, E, F, V = lstm_units, emb_size, cnn_feature_size, n_tokens
    ks = jax.random.split(key, 10)
    s = 0.02
    return {
        "w_c0_T": jax.random.normal(ks[0], (F, H), jnp.float32) * s,
        "b_c0":   jax.random.normal(ks[1], (1, H), jnp.float32) * s,
        "w_h0_T": jax.random.normal(ks[2], (F, H), jnp.float32) * s,
        "b_h0":   jax.random.normal(ks[3], (1, H), jnp.float32) * s,
        "emb":    jax.random.normal(ks[4], (V, E), jnp.float32) * s,
        "w_ih_T": jax.random.normal(ks[5], (E, 4 * H), jnp.float32) * s,
        "w_hh_T": jax.random.normal(ks[6], (H, 4 * H), jnp.float32) * s,
        # b_ih + b_hh folded into a single bias (identical semantics).
        "b_lstm": jax.random.normal(ks[7], (1, 4 * H), jnp.float32) * s,
        "w_out_T": jax.random.normal(ks[8], (H, V), jnp.float32) * s,
        "b_out":  jax.random.normal(ks[9], (1, V), jnp.float32) * s,
    }


def reference_forward(params, image_vectors, captions_ix):
    """Pure-JAX reference mirroring the kernel numerics (bf16 matmul operands)."""
    H = params["b_c0"].shape[-1]
    bf = lambda a: a.astype(jnp.bfloat16).astype(jnp.float32)
    x = bf(jnp.take(params["emb"], captions_ix, axis=0))          # [B, T, E]
    h = image_vectors @ params["w_c0_T"] + params["b_c0"]          # (c0, h0) swap
    c = image_vectors @ params["w_h0_T"] + params["b_h0"]
    w_ih, w_hh = bf(params["w_ih_T"]), bf(params["w_hh_T"])
    w_out, b_out = bf(params["w_out_T"]), params["b_out"]
    outs = []
    for t in range(captions_ix.shape[1]):
        g = x[:, t] @ w_ih + bf(h) @ w_hh + params["b_lstm"]
        i_g = jax.nn.sigmoid(g[:, 0 * H:1 * H])
        f_g = jax.nn.sigmoid(g[:, 1 * H:2 * H])
        g_g = jnp.tanh(g[:, 2 * H:3 * H])
        o_g = jax.nn.sigmoid(g[:, 3 * H:4 * H])
        c = f_g * c + i_g * g_g
        h = o_g * jnp.tanh(c)
        outs.append(bf(h) @ w_out + b_out)
    return jnp.stack(outs, axis=1)


if __name__ == "__main__":
    # Small stand-ins for (n_tokens=10403, emb=128, lstm=256, cnn_feat=2048).
    # T=10 exercises the padded-time tail chunk and the cross-chunk h/c carry;
    # V=500 exercises the unpadded-output / padded-weight vocab clipping.
    B, T = 8, 10
    V, E, H, F = 500, 128, 128, 256

    key = jax.random.PRNGKey(0)
    kp, ki, kc = jax.random.split(key, 3)
    params = init_params(kp, V, E, H, F)

    image_vectors = jax.random.normal(ki, (B, F), jnp.float32)
    captions_ix = jax.random.randint(kc, (B, T), 0, V, dtype=jnp.int32)

    fwd = jax.jit(caption_net_forward)
    logits = jax.block_until_ready(fwd(params, image_vectors, captions_ix))
    assert logits.shape == (B, T, V), logits.shape
    assert logits.dtype == jnp.bfloat16

    ref = reference_forward(params, image_vectors, captions_ix)
    np.testing.assert_allclose(np.asarray(logits.astype(jnp.float32)),
                               np.asarray(ref), atol=2e-2, rtol=2e-2)

    print("KERNEL_OK")
</pallas_src>

<mosaic_0001>
module attributes {stable_mosaic.version = 11 : i64} {
  func.func @lstm_kernel(%arg0: i32, %arg1: i32, %arg2: memref<8x8x512xf32, #tpu.memory_space<vmem>>, %arg3: memref<8x128xf32, #tpu.memory_space<vmem>>, %arg4: memref<8x128xf32, #tpu.memory_space<vmem>>, %arg5: memref<128x512xbf16, #tpu.memory_space<vmem>>, %arg6: memref<8x8x128xbf16, #tpu.memory_space<vmem>>, %arg7: memref<8x128xf32, #tpu.memory_space<vmem>>, %arg8: memref<8x128xf32, #tpu.memory_space<vmem>>) attributes {dimension_semantics = [#tpu.dimension_semantics<parallel>, #tpu.dimension_semantics<arbitrary>], iteration_bounds = array<i64: 1, 2>, scalar_prefetch = 0 : i64, scratch_operands = 2 : i64, tpu.core_type = #tpu.core_type<tc>, window_params = [{transform_indices = @transform_0, window_bounds = array<i64: 8, 8, 512>}, {transform_indices = @transform_1, window_bounds = array<i64: 8, 128>}, {transform_indices = @transform_2, window_bounds = array<i64: 8, 128>}, {pipeline_mode = #tpu.pipeline_mode<synchronous>, transform_indices = @transform_3, window_bounds = array<i64: 128, 512>}, {transform_indices = @transform_4, window_bounds = array<i64: 8, 8, 128>}]} {
    %c0_i32 = arith.constant 0 : i32
    %0 = arith.cmpi eq, %arg1, %c0_i32 : i32
    %1 = arith.extui %0 : i1 to i32
    %c0_i32_0 = arith.constant 0 : i32
    %2 = arith.cmpi ne, %1, %c0_i32_0 : i32
    scf.if %2 {
      %c0_144 = arith.constant 0 : index
      %c0_145 = arith.constant 0 : index
      %371 = vector.load %arg3[%c0_144, %c0_145] : memref<8x128xf32, #tpu.memory_space<vmem>>, vector<8x128xf32>
      %c0_146 = arith.constant 0 : index
      %c0_147 = arith.constant 0 : index
      %372 = vector.load %arg7[%c0_146, %c0_147] : memref<8x128xf32, #tpu.memory_space<vmem>>, vector<8x128xf32>
      tpu.vector_store %arg7[%c0_146, %c0_147], %371 {strides = array<i32>} : memref<8x128xf32, #tpu.memory_space<vmem>>, vector<8x128xf32>,
      %c0_148 = arith.constant 0 : index
      %c0_149 = arith.constant 0 : index
      %373 = vector.load %arg4[%c0_148, %c0_149] : memref<8x128xf32, #tpu.memory_space<vmem>>, vector<8x128xf32>
      %c0_150 = arith.constant 0 : index
      %c0_151 = arith.constant 0 : index
      %374 = vector.load %arg8[%c0_150, %c0_151] : memref<8x128xf32, #tpu.memory_space<vmem>>, vector<8x128xf32>
      tpu.vector_store %arg8[%c0_150, %c0_151], %373 {strides = array<i32>} : memref<8x128xf32, #tpu.memory_space<vmem>>, vector<8x128xf32>,
    } else {
    }
    %c0_i32_1 = arith.constant 0 : i32
    %3 = arith.index_cast %c0_i32_1 : i32 to index
    %c0 = arith.constant 0 : index
    %c0_2 = arith.constant 0 : index
    %4 = vector.load %arg2[%3, %c0, %c0_2] : memref<8x8x512xf32, #tpu.memory_space<vmem>>, vector<1x8x512xf32>
    %5 = vector.shape_cast %4 : vector<1x8x512xf32> to vector<8x512xf32>
    %c0_3 = arith.constant 0 : index
    %c0_4 = arith.constant 0 : index
    %6 = vector.load %arg7[%c0_3, %c0_4] : memref<8x128xf32, #tpu.memory_space<vmem>>, vector<8x128xf32>
    %7 = arith.truncf %6 : vector<8x128xf32> to vector<8x128xbf16>
    %c0_5 = arith.constant 0 : index
    %c0_6 = arith.constant 0 : index
    %8 = vector.load %arg5[%c0_5, %c0_6] : memref<128x512xbf16, #tpu.memory_space<vmem>>, vector<128x512xbf16>
    %cst = arith.constant dense<0.000000e+00> : vector<8x512xf32>
    %9 = tpu.matmul %7, %8, %cst {dimension_numbers = #tpu.dot_dimension_numbers<[1], [0], [0], [1], [0, 0, 1, 1], [], []>} : vector<8x128xbf16>, vector<128x512xbf16>, vector<8x512xf32> -> vector<8x512xf32>
    %10 = arith.addf %5, %9 : vector<8x512xf32>
    %11 = arith.truncf %10 : vector<8x512xf32> to vector<8x512xbf16>
    %12 = vector.extract_strided_slice %11 {offsets = [0, 0], sizes = [8, 128], strides = [1, 1]} : vector<8x512xbf16> to vector<8x128xbf16>
    %13 = arith.negf %12 : vector<8x128xbf16>
    %14 = math.exp %13 : vector<8x128xbf16>
    %cst_7 = arith.constant 1.000000e+00 : bf16
    %15 = vector.broadcast %cst_7 : bf16 to vector<8x128xbf16>
    %16 = arith.addf %15, %14 : vector<8x128xbf16>
    %17 = arith.divf %15, %16 : vector<8x128xbf16>
    %18 = arith.extf %17 : vector<8x128xbf16> to vector<8x128xf32>
    %19 = vector.extract_strided_slice %11 {offsets = [0, 128], sizes = [8, 128], strides = [1, 1]} : vector<8x512xbf16> to vector<8x128xbf16>
    %20 = arith.negf %19 : vector<8x128xbf16>
    %21 = math.exp %20 : vector<8x128xbf16>
    %cst_8 = arith.constant 1.000000e+00 : bf16
    %22 = vector.broadcast %cst_8 : bf16 to vector<8x128xbf16>
    %23 = arith.addf %22, %21 : vector<8x128xbf16>
    %24 = arith.divf %22, %23 : vector<8x128xbf16>
    %25 = arith.extf %24 : vector<8x128xbf16> to vector<8x128xf32>
    %26 = vector.extract_strided_slice %11 {offsets = [0, 256], sizes = [8, 128], strides = [1, 1]} : vector<8x512xbf16> to vector<8x128xbf16>
    %27 = math.tanh %26 : vector<8x128xbf16>
    %28 = arith.extf %27 : vector<8x128xbf16> to vector<8x128xf32>
    %29 = vector.extract_strided_slice %11 {offsets = [0, 384], sizes = [8, 128], strides = [1, 1]} : vector<8x512xbf16> to vector<8x128xbf16>
    %30 = arith.negf %29 : vector<8x128xbf16>
    %31 = math.exp %30 : vector<8x128xbf16>
    %cst_9 = arith.constant 1.000000e+00 : bf16
    %32 = vector.broadcast %cst_9 : bf16 to vector<8x128xbf16>
    %33 = arith.addf %32, %31 : vector<8x128xbf16>
    %34 = arith.divf %32, %33 : vector<8x128xbf16>
    %35 = arith.extf %34 : vector<8x128xbf16> to vector<8x128xf32>
    %c0_10 = arith.constant 0 : index
    %c0_11 = arith.constant 0 : index
    %36 = vector.load %arg8[%c0_10, %c0_11] : memref<8x128xf32, #tpu.memory_space<vmem>>, vector<8x128xf32>
    %37 = arith.mulf %25, %36 : vector<8x128xf32>
    %38 = arith.mulf %18, %28 : vector<8x128xf32>
    %39 = arith.addf %37, %38 : vector<8x128xf32>
    %40 = math.tanh %39 : vector<8x128xf32>
    %41 = arith.mulf %35, %40 : vector<8x128xf32>
    %c0_12 = arith.constant 0 : index
    %c0_13 = arith.constant 0 : index
    %42 = vector.load %arg8[%c0_12, %c0_13] : memref<8x128xf32, #tpu.memory_space<vmem>>, vector<8x128xf32>
    tpu.vector_store %arg8[%c0_12, %c0_13], %39 {strides = array<i32>} : memref<8x128xf32, #tpu.memory_space<vmem>>, vector<8x128xf32>,
    %c0_14 = arith.constant 0 : index
    %c0_15 = arith.constant 0 : index
    %43 = vector.load %arg7[%c0_14, %c0_15] : memref<8x128xf32, #tpu.memory_space<vmem>>, vector<8x128xf32>
    tpu.vector_store %arg7[%c0_14, %c0_15], %41 {strides = array<i32>} : memref<8x128xf32, #tpu.memory_space<vmem>>, vector<8x128xf32>,
    %44 = arith.truncf %41 : vector<8x128xf32> to vector<8x128xbf16>
    %45 = arith.index_cast %c0_i32_1 : i32 to index
    %c0_16 = arith.constant 0 : index
    %c0_17 = arith.constant 0 : index
    %46 = vector.load %arg6[%45, %c0_16, %c0_17] : memref<8x8x128xbf16, #tpu.memory_space<vmem>>, vector<1x8x128xbf16>
    %47 = vector.shape_cast %46 : vector<1x8x128xbf16> to vector<8x128xbf16>
    %48 = vector.shape_cast %44 : vector<8x128xbf16> to vector<1x8x128xbf16>
    tpu.vector_store %arg6[%45, %c0_16, %c0_17], %48 {strides = array<i32>} : memref<8x8x128xbf16, #tpu.memory_space<vmem>>, vector<1x8x128xbf16>,
    %c1_i32 = arith.constant 1 : i32
    %49 = arith.index_cast %c1_i32 : i32 to index
    %c0_18 = arith.constant 0 : index
    %c0_19 = arith.constant 0 : index
    %50 = vector.load %arg2[%49, %c0_18, %c0_19] : memref<8x8x512xf32, #tpu.memory_space<vmem>>, vector<1x8x512xf32>
    %51 = vector.shape_cast %50 : vector<1x8x512xf32> to vector<8x512xf32>
    %c0_20 = arith.constant 0 : index
    %c0_21 = arith.constant 0 : index
    %52 = vector.load %arg7[%c0_20, %c0_21] : memref<8x128xf32, #tpu.memory_space<vmem>>, vector<8x128xf32>
    %53 = arith.truncf %52 : vector<8x128xf32> to vector<8x128xbf16>
    %c0_22 = arith.constant 0 : index
    %c0_23 = arith.constant 0 : index
    %54 = vector.load %arg5[%c0_22, %c0_23] : memref<128x512xbf16, #tpu.memory_space<vmem>>, vector<128x512xbf16>
    %cst_24 = arith.constant dense<0.000000e+00> : vector<8x512xf32>
    %55 = tpu.matmul %53, %54, %cst_24 {dimension_numbers = #tpu.dot_dimension_numbers<[1], [0], [0], [1], [0, 0, 1, 1], [], []>} : vector<8x128xbf16>, vector<128x512xbf16>, vector<8x512xf32> -> vector<8x512xf32>
    %56 = arith.addf %51, %55 : vector<8x512xf32>
    %57 = arith.truncf %56 : vector<8x512xf32> to vector<8x512xbf16>
    %58 = vector.extract_strided_slice %57 {offsets = [0, 0], sizes = [8, 128], strides = [1, 1]} : vector<8x512xbf16> to vector<8x128xbf16>
    %59 = arith.negf %58 : vector<8x128xbf16>
    %60 = math.exp %59 : vector<8x128xbf16>
    %cst_25 = arith.constant 1.000000e+00 : bf16
    %61 = vector.broadcast %cst_25 : bf16 to vector<8x128xbf16>
    %62 = arith.addf %61, %60 : vector<8x128xbf16>
    %63 = arith.divf %61, %62 : vector<8x128xbf16>
    %64 = arith.extf %63 : vector<8x128xbf16> to vector<8x128xf32>
    %65 = vector.extract_strided_slice %57 {offsets = [0, 128], sizes = [8, 128], strides = [1, 1]} : vector<8x512xbf16> to vector<8x128xbf16>
    %66 = arith.negf %65 : vector<8x128xbf16>
    %67 = math.exp %66 : vector<8x128xbf16>
    %cst_26 = arith.constant 1.000000e+00 : bf16
    %68 = vector.broadcast %cst_26 : bf16 to vector<8x128xbf16>
    %69 = arith.addf %68, %67 : vector<8x128xbf16>
    %70 = arith.divf %68, %69 : vector<8x128xbf16>
    %71 = arith.extf %70 : vector<8x128xbf16> to vector<8x128xf32>
    %72 = vector.extract_strided_slice %57 {offsets = [0, 256], sizes = [8, 128], strides = [1, 1]} : vector<8x512xbf16> to vector<8x128xbf16>
    %73 = math.tanh %72 : vector<8x128xbf16>
    %74 = arith.extf %73 : vector<8x128xbf16> to vector<8x128xf32>
    %75 = vector.extract_strided_slice %57 {offsets = [0, 384], sizes = [8, 128], strides = [1, 1]} : vector<8x512xbf16> to vector<8x128xbf16>
    %76 = arith.negf %75 : vector<8x128xbf16>
    %77 = math.exp %76 : vector<8x128xbf16>
    %cst_27 = arith.constant 1.000000e+00 : bf16
    %78 = vector.broadcast %cst_27 : bf16 to vector<8x128xbf16>
    %79 = arith.addf %78, %77 : vector<8x128xbf16>
    %80 = arith.divf %78, %79 : vector<8x128xbf16>
    %81 = arith.extf %80 : vector<8x128xbf16> to vector<8x128xf32>
    %c0_28 = arith.constant 0 : index
    %c0_29 = arith.constant 0 : index
    %82 = vector.load %arg8[%c0_28, %c0_29] : memref<8x128xf32, #tpu.memory_space<vmem>>, vector<8x128xf32>
    %83 = arith.mulf %71, %82 : vector<8x128xf32>
    %84 = arith.mulf %64, %74 : vector<8x128xf32>
    %85 = arith.addf %83, %84 : vector<8x128xf32>
    %86 = math.tanh %85 : vector<8x128xf32>
    %87 = arith.mulf %81, %86 : vector<8x128xf32>
    %c0_30 = arith.constant 0 : index
    %c0_31 = arith.constant 0 : index
    %88 = vector.load %arg8[%c0_30, %c0_31] : memref<8x128xf32, #tpu.memory_space<vmem>>, vector<8x128xf32>
    tpu.vector_store %arg8[%c0_30, %c0_31], %85 {strides = array<i32>} : memref<8x128xf32, #tpu.memory_space<vmem>>, vector<8x128xf32>,
    %c0_32 = arith.constant 0 : index
    %c0_33 = arith.constant 0 : index
    %89 = vector.load %arg7[%c0_32, %c0_33] : memref<8x128xf32, #tpu.memory_space<vmem>>, vector<8x128xf32>
    tpu.vector_store %arg7[%c0_32, %c0_33], %87 {strides = array<i32>} : memref<8x128xf32, #tpu.memory_space<vmem>>, vector<8x128xf32>,
    %90 = arith.truncf %87 : vector<8x128xf32> to vector<8x128xbf16>
    %91 = arith.index_cast %c1_i32 : i32 to index
    %c0_34 = arith.constant 0 : index
    %c0_35 = arith.constant 0 : index
    %92 = vector.load %arg6[%91, %c0_34, %c0_35] : memref<8x8x128xbf16, #tpu.memory_space<vmem>>, vector<1x8x128xbf16>
    %93 = vector.shape_cast %92 : vector<1x8x128xbf16> to vector<8x128xbf16>
    %94 = vector.shape_cast %90 : vector<8x128xbf16> to vector<1x8x128xbf16>
    tpu.vector_store %arg6[%91, %c0_34, %c0_35], %94 {strides = array<i32>} : memref<8x8x128xbf16, #tpu.memory_space<vmem>>, vector<1x8x128xbf16>,
    %c2_i32 = arith.constant 2 : i32
    %95 = arith.index_cast %c2_i32 : i32 to index
    %c0_36 = arith.constant 0 : index
    %c0_37 = arith.constant 0 : index
    %96 = vector.load %arg2[%95, %c0_36, %c0_37] : memref<8x8x512xf32, #tpu.memory_space<vmem>>, vector<1x8x512xf32>
    %97 = vector.shape_cast %96 : vector<1x8x512xf32> to vector<8x512xf32>
    %c0_38 = arith.constant 0 : index
    %c0_39 = arith.constant 0 : index
    %98 = vector.load %arg7[%c0_38, %c0_39] : memref<8x128xf32, #tpu.memory_space<vmem>>, vector<8x128xf32>
    %99 = arith.truncf %98 : vector<8x128xf32> to vector<8x128xbf16>
    %c0_40 = arith.constant 0 : index
    %c0_41 = arith.constant 0 : index
    %100 = vector.load %arg5[%c0_40, %c0_41] : memref<128x512xbf16, #tpu.memory_space<vmem>>, vector<128x512xbf16>
    %cst_42 = arith.constant dense<0.000000e+00> : vector<8x512xf32>
    %101 = tpu.matmul %99, %100, %cst_42 {dimension_numbers = #tpu.dot_dimension_numbers<[1], [0], [0], [1], [0, 0, 1, 1], [], []>} : vector<8x128xbf16>, vector<128x512xbf16>, vector<8x512xf32> -> vector<8x512xf32>
    %102 = arith.addf %97, %101 : vector<8x512xf32>
    %103 = arith.truncf %102 : vector<8x512xf32> to vector<8x512xbf16>
    %104 = vector.extract_strided_slice %103 {offsets = [0, 0], sizes = [8, 128], strides = [1, 1]} : vector<8x512xbf16> to vector<8x128xbf16>
    %105 = arith.negf %104 : vector<8x128xbf16>
    %106 = math.exp %105 : vector<8x128xbf16>
    %cst_43 = arith.constant 1.000000e+00 : bf16
    %107 = vector.broadcast %cst_43 : bf16 to vector<8x128xbf16>
    %108 = arith.addf %107, %106 : vector<8x128xbf16>
    %109 = arith.divf %107, %108 : vector<8x128xbf16>
    %110 = arith.extf %109 : vector<8x128xbf16> to vector<8x128xf32>
    %111 = vector.extract_strided_slice %103 {offsets = [0, 128], sizes = [8, 128], strides = [1, 1]} : vector<8x512xbf16> to vector<8x128xbf16>
    %112 = arith.negf %111 : vector<8x128xbf16>
    %113 = math.exp %112 : vector<8x128xbf16>
    %cst_44 = arith.constant 1.000000e+00 : bf16
    %114 = vector.broadcast %cst_44 : bf16 to vector<8x128xbf16>
    %115 = arith.addf %114, %113 : vector<8x128xbf16>
    %116 = arith.divf %114, %115 : vector<8x128xbf16>
    %117 = arith.extf %116 : vector<8x128xbf16> to vector<8x128xf32>
    %118 = vector.extract_strided_slice %103 {offsets = [0, 256], sizes = [8, 128], strides = [1, 1]} : vector<8x512xbf16> to vector<8x128xbf16>
    %119 = math.tanh %118 : vector<8x128xbf16>
    %120 = arith.extf %119 : vector<8x128xbf16> to vector<8x128xf32>
    %121 = vector.extract_strided_slice %103 {offsets = [0, 384], sizes = [8, 128], strides = [1, 1]} : vector<8x512xbf16> to vector<8x128xbf16>
    %122 = arith.negf %121 : vector<8x128xbf16>
    %123 = math.exp %122 : vector<8x128xbf16>
    %cst_45 = arith.constant 1.000000e+00 : bf16
    %124 = vector.broadcast %cst_45 : bf16 to vector<8x128xbf16>
    %125 = arith.addf %124, %123 : vector<8x128xbf16>
    %126 = arith.divf %124, %125 : vector<8x128xbf16>
    %127 = arith.extf %126 : vector<8x128xbf16> to vector<8x128xf32>
    %c0_46 = arith.constant 0 : index
    %c0_47 = arith.constant 0 : index
    %128 = vector.load %arg8[%c0_46, %c0_47] : memref<8x128xf32, #tpu.memory_space<vmem>>, vector<8x128xf32>
    %129 = arith.mulf %117, %128 : vector<8x128xf32>
    %130 = arith.mulf %110, %120 : vector<8x128xf32>
    %131 = arith.addf %129, %130 : vector<8x128xf32>
    %132 = math.tanh %131 : vector<8x128xf32>
    %133 = arith.mulf %127, %132 : vector<8x128xf32>
    %c0_48 = arith.constant 0 : index
    %c0_49 = arith.constant 0 : index
    %134 = vector.load %arg8[%c0_48, %c0_49] : memref<8x128xf32, #tpu.memory_space<vmem>>, vector<8x128xf32>
    tpu.vector_store %arg8[%c0_48, %c0_49], %131 {strides = array<i32>} : memref<8x128xf32, #tpu.memory_space<vmem>>, vector<8x128xf32>,
    %c0_50 = arith.constant 0 : index
    %c0_51 = arith.constant 0 : index
    %135 = vector.load %arg7[%c0_50, %c0_51] : memref<8x128xf32, #tpu.memory_space<vmem>>, vector<8x128xf32>
    tpu.vector_store %arg7[%c0_50, %c0_51], %133 {strides = array<i32>} : memref<8x128xf32, #tpu.memory_space<vmem>>, vector<8x128xf32>,
    %136 = arith.truncf %133 : vector<8x128xf32> to vector<8x128xbf16>
    %137 = arith.index_cast %c2_i32 : i32 to index
    %c0_52 = arith.constant 0 : index
    %c0_53 = arith.constant 0 : index
    %138 = vector.load %arg6[%137, %c0_52, %c0_53] : memref<8x8x128xbf16, #tpu.memory_space<vmem>>, vector<1x8x128xbf16>
    %139 = vector.shape_cast %138 : vector<1x8x128xbf16> to vector<8x128xbf16>
    %140 = vector.shape_cast %136 : vector<8x128xbf16> to vector<1x8x128xbf16>
    tpu.vector_store %arg6[%137, %c0_52, %c0_53], %140 {strides = array<i32>} : memref<8x8x128xbf16, #tpu.memory_space<vmem>>, vector<1x8x128xbf16>,
    %c3_i32 = arith.constant 3 : i32
    %141 = arith.index_cast %c3_i32 : i32 to index
    %c0_54 = arith.constant 0 : index
    %c0_55 = arith.constant 0 : index
    %142 = vector.load %arg2[%141, %c0_54, %c0_55] : memref<8x8x512xf32, #tpu.memory_space<vmem>>, vector<1x8x512xf32>
    %143 = vector.shape_cast %142 : vector<1x8x512xf32> to vector<8x512xf32>
    %c0_56 = arith.constant 0 : index
    %c0_57 = arith.constant 0 : index
    %144 = vector.load %arg7[%c0_56, %c0_57] : memref<8x128xf32, #tpu.memory_space<vmem>>, vector<8x128xf32>
    %145 = arith.truncf %144 : vector<8x128xf32> to vector<8x128xbf16>
    %c0_58 = arith.constant 0 : index
    %c0_59 = arith.constant 0 : index
    %146 = vector.load %arg5[%c0_58, %c0_59] : memref<128x512xbf16, #tpu.memory_space<vmem>>, vector<128x512xbf16>
    %cst_60 = arith.constant dense<0.000000e+00> : vector<8x512xf32>
    %147 = tpu.matmul %145, %146, %cst_60 {dimension_numbers = #tpu.dot_dimension_numbers<[1], [0], [0], [1], [0, 0, 1, 1], [], []>} : vector<8x128xbf16>, vector<128x512xbf16>, vector<8x512xf32> -> vector<8x512xf32>
    %148 = arith.addf %143, %147 : vector<8x512xf32>
    %149 = arith.truncf %148 : vector<8x512xf32> to vector<8x512xbf16>
    %150 = vector.extract_strided_slice %149 {offsets = [0, 0], sizes = [8, 128], strides = [1, 1]} : vector<8x512xbf16> to vector<8x128xbf16>
    %151 = arith.negf %150 : vector<8x128xbf16>
    %152 = math.exp %151 : vector<8x128xbf16>
    %cst_61 = arith.constant 1.000000e+00 : bf16
    %153 = vector.broadcast %cst_61 : bf16 to vector<8x128xbf16>
    %154 = arith.addf %153, %152 : vector<8x128xbf16>
    %155 = arith.divf %153, %154 : vector<8x128xbf16>
    %156 = arith.extf %155 : vector<8x128xbf16> to vector<8x128xf32>
    %157 = vector.extract_strided_slice %149 {offsets = [0, 128], sizes = [8, 128], strides = [1, 1]} : vector<8x512xbf16> to vector<8x128xbf16>
    %158 = arith.negf %157 : vector<8x128xbf16>
    %159 = math.exp %158 : vector<8x128xbf16>
    %cst_62 = arith.constant 1.000000e+00 : bf16
    %160 = vector.broadcast %cst_62 : bf16 to vector<8x128xbf16>
    %161 = arith.addf %160, %159 : vector<8x128xbf16>
    %162 = arith.divf %160, %161 : vector<8x128xbf16>
    %163 = arith.extf %162 : vector<8x128xbf16> to vector<8x128xf32>
    %164 = vector.extract_strided_slice %149 {offsets = [0, 256], sizes = [8, 128], strides = [1, 1]} : vector<8x512xbf16> to vector<8x128xbf16>
    %165 = math.tanh %164 : vector<8x128xbf16>
    %166 = arith.extf %165 : vector<8x128xbf16> to vector<8x128xf32>
    %167 = vector.extract_strided_slice %149 {offsets = [0, 384], sizes = [8, 128], strides = [1, 1]} : vector<8x512xbf16> to vector<8x128xbf16>
    %168 = arith.negf %167 : vector<8x128xbf16>
    %169 = math.exp %168 : vector<8x128xbf16>
    %cst_63 = arith.constant 1.000000e+00 : bf16
    %170 = vector.broadcast %cst_63 : bf16 to vector<8x128xbf16>
    %171 = arith.addf %170, %169 : vector<8x128xbf16>
    %172 = arith.divf %170, %171 : vector<8x128xbf16>
    %173 = arith.extf %172 : vector<8x128xbf16> to vector<8x128xf32>
    %c0_64 = arith.constant 0 : index
    %c0_65 = arith.constant 0 : index
    %174 = vector.load %arg8[%c0_64, %c0_65] : memref<8x128xf32, #tpu.memory_space<vmem>>, vector<8x128xf32>
    %175 = arith.mulf %163, %174 : vector<8x128xf32>
    %176 = arith.mulf %156, %166 : vector<8x128xf32>
    %177 = arith.addf %175, %176 : vector<8x128xf32>
    %178 = math.tanh %177 : vector<8x128xf32>
    %179 = arith.mulf %173, %178 : vector<8x128xf32>
    %c0_66 = arith.constant 0 : index
    %c0_67 = arith.constant 0 : index
    %180 = vector.load %arg8[%c0_66, %c0_67] : memref<8x128xf32, #tpu.memory_space<vmem>>, vector<8x128xf32>
    tpu.vector_store %arg8[%c0_66, %c0_67], %177 {strides = array<i32>} : memref<8x128xf32, #tpu.memory_space<vmem>>, vector<8x128xf32>,
    %c0_68 = arith.constant 0 : index
    %c0_69 = arith.constant 0 : index
    %181 = vector.load %arg7[%c0_68, %c0_69] : memref<8x128xf32, #tpu.memory_space<vmem>>, vector<8x128xf32>
    tpu.vector_store %arg7[%c0_68, %c0_69], %179 {strides = array<i32>} : memref<8x128xf32, #tpu.memory_space<vmem>>, vector<8x128xf32>,
    %182 = arith.truncf %179 : vector<8x128xf32> to vector<8x128xbf16>
    %183 = arith.index_cast %c3_i32 : i32 to index
    %c0_70 = arith.constant 0 : index
    %c0_71 = arith.constant 0 : index
    %184 = vector.load %arg6[%183, %c0_70, %c0_71] : memref<8x8x128xbf16, #tpu.memory_space<vmem>>, vector<1x8x128xbf16>
    %185 = vector.shape_cast %184 : vector<1x8x128xbf16> to vector<8x128xbf16>
    %186 = vector.shape_cast %182 : vector<8x128xbf16> to vector<1x8x128xbf16>
    tpu.vector_store %arg6[%183, %c0_70, %c0_71], %186 {strides = array<i32>} : memref<8x8x128xbf16, #tpu.memory_space<vmem>>, vector<1x8x128xbf16>,
    %c4_i32 = arith.constant 4 : i32
    %187 = arith.index_cast %c4_i32 : i32 to index
    %c0_72 = arith.constant 0 : index
    %c0_73 = arith.constant 0 : index
    %188 = vector.load %arg2[%187, %c0_72, %c0_73] : memref<8x8x512xf32, #tpu.memory_space<vmem>>, vector<1x8x512xf32>
    %189 = vector.shape_cast %188 : vector<1x8x512xf32> to vector<8x512xf32>
    %c0_74 = arith.constant 0 : index
    %c0_75 = arith.constant 0 : index
    %190 = vector.load %arg7[%c0_74, %c0_75] : memref<8x128xf32, #tpu.memory_space<vmem>>, vector<8x128xf32>
    %191 = arith.truncf %190 : vector<8x128xf32> to vector<8x128xbf16>
    %c0_76 = arith.constant 0 : index
    %c0_77 = arith.constant 0 : index
    %192 = vector.load %arg5[%c0_76, %c0_77] : memref<128x512xbf16, #tpu.memory_space<vmem>>, vector<128x512xbf16>
    %cst_78 = arith.constant dense<0.000000e+00> : vector<8x512xf32>
    %193 = tpu.matmul %191, %192, %cst_78 {dimension_numbers = #tpu.dot_dimension_numbers<[1], [0], [0], [1], [0, 0, 1, 1], [], []>} : vector<8x128xbf16>, vector<128x512xbf16>, vector<8x512xf32> -> vector<8x512xf32>
    %194 = arith.addf %189, %193 : vector<8x512xf32>
    %195 = arith.truncf %194 : vector<8x512xf32> to vector<8x512xbf16>
    %196 = vector.extract_strided_slice %195 {offsets = [0, 0], sizes = [8, 128], strides = [1, 1]} : vector<8x512xbf16> to vector<8x128xbf16>
    %197 = arith.negf %196 : vector<8x128xbf16>
    %198 = math.exp %197 : vector<8x128xbf16>
    %cst_79 = arith.constant 1.000000e+00 : bf16
    %199 = vector.broadcast %cst_79 : bf16 to vector<8x128xbf16>
    %200 = arith.addf %199, %198 : vector<8x128xbf16>
    %201 = arith.divf %199, %200 : vector<8x128xbf16>
    %202 = arith.extf %201 : vector<8x128xbf16> to vector<8x128xf32>
    %203 = vector.extract_strided_slice %195 {offsets = [0, 128], sizes = [8, 128], strides = [1, 1]} : vector<8x512xbf16> to vector<8x128xbf16>
    %204 = arith.negf %203 : vector<8x128xbf16>
    %205 = math.exp %204 : vector<8x128xbf16>
    %cst_80 = arith.constant 1.000000e+00 : bf16
    %206 = vector.broadcast %cst_80 : bf16 to vector<8x128xbf16>
    %207 = arith.addf %206, %205 : vector<8x128xbf16>
    %208 = arith.divf %206, %207 : vector<8x128xbf16>
    %209 = arith.extf %208 : vector<8x128xbf16> to vector<8x128xf32>
    %210 = vector.extract_strided_slice %195 {offsets = [0, 256], sizes = [8, 128], strides = [1, 1]} : vector<8x512xbf16> to vector<8x128xbf16>
    %211 = math.tanh %210 : vector<8x128xbf16>
    %212 = arith.extf %211 : vector<8x128xbf16> to vector<8x128xf32>
    %213 = vector.extract_strided_slice %195 {offsets = [0, 384], sizes = [8, 128], strides = [1, 1]} : vector<8x512xbf16> to vector<8x128xbf16>
    %214 = arith.negf %213 : vector<8x128xbf16>
    %215 = math.exp %214 : vector<8x128xbf16>
    %cst_81 = arith.constant 1.000000e+00 : bf16
    %216 = vector.broadcast %cst_81 : bf16 to vector<8x128xbf16>
    %217 = arith.addf %216, %215 : vector<8x128xbf16>
    %218 = arith.divf %216, %217 : vector<8x128xbf16>
    %219 = arith.extf %218 : vector<8x128xbf16> to vector<8x128xf32>
    %c0_82 = arith.constant 0 : index
    %c0_83 = arith.constant 0 : index
    %220 = vector.load %arg8[%c0_82, %c0_83] : memref<8x128xf32, #tpu.memory_space<vmem>>, vector<8x128xf32>
    %221 = arith.mulf %209, %220 : vector<8x128xf32>
    %222 = arith.mulf %202, %212 : vector<8x128xf32>
    %223 = arith.addf %221, %222 : vector<8x128xf32>
    %224 = math.tanh %223 : vector<8x128xf32>
    %225 = arith.mulf %219, %224 : vector<8x128xf32>
    %c0_84 = arith.constant 0 : index
    %c0_85 = arith.constant 0 : index
    %226 = vector.load %arg8[%c0_84, %c0_85] : memref<8x128xf32, #tpu.memory_space<vmem>>, vector<8x128xf32>
    tpu.vector_store %arg8[%c0_84, %c0_85], %223 {strides = array<i32>} : memref<8x128xf32, #tpu.memory_space<vmem>>, vector<8x128xf32>,
    %c0_86 = arith.constant 0 : index
    %c0_87 = arith.constant 0 : index
    %227 = vector.load %arg7[%c0_86, %c0_87] : memref<8x128xf32, #tpu.memory_space<vmem>>, vector<8x128xf32>
    tpu.vector_store %arg7[%c0_86, %c0_87], %225 {strides = array<i32>} : memref<8x128xf32, #tpu.memory_space<vmem>>, vector<8x128xf32>,
    %228 = arith.truncf %225 : vector<8x128xf32> to vector<8x128xbf16>
    %229 = arith.index_cast %c4_i32 : i32 to index
    %c0_88 = arith.constant 0 : index
    %c0_89 = arith.constant 0 : index
    %230 = vector.load %arg6[%229, %c0_88, %c0_89] : memref<8x8x128xbf16, #tpu.memory_space<vmem>>, vector<1x8x128xbf16>
    %231 = vector.shape_cast %230 : vector<1x8x128xbf16> to vector<8x128xbf16>
    %232 = vector.shape_cast %228 : vector<8x128xbf16> to vector<1x8x128xbf16>
    tpu.vector_store %arg6[%229, %c0_88, %c0_89], %232 {strides = array<i32>} : memref<8x8x128xbf16, #tpu.memory_space<vmem>>, vector<1x8x128xbf16>,
    %c5_i32 = arith.constant 5 : i32
    %233 = arith.index_cast %c5_i32 : i32 to index
    %c0_90 = arith.constant 0 : index
    %c0_91 = arith.constant 0 : index
    %234 = vector.load %arg2[%233, %c0_90, %c0_91] : memref<8x8x512xf32, #tpu.memory_space<vmem>>, vector<1x8x512xf32>
    %235 = vector.shape_cast %234 : vector<1x8x512xf32> to vector<8x512xf32>
    %c0_92 = arith.constant 0 : index
    %c0_93 = arith.constant 0 : index
    %236 = vector.load %arg7[%c0_92, %c0_93] : memref<8x128xf32, #tpu.memory_space<vmem>>, vector<8x128xf32>
    %237 = arith.truncf %236 : vector<8x128xf32> to vector<8x128xbf16>
    %c0_94 = arith.constant 0 : index
    %c0_95 = arith.constant 0 : index
    %238 = vector.load %arg5[%c0_94, %c0_95] : memref<128x512xbf16, #tpu.memory_space<vmem>>, vector<128x512xbf16>
    %cst_96 = arith.constant dense<0.000000e+00> : vector<8x512xf32>
    %239 = tpu.matmul %237, %238, %cst_96 {dimension_numbers = #tpu.dot_dimension_numbers<[1], [0], [0], [1], [0, 0, 1, 1], [], []>} : vector<8x128xbf16>, vector<128x512xbf16>, vector<8x512xf32> -> vector<8x512xf32>
    %240 = arith.addf %235, %239 : vector<8x512xf32>
    %241 = arith.truncf %240 : vector<8x512xf32> to vector<8x512xbf16>
    %242 = vector.extract_strided_slice %241 {offsets = [0, 0], sizes = [8, 128], strides = [1, 1]} : vector<8x512xbf16> to vector<8x128xbf16>
    %243 = arith.negf %242 : vector<8x128xbf16>
    %244 = math.exp %243 : vector<8x128xbf16>
    %cst_97 = arith.constant 1.000000e+00 : bf16
    %245 = vector.broadcast %cst_97 : bf16 to vector<8x128xbf16>
    %246 = arith.addf %245, %244 : vector<8x128xbf16>
    %247 = arith.divf %245, %246 : vector<8x128xbf16>
    %248 = arith.extf %247 : vector<8x128xbf16> to vector<8x128xf32>
    %249 = vector.extract_strided_slice %241 {offsets = [0, 128], sizes = [8, 128], strides = [1, 1]} : vector<8x512xbf16> to vector<8x128xbf16>
    %250 = arith.negf %249 : vector<8x128xbf16>
    %251 = math.exp %250 : vector<8x128xbf16>
    %cst_98 = arith.constant 1.000000e+00 : bf16
    %252 = vector.broadcast %cst_98 : bf16 to vector<8x128xbf16>
    %253 = arith.addf %252, %251 : vector<8x128xbf16>
    %254 = arith.divf %252, %253 : vector<8x128xbf16>
    %255 = arith.extf %254 : vector<8x128xbf16> to vector<8x128xf32>
    %256 = vector.extract_strided_slice %241 {offsets = [0, 256], sizes = [8, 128], strides = [1, 1]} : vector<8x512xbf16> to vector<8x128xbf16>
    %257 = math.tanh %256 : vector<8x128xbf16>
    %258 = arith.extf %257 : vector<8x128xbf16> to vector<8x128xf32>
    %259 = vector.extract_strided_slice %241 {offsets = [0, 384], sizes = [8, 128], strides = [1, 1]} : vector<8x512xbf16> to vector<8x128xbf16>
    %260 = arith.negf %259 : vector<8x128xbf16>
    %261 = math.exp %260 : vector<8x128xbf16>
    %cst_99 = arith.constant 1.000000e+00 : bf16
    %262 = vector.broadcast %cst_99 : bf16 to vector<8x128xbf16>
    %263 = arith.addf %262, %261 : vector<8x128xbf16>
    %264 = arith.divf %262, %263 : vector<8x128xbf16>
    %265 = arith.extf %264 : vector<8x128xbf16> to vector<8x128xf32>
    %c0_100 = arith.constant 0 : index
    %c0_101 = arith.constant 0 : index
    %266 = vector.load %arg8[%c0_100, %c0_101] : memref<8x128xf32, #tpu.memory_space<vmem>>, vector<8x128xf32>
    %267 = arith.mulf %255, %266 : vector<8x128xf32>
    %268 = arith.mulf %248, %258 : vector<8x128xf32>
    %269 = arith.addf %267, %268 : vector<8x128xf32>
    %270 = math.tanh %269 : vector<8x128xf32>
    %271 = arith.mulf %265, %270 : vector<8x128xf32>
    %c0_102 = arith.constant 0 : index
    %c0_103 = arith.constant 0 : index
    %272 = vector.load %arg8[%c0_102, %c0_103] : memref<8x128xf32, #tpu.memory_space<vmem>>, vector<8x128xf32>
    tpu.vector_store %arg8[%c0_102, %c0_103], %269 {strides = array<i32>} : memref<8x128xf32, #tpu.memory_space<vmem>>, vector<8x128xf32>,
    %c0_104 = arith.constant 0 : index
    %c0_105 = arith.constant 0 : index
    %273 = vector.load %arg7[%c0_104, %c0_105] : memref<8x128xf32, #tpu.memory_space<vmem>>, vector<8x128xf32>
    tpu.vector_store %arg7[%c0_104, %c0_105], %271 {strides = array<i32>} : memref<8x128xf32, #tpu.memory_space<vmem>>, vector<8x128xf32>,
    %274 = arith.truncf %271 : vector<8x128xf32> to vector<8x128xbf16>
    %275 = arith.index_cast %c5_i32 : i32 to index
    %c0_106 = arith.constant 0 : index
    %c0_107 = arith.constant 0 : index
    %276 = vector.load %arg6[%275, %c0_106, %c0_107] : memref<8x8x128xbf16, #tpu.memory_space<vmem>>, vector<1x8x128xbf16>
    %277 = vector.shape_cast %276 : vector<1x8x128xbf16> to vector<8x128xbf16>
    %278 = vector.shape_cast %274 : vector<8x128xbf16> to vector<1x8x128xbf16>
    tpu.vector_store %arg6[%275, %c0_106, %c0_107], %278 {strides = array<i32>} : memref<8x8x128xbf16, #tpu.memory_space<vmem>>, vector<1x8x128xbf16>,
    %c6_i32 = arith.constant 6 : i32
    %279 = arith.index_cast %c6_i32 : i32 to index
    %c0_108 = arith.constant 0 : index
    %c0_109 = arith.constant 0 : index
    %280 = vector.load %arg2[%279, %c0_108, %c0_109] : memref<8x8x512xf32, #tpu.memory_space<vmem>>, vector<1x8x512xf32>
    %281 = vector.shape_cast %280 : vector<1x8x512xf32> to vector<8x512xf32>
    %c0_110 = arith.constant 0 : index
    %c0_111 = arith.constant 0 : index
    %282 = vector.load %arg7[%c0_110, %c0_111] : memref<8x128xf32, #tpu.memory_space<vmem>>, vector<8x128xf32>
    %283 = arith.truncf %282 : vector<8x128xf32> to vector<8x128xbf16>
    %c0_112 = arith.constant 0 : index
    %c0_113 = arith.constant 0 : index
    %284 = vector.load %arg5[%c0_112, %c0_113] : memref<128x512xbf16, #tpu.memory_space<vmem>>, vector<128x512xbf16>
    %cst_114 = arith.constant dense<0.000000e+00> : vector<8x512xf32>
    %285 = tpu.matmul %283, %284, %cst_114 {dimension_numbers = #tpu.dot_dimension_numbers<[1], [0], [0], [1], [0, 0, 1, 1], [], []>} : vector<8x128xbf16>, vector<128x512xbf16>, vector<8x512xf32> -> vector<8x512xf32>
    %286 = arith.addf %281, %285 : vector<8x512xf32>
    %287 = arith.truncf %286 : vector<8x512xf32> to vector<8x512xbf16>
    %288 = vector.extract_strided_slice %287 {offsets = [0, 0], sizes = [8, 128], strides = [1, 1]} : vector<8x512xbf16> to vector<8x128xbf16>
    %289 = arith.negf %288 : vector<8x128xbf16>
    %290 = math.exp %289 : vector<8x128xbf16>
    %cst_115 = arith.constant 1.000000e+00 : bf16
    %291 = vector.broadcast %cst_115 : bf16 to vector<8x128xbf16>
    %292 = arith.addf %291, %290 : vector<8x128xbf16>
    %293 = arith.divf %291, %292 : vector<8x128xbf16>
    %294 = arith.extf %293 : vector<8x128xbf16> to vector<8x128xf32>
    %295 = vector.extract_strided_slice %287 {offsets = [0, 128], sizes = [8, 128], strides = [1, 1]} : vector<8x512xbf16> to vector<8x128xbf16>
    %296 = arith.negf %295 : vector<8x128xbf16>
    %297 = math.exp %296 : vector<8x128xbf16>
    %cst_116 = arith.constant 1.000000e+00 : bf16
    %298 = vector.broadcast %cst_116 : bf16 to vector<8x128xbf16>
    %299 = arith.addf %298, %297 : vector<8x128xbf16>
    %300 = arith.divf %298, %299 : vector<8x128xbf16>
    %301 = arith.extf %300 : vector<8x128xbf16> to vector<8x128xf32>
    %302 = vector.extract_strided_slice %287 {offsets = [0, 256], sizes = [8, 128], strides = [1, 1]} : vector<8x512xbf16> to vector<8x128xbf16>
    %303 = math.tanh %302 : vector<8x128xbf16>
    %304 = arith.extf %303 : vector<8x128xbf16> to vector<8x128xf32>
    %305 = vector.extract_strided_slice %287 {offsets = [0, 384], sizes = [8, 128], strides = [1, 1]} : vector<8x512xbf16> to vector<8x128xbf16>
    %306 = arith.negf %305 : vector<8x128xbf16>
    %307 = math.exp %306 : vector<8x128xbf16>
    %cst_117 = arith.constant 1.000000e+00 : bf16
    %308 = vector.broadcast %cst_117 : bf16 to vector<8x128xbf16>
    %309 = arith.addf %308, %307 : vector<8x128xbf16>
    %310 = arith.divf %308, %309 : vector<8x128xbf16>
    %311 = arith.extf %310 : vector<8x128xbf16> to vector<8x128xf32>
    %c0_118 = arith.constant 0 : index
    %c0_119 = arith.constant 0 : index
    %312 = vector.load %arg8[%c0_118, %c0_119] : memref<8x128xf32, #tpu.memory_space<vmem>>, vector<8x128xf32>
    %313 = arith.mulf %301, %312 : vector<8x128xf32>
    %314 = arith.mulf %294, %304 : vector<8x128xf32>
    %315 = arith.addf %313, %314 : vector<8x128xf32>
    %316 = math.tanh %315 : vector<8x128xf32>
    %317 = arith.mulf %311, %316 : vector<8x128xf32>
    %c0_120 = arith.constant 0 : index
    %c0_121 = arith.constant 0 : index
    %318 = vector.load %arg8[%c0_120, %c0_121] : memref<8x128xf32, #tpu.memory_space<vmem>>, vector<8x128xf32>
    tpu.vector_store %arg8[%c0_120, %c0_121], %315 {strides = array<i32>} : memref<8x128xf32, #tpu.memory_space<vmem>>, vector<8x128xf32>,
    %c0_122 = arith.constant 0 : index
    %c0_123 = arith.constant 0 : index
    %319 = vector.load %arg7[%c0_122, %c0_123] : memref<8x128xf32, #tpu.memory_space<vmem>>, vector<8x128xf32>
    tpu.vector_store %arg7[%c0_122, %c0_123], %317 {strides = array<i32>} : memref<8x128xf32, #tpu.memory_space<vmem>>, vector<8x128xf32>,
    %320 = arith.truncf %317 : vector<8x128xf32> to vector<8x128xbf16>
    %321 = arith.index_cast %c6_i32 : i32 to index
    %c0_124 = arith.constant 0 : index
    %c0_125 = arith.constant 0 : index
    %322 = vector.load %arg6[%321, %c0_124, %c0_125] : memref<8x8x128xbf16, #tpu.memory_space<vmem>>, vector<1x8x128xbf16>
    %323 = vector.shape_cast %322 : vector<1x8x128xbf16> to vector<8x128xbf16>
    %324 = vector.shape_cast %320 : vector<8x128xbf16> to vector<1x8x128xbf16>
    tpu.vector_store %arg6[%321, %c0_124, %c0_125], %324 {strides = array<i32>} : memref<8x8x128xbf16, #tpu.memory_space<vmem>>, vector<1x8x128xbf16>,
    %c7_i32 = arith.constant 7 : i32
    %325 = arith.index_cast %c7_i32 : i32 to index
    %c0_126 = arith.constant 0 : index
    %c0_127 = arith.constant 0 : index
    %326 = vector.load %arg2[%325, %c0_126, %c0_127] : memref<8x8x512xf32, #tpu.memory_space<vmem>>, vector<1x8x512xf32>
    %327 = vector.shape_cast %326 : vector<1x8x512xf32> to vector<8x512xf32>
    %c0_128 = arith.constant 0 : index
    %c0_129 = arith.constant 0 : index
    %328 = vector.load %arg7[%c0_128, %c0_129] : memref<8x128xf32, #tpu.memory_space<vmem>>, vector<8x128xf32>
    %329 = arith.truncf %328 : vector<8x128xf32> to vector<8x128xbf16>
    %c0_130 = arith.constant 0 : index
    %c0_131 = arith.constant 0 : index
    %330 = vector.load %arg5[%c0_130, %c0_131] : memref<128x512xbf16, #tpu.memory_space<vmem>>, vector<128x512xbf16>
    %cst_132 = arith.constant dense<0.000000e+00> : vector<8x512xf32>
    %331 = tpu.matmul %329, %330, %cst_132 {dimension_numbers = #tpu.dot_dimension_numbers<[1], [0], [0], [1], [0, 0, 1, 1], [], []>} : vector<8x128xbf16>, vector<128x512xbf16>, vector<8x512xf32> -> vector<8x512xf32>
    %332 = arith.addf %327, %331 : vector<8x512xf32>
    %333 = arith.truncf %332 : vector<8x512xf32> to vector<8x512xbf16>
    %334 = vector.extract_strided_slice %333 {offsets = [0, 0], sizes = [8, 128], strides = [1, 1]} : vector<8x512xbf16> to vector<8x128xbf16>
    %335 = arith.negf %334 : vector<8x128xbf16>
    %336 = math.exp %335 : vector<8x128xbf16>
    %cst_133 = arith.constant 1.000000e+00 : bf16
    %337 = vector.broadcast %cst_133 : bf16 to vector<8x128xbf16>
    %338 = arith.addf %337, %336 : vector<8x128xbf16>
    %339 = arith.divf %337, %338 : vector<8x128xbf16>
    %340 = arith.extf %339 : vector<8x128xbf16> to vector<8x128xf32>
    %341 = vector.extract_strided_slice %333 {offsets = [0, 128], sizes = [8, 128], strides = [1, 1]} : vector<8x512xbf16> to vector<8x128xbf16>
    %342 = arith.negf %341 : vector<8x128xbf16>
    %343 = math.exp %342 : vector<8x128xbf16>
    %cst_134 = arith.constant 1.000000e+00 : bf16
    %344 = vector.broadcast %cst_134 : bf16 to vector<8x128xbf16>
    %345 = arith.addf %344, %343 : vector<8x128xbf16>
    %346 = arith.divf %344, %345 : vector<8x128xbf16>
    %347 = arith.extf %346 : vector<8x128xbf16> to vector<8x128xf32>
    %348 = vector.extract_strided_slice %333 {offsets = [0, 256], sizes = [8, 128], strides = [1, 1]} : vector<8x512xbf16> to vector<8x128xbf16>
    %349 = math.tanh %348 : vector<8x128xbf16>
    %350 = arith.extf %349 : vector<8x128xbf16> to vector<8x128xf32>
    %351 = vector.extract_strided_slice %333 {offsets = [0, 384], sizes = [8, 128], strides = [1, 1]} : vector<8x512xbf16> to vector<8x128xbf16>
    %352 = arith.negf %351 : vector<8x128xbf16>
    %353 = math.exp %352 : vector<8x128xbf16>
    %cst_135 = arith.constant 1.000000e+00 : bf16
    %354 = vector.broadcast %cst_135 : bf16 to vector<8x128xbf16>
    %355 = arith.addf %354, %353 : vector<8x128xbf16>
    %356 = arith.divf %354, %355 : vector<8x128xbf16>
    %357 = arith.extf %356 : vector<8x128xbf16> to vector<8x128xf32>
    %c0_136 = arith.constant 0 : index
    %c0_137 = arith.constant 0 : index
    %358 = vector.load %arg8[%c0_136, %c0_137] : memref<8x128xf32, #tpu.memory_space<vmem>>, vector<8x128xf32>
    %359 = arith.mulf %347, %358 : vector<8x128xf32>
    %360 = arith.mulf %340, %350 : vector<8x128xf32>
    %361 = arith.addf %359, %360 : vector<8x128xf32>
    %362 = math.tanh %361 : vector<8x128xf32>
    %363 = arith.mulf %357, %362 : vector<8x128xf32>
    %c0_138 = arith.constant 0 : index
    %c0_139 = arith.constant 0 : index
    %364 = vector.load %arg8[%c0_138, %c0_139] : memref<8x128xf32, #tpu.memory_space<vmem>>, vector<8x128xf32>
    tpu.vector_store %arg8[%c0_138, %c0_139], %361 {strides = array<i32>} : memref<8x128xf32, #tpu.memory_space<vmem>>, vector<8x128xf32>,
    %c0_140 = arith.constant 0 : index
    %c0_141 = arith.constant 0 : index
    %365 = vector.load %arg7[%c0_140, %c0_141] : memref<8x128xf32, #tpu.memory_space<vmem>>, vector<8x128xf32>
    tpu.vector_store %arg7[%c0_140, %c0_141], %363 {strides = array<i32>} : memref<8x128xf32, #tpu.memory_space<vmem>>, vector<8x128xf32>,
    %366 = arith.truncf %363 : vector<8x128xf32> to vector<8x128xbf16>
    %367 = arith.index_cast %c7_i32 : i32 to index
    %c0_142 = arith.constant 0 : index
    %c0_143 = arith.constant 0 : index
    %368 = vector.load %arg6[%367, %c0_142, %c0_143] : memref<8x8x128xbf16, #tpu.memory_space<vmem>>, vector<1x8x128xbf16>
    %369 = vector.shape_cast %368 : vector<1x8x128xbf16> to vector<8x128xbf16>
    %370 = vector.shape_cast %366 : vector<8x128xbf16> to vector<1x8x128xbf16>
    tpu.vector_store %arg6[%367, %c0_142, %c0_143], %370 {strides = array<i32>} : memref<8x8x128xbf16, #tpu.memory_space<vmem>>, vector<1x8x128xbf16>,
    %c8_i32 = arith.constant 8 : i32
    return
  }
  func.func @transform_0(%arg0: i32, %arg1: i32) -> (i32, i32, i32) {
    %c0_i32 = arith.constant 0 : i32
    %c0_i32_0 = arith.constant 0 : i32
    return %arg1, %arg0, %c0_i32 : i32, i32, i32
  }
  func.func @transform_1(%arg0: i32, %arg1: i32) -> (i32, i32) {
    %c0_i32 = arith.constant 0 : i32
    %c0_i32_0 = arith.constant 0 : i32
    return %arg0, %c0_i32 : i32, i32
  }
  func.func @transform_2(%arg0: i32, %arg1: i32) -> (i32, i32) {
    %c0_i32 = arith.constant 0 : i32
    %c0_i32_0 = arith.constant 0 : i32
    return %arg0, %c0_i32 : i32, i32
  }
  func.func @transform_3(%arg0: i32, %arg1: i32) -> (i32, i32) {
    %c0_i32 = arith.constant 0 : i32
    %c0_i32_0 = arith.constant 0 : i32
    %c0_i32_1 = arith.constant 0 : i32
    return %c0_i32, %c0_i32_0 : i32, i32
  }
  func.func @transform_4(%arg0: i32, %arg1: i32) -> (i32, i32, i32) {
    %c0_i32 = arith.constant 0 : i32
    %c0_i32_0 = arith.constant 0 : i32
    return %arg1, %arg0, %c0_i32 : i32, i32, i32
  }
}

module attributes {stable_mosaic.version = 11 : i64} {
  func.func @proj_kernel(%arg0: i32, %arg1: i32, %arg2: memref<80x128xbf16, #tpu.memory_space<vmem>>, %arg3: memref<128x512xbf16, #tpu.memory_space<vmem>>, %arg4: memref<1x512xf32, #tpu.memory_space<vmem>>, %arg5: memref<80x512xbf16, #tpu.memory_space<vmem>>) attributes {dimension_semantics = [#tpu.dimension_semantics<parallel>, #tpu.dimension_semantics<parallel>], iteration_bounds = array<i64: 1, 1>, scalar_prefetch = 0 : i64, scratch_operands = 0 : i64, tpu.core_type = #tpu.core_type<tc>, window_params = [{transform_indices = @transform_0, window_bounds = array<i64: 80, 128>}, {transform_indices = @transform_1, window_bounds = array<i64: 128, 512>}, {transform_indices = @transform_2, window_bounds = array<i64: 1, 512>}, {transform_indices = @transform_3, window_bounds = array<i64: 80, 512>}]} {
    %c0 = arith.constant 0 : index
    %c0_0 = arith.constant 0 : index
    %0 = vector.load %arg2[%c0, %c0_0] : memref<80x128xbf16, #tpu.memory_space<vmem>>, vector<80x128xbf16>
    %c0_1 = arith.constant 0 : index
    %c0_2 = arith.constant 0 : index
    %1 = vector.load %arg3[%c0_1, %c0_2] : memref<128x512xbf16, #tpu.memory_space<vmem>>, vector<128x512xbf16>
    %cst = arith.constant dense<0.000000e+00> : vector<80x512xf32>
    %2 = tpu.matmul %0, %1, %cst {dimension_numbers = #tpu.dot_dimension_numbers<[1], [0], [0], [1], [0, 0, 1, 1], [], []>} : vector<80x128xbf16>, vector<128x512xbf16>, vector<80x512xf32> -> vector<80x512xf32>
    %c0_3 = arith.constant 0 : index
    %c0_4 = arith.constant 0 : index
    %3 = vector.load %arg4[%c0_3, %c0_4] : memref<1x512xf32, #tpu.memory_space<vmem>>, vector<1x512xf32>
    %4 = vector.broadcast %3 : vector<1x512xf32> to vector<80x512xf32>
    %5 = arith.addf %2, %4 : vector<80x512xf32>
    %6 = arith.truncf %5 : vector<80x512xf32> to vector<80x512xbf16>
    %c0_5 = arith.constant 0 : index
    %c0_6 = arith.constant 0 : index
    %7 = vector.load %arg5[%c0_5, %c0_6] : memref<80x512xbf16, #tpu.memory_space<vmem>>, vector<80x512xbf16>
    tpu.vector_store %arg5[%c0_5, %c0_6], %6 {strides = array<i32>} : memref<80x512xbf16, #tpu.memory_space<vmem>>, vector<80x512xbf16>,
    return
  }
  func.func @transform_0(%arg0: i32, %arg1: i32) -> (i32, i32) {
    %c0_i32 = arith.constant 0 : i32
    %c0_i32_0 = arith.constant 0 : i32
    return %arg0, %c0_i32 : i32, i32
  }
  func.func @transform_1(%arg0: i32, %arg1: i32) -> (i32, i32) {
    %c0_i32 = arith.constant 0 : i32
    %c0_i32_0 = arith.constant 0 : i32
    return %c0_i32, %arg1 : i32, i32
  }
  func.func @transform_2(%arg0: i32, %arg1: i32) -> (i32, i32) {
    %c0_i32 = arith.constant 0 : i32
    %c0_i32_0 = arith.constant 0 : i32
    return %c0_i32, %arg1 : i32, i32
  }
  func.func @transform_3(%arg0: i32, %arg1: i32) -> (i32, i32) {
    %c0_i32 = arith.constant 0 : i32
    return %arg0, %arg1 : i32, i32
  }
}

</mosaic_0001>

<llo_original>
// kernel: caption_net_forward.3
$region0: #{caption_net_forward.3}
  #allocation0 [shape = 'u32[]', space=smem, size = 0x4, offset = 0x4, fixed_abs, tag = 'smem constant byte address 0x4 - core index']
  #allocation1 [shape = 'u32[72,128]{1,0:T(1,128)}', space=vmem, size = 0x9000, scoped, tag = 'internal scratch']
  %s0 = inlined_call_operand.vmem [shape: bf16[80,128], index: 0, kind: input, shape index: {}]
  %s1 = inlined_call_operand.vmem [shape: bf16[128,512], index: 1, kind: input, shape index: {}]
  %s2 = inlined_call_operand.vmem [shape: f32[1,512], index: 2, kind: input, shape index: {}]
  %s3 = inlined_call_operand.vmem [shape: bf16[80,500], index: 3, kind: output, shape index: {}]
  %s4 = sld [smem:[#allocation0]]
  $region22: #{caption_net_forward.3} parent=0
    _
  %s6 = ssub.s32 1, %s4
  %s7 = scalar_select 0, %s6, %s4
  // Predicated region
  $region2: #{caption_net_forward.3} parent=0 // pred_check
    _
  $region3: #{caption_net_forward.3} parent=0 // pred_check_branch
    %9 = sbr.rel (0) target = $region5
  $region4: #{caption_net_forward.3} parent=0 // pred_region
    _
  $region5: #{caption_net_forward.3} parent=0 // pred_fallthru
    _
  // Predicated region
  $region6: #{caption_net_forward.3} parent=0 // pred_check
    _
  $region7: #{caption_net_forward.3} parent=0 // pred_check_branch
    %11 = sbr.rel (0) target = $region9
  $region8: #{caption_net_forward.3} parent=0 // pred_region
    _
  $region9: #{caption_net_forward.3} parent=0 // pred_fallthru
    _
  // Predicated region
  $region10: #{caption_net_forward.3} parent=0 // pred_check
    _
  $region11: #{caption_net_forward.3} parent=0 // pred_check_branch
    %13 = sbr.rel (0) target = $region13
  $region12: #{caption_net_forward.3} parent=0 // pred_region
    _
  $region13: #{caption_net_forward.3} parent=0 // pred_fallthru
    _
  %v14 = vld [vmem:[%s0] sm:$0xf]
  %v15 = vld [vmem:[%s0 + $0x4] sm:$0xf]
  %v16 = vld [vmem:[%s0 + $0x8] sm:$0xf]
  %v17 = vld [vmem:[%s0 + $0xc] sm:$0xf]
  %v18 = vld [vmem:[%s0 + $0x10] sm:$0xf]
  %v19 = vld [vmem:[%s0 + $0x14] sm:$0xf]
  %v20 = vld [vmem:[%s0 + $0x18] sm:$0xf]
  %v21 = vld [vmem:[%s0 + $0x1c] sm:$0xf]
  %v22 = vld [vmem:[%s0 + $0x20] sm:$0xf]
  %v23 = vld [vmem:[%s0 + $0x24] sm:$0xf]
  %v24 = vld [vmem:[%s1] sm:$0xff]
  %v25 = vld [vmem:[%s1 + $0x8] sm:$0xff]
  %v26 = vld [vmem:[%s1 + $0x10] sm:$0xff]
  %v27 = vld [vmem:[%s1 + $0x18] sm:$0xff]
  %v28 = vld [vmem:[%s1 + $0x20] sm:$0xff]
  %v29 = vld [vmem:[%s1 + $0x28] sm:$0xff]
  %v30 = vld [vmem:[%s1 + $0x30] sm:$0xff]
  %v31 = vld [vmem:[%s1 + $0x38] sm:$0xff]
  %v32 = vld [vmem:[%s1 + $0x40] sm:$0xff]
  %v33 = vld [vmem:[%s1 + $0x48] sm:$0xff]
  %v34 = vld [vmem:[%s1 + $0x50] sm:$0xff]
  %v35 = vld [vmem:[%s1 + $0x58] sm:$0xff]
  %v36 = vld [vmem:[%s1 + $0x60] sm:$0xff]
  %v37 = vld [vmem:[%s1 + $0x68] sm:$0xff]
  %v38 = vld [vmem:[%s1 + $0x70] sm:$0xff]
  %v39 = vld [vmem:[%s1 + $0x78] sm:$0xff]
  %v40 = vld [vmem:[%s1 + $0x80] sm:$0xff]
  %v41 = vld [vmem:[%s1 + $0x88] sm:$0xff]
  %v42 = vld [vmem:[%s1 + $0x90] sm:$0xff]
  %v43 = vld [vmem:[%s1 + $0x98] sm:$0xff]
  %v44 = vld [vmem:[%s1 + $0xa0] sm:$0xff]
  %v45 = vld [vmem:[%s1 + $0xa8] sm:$0xff]
  %v46 = vld [vmem:[%s1 + $0xb0] sm:$0xff]
  %v47 = vld [vmem:[%s1 + $0xb8] sm:$0xff]
  %v48 = vld [vmem:[%s1 + $0xc0] sm:$0xff]
  %v49 = vld [vmem:[%s1 + $0xc8] sm:$0xff]
  %v50 = vld [vmem:[%s1 + $0xd0] sm:$0xff]
  %v51 = vld [vmem:[%s1 + $0xd8] sm:$0xff]
  %v52 = vld [vmem:[%s1 + $0xe0] sm:$0xff]
  %v53 = vld [vmem:[%s1 + $0xe8] sm:$0xff]
  %v54 = vld [vmem:[%s1 + $0xf0] sm:$0xff]
  %v55 = vld [vmem:[%s1 + $0xf8] sm:$0xff]
  %v56 = vld [vmem:[%s2] sm:$0xf]
  %v58 = vperm.slane %v56, 0
  %v59 = vperm.slane %v56, 1
  %v60 = vperm.slane %v56, 2
  %v61 = vperm.slane %v56, 3
  %v76 = vunpack.c.l.b16 %v14
  %v77 = vunpack.c.l.b16 %v15
  %v78 = vunpack.c.l.b16 %v16
  %v79 = vunpack.c.l.b16 %v17
  %v80 = vunpack.c.l.b16 %v18
  %v81 = vunpack.c.l.b16 %v19
  %v82 = vunpack.c.l.b16 %v20
  %v83 = vunpack.c.l.b16 %v21
  %v84 = vunpack.c.l.b16 %v22
  %v85 = vunpack.c.l.b16 %v23
  %v86 = vpack.c.b16 %v77, %v76
  %v87 = vpack.c.b16 %v79, %v78
  %v88 = vpack.c.b16 %v81, %v80
  %v89 = vpack.c.b16 %v83, %v82
  %v90 = vpack.c.b16 %v85, %v84
  %v128 = vunpack.c.l.b16 %v24
  %v129 = vunpack.c.h.b16 %v24
  %v130 = vunpack.c.l.b16 %v25
  %v131 = vunpack.c.h.b16 %v25
  %v132 = vunpack.c.l.b16 %v26
  %v133 = vunpack.c.h.b16 %v26
  %v134 = vunpack.c.l.b16 %v27
  %v135 = vunpack.c.h.b16 %v27
  %v136 = vunpack.c.l.b16 %v28
  %v137 = vunpack.c.h.b16 %v28
  %v138 = vunpack.c.l.b16 %v29
  %v139 = vunpack.c.h.b16 %v29
  %v140 = vunpack.c.l.b16 %v30
  %v141 = vunpack.c.h.b16 %v30
  %v142 = vunpack.c.l.b16 %v31
  %v143 = vunpack.c.h.b16 %v31
  %v144 = vunpack.c.l.b16 %v32
  %v145 = vunpack.c.h.b16 %v32
  %v146 = vunpack.c.l.b16 %v33
  %v147 = vunpack.c.h.b16 %v33
  %v148 = vunpack.c.l.b16 %v34
  %v149 = vunpack.c.h.b16 %v34
  %v150 = vunpack.c.l.b16 %v35
  %v151 = vunpack.c.h.b16 %v35
  %v152 = vunpack.c.l.b16 %v36
  %v153 = vunpack.c.h.b16 %v36
  %v154 = vunpack.c.l.b16 %v37
  %v155 = vunpack.c.h.b16 %v37
  %v156 = vunpack.c.l.b16 %v38
  %v157 = vunpack.c.h.b16 %v38
  %v158 = vunpack.c.l.b16 %v39
  %v159 = vunpack.c.h.b16 %v39
  %v160 = vunpack.c.l.b16 %v40
  %v161 = vunpack.c.h.b16 %v40
  %v162 = vunpack.c.l.b16 %v41
  %v163 = vunpack.c.h.b16 %v41
  %v164 = vunpack.c.l.b16 %v42
  %v165 = vunpack.c.h.b16 %v42
  %v166 = vunpack.c.l.b16 %v43
  %v167 = vunpack.c.h.b16 %v43
  %v168 = vunpack.c.l.b16 %v44
  %v169 = vunpack.c.h.b16 %v44
  %v170 = vunpack.c.l.b16 %v45
  %v171 = vunpack.c.h.b16 %v45
  %v172 = vunpack.c.l.b16 %v46
  %v173 = vunpack.c.h.b16 %v46
  %v174 = vunpack.c.l.b16 %v47
  %v175 = vunpack.c.h.b16 %v47
  %v176 = vunpack.c.l.b16 %v48
  %v177 = vunpack.c.h.b16 %v48
  %v178 = vunpack.c.l.b16 %v49
  %v179 = vunpack.c.h.b16 %v49
  %v180 = vunpack.c.l.b16 %v50
  %v181 = vunpack.c.h.b16 %v50
  %v182 = vunpack.c.l.b16 %v51
  %v183 = vunpack.c.h.b16 %v51
  %v184 = vunpack.c.l.b16 %v52
  %v185 = vunpack.c.h.b16 %v52
  %v186 = vunpack.c.l.b16 %v53
  %v187 = vunpack.c.h.b16 %v53
  %v188 = vunpack.c.l.b16 %v54
  %v189 = vunpack.c.h.b16 %v54
  %v190 = vunpack.c.l.b16 %v55
  %v191 = vunpack.c.h.b16 %v55
  %v192 = vpack.c.b16 %v132, %v128
  %v193 = vpack.c.b16 %v133, %v129
  %v194 = vpack.c.b16 %v134, %v130
  %v195 = vpack.c.b16 %v135, %v131
  %v196 = vpack.c.b16 %v140, %v136
  %v197 = vpack.c.b16 %v141, %v137
  %v198 = vpack.c.b16 %v142, %v138
  %v199 = vpack.c.b16 %v143, %v139
  %v200 = vpack.c.b16 %v148, %v144
  %v201 = vpack.c.b16 %v149, %v145
  %v202 = vpack.c.b16 %v150, %v146
  %v203 = vpack.c.b16 %v151, %v147
  %v204 = vpack.c.b16 %v156, %v152
  %v205 = vpack.c.b16 %v157, %v153
  %v206 = vpack.c.b16 %v158, %v154
  %v207 = vpack.c.b16 %v159, %v155
  %v208 = vpack.c.b16 %v164, %v160
  %v209 = vpack.c.b16 %v165, %v161
  %v210 = vpack.c.b16 %v166, %v162
  %v211 = vpack.c.b16 %v167, %v163
  %v212 = vpack.c.b16 %v172, %v168
  %v213 = vpack.c.b16 %v173, %v169
  %v214 = vpack.c.b16 %v174, %v170
  %v215 = vpack.c.b16 %v175, %v171
  %v216 = vpack.c.b16 %v180, %v176
  %v217 = vpack.c.b16 %v181, %v177
  %v218 = vpack.c.b16 %v182, %v178
  %v219 = vpack.c.b16 %v183, %v179
  %v220 = vpack.c.b16 %v188, %v184
  %v221 = vpack.c.b16 %v189, %v185
  %v222 = vpack.c.b16 %v190, %v186
  %v223 = vpack.c.b16 %v191, %v187
  %256 = vmatpush.bf16.msra.mxu0 %v220
  %257 = vmatpush.bf16.msra.mxu0 %v216
  %258 = vmatpush.bf16.msra.mxu0 %v212
  %259 = vmatpush.bf16.msra.mxu0 %v208
  %260 = vmatpush.bf16.msra.mxu0 %v204
  %261 = vmatpush.bf16.msra.mxu0 %v200
  %262 = vmatpush.bf16.msra.mxu0 %v196
  %263 = vmatpush.bf16.msra.mxu0 %v192
  %264 = vmatmul.bf16.gmra.mxu0 %v86
  %v265 = vpop.f32.mrf.mxu0
  %v266 = vadd.f32 %v58, %v265
  %v267 = vpop.f32.mrf.mxu0
  %v268 = vadd.f32 %v58, %v267
  %269 = vmatmul.bf16.gmra.mxu0 %v87
  %v270 = vpop.f32.mrf.mxu0
  %v271 = vadd.f32 %v58, %v270
  %v272 = vpop.f32.mrf.mxu0
  %v273 = vadd.f32 %v58, %v272
  %274 = vmatmul.bf16.gmra.mxu0 %v88
  %v275 = vpop.f32.mrf.mxu0
  %v276 = vadd.f32 %v58, %v275
  %v277 = vpop.f32.mrf.mxu0
  %v278 = vadd.f32 %v58, %v277
  %279 = vmatmul.bf16.gmra.mxu0 %v89
  %v280 = vpop.f32.mrf.mxu0
  %v281 = vadd.f32 %v58, %v280
  %v282 = vpop.f32.mrf.mxu0
  %v283 = vadd.f32 %v58, %v282
  %284 = vmatmul.bf16.gmra.mxu0 %v90
  %v285 = vpop.f32.mrf.mxu0
  %v286 = vadd.f32 %v58, %v285
  %v287 = vpop.f32.mrf.mxu0
  %v288 = vadd.f32 %v58, %v287
  %289 = vdwg.mxu0
  %290 = vmatpush.bf16.msra.mxu0 %v221
  %291 = vmatpush.bf16.msra.mxu0 %v217
  %292 = vmatpush.bf16.msra.mxu0 %v213
  %293 = vmatpush.bf16.msra.mxu0 %v209
  %294 = vmatpush.bf16.msra.mxu0 %v205
  %295 = vmatpush.bf16.msra.mxu0 %v201
  %296 = vmatpush.bf16.msra.mxu0 %v197
  %297 = vmatpush.bf16.msra.mxu0 %v193
  %298 = vmatmul.bf16.gmra.mxu0 %v86
  %v299 = vpop.f32.mrf.mxu0
  %v300 = vadd.f32 %v59, %v299
  %v301 = vpop.f32.mrf.mxu0
  %v302 = vadd.f32 %v59, %v301
  %303 = vmatmul.bf16.gmra.mxu0 %v87
  %v304 = vpop.f32.mrf.mxu0
  %v305 = vadd.f32 %v59, %v304
  %v306 = vpop.f32.mrf.mxu0
  %v307 = vadd.f32 %v59, %v306
  %308 = vmatmul.bf16.gmra.mxu0 %v88
  %v309 = vpop.f32.mrf.mxu0
  %v310 = vadd.f32 %v59, %v309
  %v311 = vpop.f32.mrf.mxu0
  %v312 = vadd.f32 %v59, %v311
  %313 = vmatmul.bf16.gmra.mxu0 %v89
  %v314 = vpop.f32.mrf.mxu0
  %v315 = vadd.f32 %v59, %v314
  %v316 = vpop.f32.mrf.mxu0
  %v317 = vadd.f32 %v59, %v316
  %318 = vmatmul.bf16.gmra.mxu0 %v90
  %v319 = vpop.f32.mrf.mxu0
  %v320 = vadd.f32 %v59, %v319
  %v321 = vpop.f32.mrf.mxu0
  %v322 = vadd.f32 %v59, %v321
  %323 = vdwg.mxu0
  %324 = vmatpush.bf16.msra.mxu0 %v222
  %325 = vmatpush.bf16.msra.mxu0 %v218
  %326 = vmatpush.bf16.msra.mxu0 %v214
  %327 = vmatpush.bf16.msra.mxu0 %v210
  %328 = vmatpush.bf16.msra.mxu0 %v206
  %329 = vmatpush.bf16.msra.mxu0 %v202
  %330 = vmatpush.bf16.msra.mxu0 %v198
  %331 = vmatpush.bf16.msra.mxu0 %v194
  %332 = vmatmul.bf16.gmra.mxu0 %v86
  %v333 = vpop.f32.mrf.mxu0
  %v334 = vadd.f32 %v60, %v333
  %v335 = vpop.f32.mrf.mxu0
  %v336 = vadd.f32 %v60, %v335
  %337 = vmatmul.bf16.gmra.mxu0 %v87
  %v338 = vpop.f32.mrf.mxu0
  %v339 = vadd.f32 %v60, %v338
  %v340 = vpop.f32.mrf.mxu0
  %v341 = vadd.f32 %v60, %v340
  %342 = vmatmul.bf16.gmra.mxu0 %v88
  %v343 = vpop.f32.mrf.mxu0
  %v344 = vadd.f32 %v60, %v343
  %v345 = vpop.f32.mrf.mxu0
  %v346 = vadd.f32 %v60, %v345
  %347 = vmatmul.bf16.gmra.mxu0 %v89
  %v348 = vpop.f32.mrf.mxu0
  %v349 = vadd.f32 %v60, %v348
  %v350 = vpop.f32.mrf.mxu0
  %v351 = vadd.f32 %v60, %v350
  %352 = vmatmul.bf16.gmra.mxu0 %v90
  %v353 = vpop.f32.mrf.mxu0
  %v354 = vadd.f32 %v60, %v353
  %v355 = vpop.f32.mrf.mxu0
  %v356 = vadd.f32 %v60, %v355
  %357 = vdwg.mxu0
  %358 = vmatpush.bf16.msra.mxu0 %v223
  %359 = vmatpush.bf16.msra.mxu0 %v219
  %360 = vmatpush.bf16.msra.mxu0 %v215
  %361 = vmatpush.bf16.msra.mxu0 %v211
  %362 = vmatpush.bf16.msra.mxu0 %v207
  %363 = vmatpush.bf16.msra.mxu0 %v203
  %364 = vmatpush.bf16.msra.mxu0 %v199
  %365 = vmatpush.bf16.msra.mxu0 %v195
  %366 = vmatmul.bf16.gmra.mxu0 %v86
  %v367 = vpop.f32.mrf.mxu0
  %v368 = vadd.f32 %v61, %v367
  %v369 = vpop.f32.mrf.mxu0
  %v370 = vadd.f32 %v61, %v369
  %371 = vmatmul.bf16.gmra.mxu0 %v87
  %v372 = vpop.f32.mrf.mxu0
  %v373 = vadd.f32 %v61, %v372
  %v374 = vpop.f32.mrf.mxu0
  %v375 = vadd.f32 %v61, %v374
  %376 = vmatmul.bf16.gmra.mxu0 %v88
  %v377 = vpop.f32.mrf.mxu0
  %v378 = vadd.f32 %v61, %v377
  %v379 = vpop.f32.mrf.mxu0
  %v380 = vadd.f32 %v61, %v379
  %381 = vmatmul.bf16.gmra.mxu0 %v89
  %v382 = vpop.f32.mrf.mxu0
  %v383 = vadd.f32 %v61, %v382
  %v384 = vpop.f32.mrf.mxu0
  %v385 = vadd.f32 %v61, %v384
  %386 = vmatmul.bf16.gmra.mxu0 %v90
  %v387 = vpop.f32.mrf.mxu0
  %v388 = vadd.f32 %v61, %v387
  %v389 = vpop.f32.mrf.mxu0
  %v390 = vadd.f32 %v61, %v389
  %391 = vdwg.mxu0
  %v392 = vpack.c.bf16 %v300, %v266
  %v393 = vpack.c.bf16 %v368, %v334
  %v394 = vpack.c.bf16 %v302, %v268
  %v395 = vpack.c.bf16 %v370, %v336
  %v396 = vpack.c.bf16 %v305, %v271
  %v397 = vpack.c.bf16 %v373, %v339
  %v398 = vpack.c.bf16 %v307, %v273
  %v399 = vpack.c.bf16 %v375, %v341
  %v400 = vpack.c.bf16 %v310, %v276
  %v401 = vpack.c.bf16 %v378, %v344
  %v402 = vpack.c.bf16 %v312, %v278
  %v403 = vpack.c.bf16 %v380, %v346
  %v404 = vpack.c.bf16 %v315, %v281
  %v405 = vpack.c.bf16 %v383, %v349
  %v406 = vpack.c.bf16 %v317, %v283
  %v407 = vpack.c.bf16 %v385, %v351
  %v408 = vpack.c.bf16 %v320, %v286
  %v409 = vpack.c.bf16 %v388, %v354
  %v410 = vpack.c.bf16 %v322, %v288
  %v411 = vpack.c.bf16 %v390, %v356
  %412 = vst [vmem:[%s3] sm:$0xff] %v392
  %413 = vst [vmem:[%s3 + $0x8] sm:$0xff] %v393
  %414 = vst [vmem:[%s3 + $0x10] sm:$0xff] %v394
  %415 = vst [vmem:[%s3 + $0x18] sm:$0xff] %v395
  %416 = vst [vmem:[%s3 + $0x20] sm:$0xff] %v396
  %417 = vst [vmem:[%s3 + $0x28] sm:$0xff] %v397
  %418 = vst [vmem:[%s3 + $0x30] sm:$0xff] %v398
  %419 = vst [vmem:[%s3 + $0x38] sm:$0xff] %v399
  %420 = vst [vmem:[%s3 + $0x40] sm:$0xff] %v400
  %421 = vst [vmem:[%s3 + $0x48] sm:$0xff] %v401
  %422 = vst [vmem:[%s3 + $0x50] sm:$0xff] %v402
  %423 = vst [vmem:[%s3 + $0x58] sm:$0xff] %v403
  %424 = vst [vmem:[%s3 + $0x60] sm:$0xff] %v404
  %425 = vst [vmem:[%s3 + $0x68] sm:$0xff] %v405
  %426 = vst [vmem:[%s3 + $0x70] sm:$0xff] %v406
  %427 = vst [vmem:[%s3 + $0x78] sm:$0xff] %v407
  %428 = vst [vmem:[%s3 + $0x80] sm:$0xff] %v408
  %429 = vst [vmem:[%s3 + $0x88] sm:$0xff] %v409
  %430 = vst [vmem:[%s3 + $0x90] sm:$0xff] %v410
  %431 = vst [vmem:[%s3 + $0x98] sm:$0xff] %v411
  // Predicated region
  $region14: #{caption_net_forward.3} parent=0 // pred_check
    _
  $region15: #{caption_net_forward.3} parent=0 // pred_check_branch
    %433 = sbr.rel (0) target = $region17
  $region16: #{caption_net_forward.3} parent=0 // pred_region
    _
  $region17: #{caption_net_forward.3} parent=0 // pred_fallthru
    _
  // Predicated region
  $region18: #{caption_net_forward.3} parent=0 // pred_check
    _
  $region19: #{caption_net_forward.3} parent=0 // pred_check_branch
    %435 = sbr.rel (0) target = $region21
  $region20: #{caption_net_forward.3} parent=0 // pred_region
    _
  $region21: #{caption_net_forward.3} parent=0 // pred_fallthru
    _

// kernel: caption_net_forward.2
$region0: #{caption_net_forward.2}
  #allocation0 [shape = 'u32[]', space=smem, size = 0x4, offset = 0x4, fixed_abs, tag = 'smem constant byte address 0x4 - core index']
  #allocation1 [shape = 'u32[72,128]{1,0:T(1,128)}', space=vmem, size = 0x9000, scoped, tag = 'internal scratch']
  #allocation2 [shape = 'f32[8,128]{1,0:T(8,128)}', space=vmem, size = 0x1000, scoped, tag = 'scratch operand']
  #allocation3 [shape = 'f32[8,128]{1,0:T(8,128)}', space=vmem, size = 0x1000, scoped, tag = 'scratch operand']
  %s0 = inlined_call_operand.vmem [shape: f32[16,8,512], index: 0, kind: input, shape index: {}]
  %s1 = inlined_call_operand.vmem [shape: f32[8,128], index: 1, kind: input, shape index: {}]
  %s2 = inlined_call_operand.vmem [shape: f32[8,128], index: 2, kind: input, shape index: {}]
  %s3 = inlined_call_operand.vmem [shape: bf16[128,512], index: 3, kind: input, shape index: {}]
  %s4 = inlined_call_operand.vmem [shape: bf16[16,8,128], index: 4, kind: output, shape index: {}]
  %s5 = sld [smem:[#allocation0]]
  $region53: #{caption_net_forward.2} parent=0
    _
  %s7 = ssub.s32 1, %s5
  %s8 = scalar_select 0, %s7, %s5
  loop: start=0, step=1, limit=4
  $region2: #{caption_net_forward.2} parent=0 // loop_pre_header
    _
  $region3: #{caption_net_forward.2} parent=0 // loop_header
    %s10 = sphi 0, %s14
    %p11 = scmp.ge.s32.totalorder %s10, 4
    %s17 = sphi 0, %s29
    %s18 = sphi 0, %s25
    %s19 = sphi 0, %s17
    %s20 = sphi 0, %s18
    %s21 = sphi 0, %s19
    %s22 = sphi 0, %s20
    %s34 = sphi 0, %s36
    %s37 = sphi 0, %s34
    %s38 = sphi 0, %s37
    %s54 = sphi 0, %s38
    %s60 = sphi 0, %s62
    %s63 = sphi 0, %s60
    %s64 = sphi 0, %s63
    %s80 = sphi 0, %s64
    %s86 = sphi 0, %s88
    %s89 = sphi 0, %s86
    %s90 = sphi 0, %s89
    %s106 = sphi 0, %s90
    %s110 = sphi 0, %s110
    %s112 = sphi 0, %s110
    %s113 = sphi 0, %s112
    %s127 = sphi 0, %s113
    %s135 = sphi 0, %s137
    %s138 = sphi 0, %s135
    %s139 = sphi 0, %s138
    %s155 = sphi 0, %s139
  $region4: #{caption_net_forward.2} parent=0 // loop_header_branch
    %13 = sbr.rel (%p11) target = $region8
  $region5: #{caption_net_forward.2} parent=0 // loop_body
    %s15 = ssub.s32 %s10, 1
    %s16 = ssub.s32 %s10, 2
    %s23 = sadd.s32 1, %s18
    %p24 = scmp.ge.s32.totalorder %s23, 2
    %s25 = scalar_select %p24, 0, %s23
    %s26 = sadd.s32 1, %s17
    %s27 = scalar_select %p24, %s26, %s17
    %p28 = scmp.ge.s32.totalorder %s27, 1
    %s29 = scalar_select %p28, 0, %s27
    %s30 = ssub.s32 %s18, %s25
    %s31 = ssub.s32 %s17, %s29
    %s32 = sor.u32 %s30, %s31
    %p33 = scmp.eq.s32.totalorder %s32, 0
    %s35 = sadd.s32 %s34, 1
    %s36 = scalar_select %p33, %s34, %s35
    %p39 = pneg %p33
    %p40 = scmp.eq.s32.totalorder %s10, 1
    %p41 = por %p39, %p40
    %p42 = scmp.ne.s32.totalorder %s34, %s37
    %p43 = scmp.eq.s32.totalorder %s10, 0
    %p44 = por %p42, %p43
    %p45 = scmp.ne.s32.totalorder %s34, %s37
    %p46 = scmp.eq.s32.totalorder %s15, 1
    %p47 = por %p45, %p46
    %p48 = scmp.ne.s32.totalorder %s37, %s38
    %p49 = scmp.eq.s32.totalorder %s15, 0
    %p50 = por %p48, %p49
    %p51 = scmp.ne.s32.totalorder %s37, %s38
    %p52 = scmp.eq.s32.totalorder %s16, 1
    %p53 = por %p51, %p52
    %p55 = scmp.ne.s32.totalorder %s38, %s54
    %p56 = scmp.eq.s32.totalorder %s16, 0
    %p57 = por %p55, %p56
    %s58 = ssub.s32 %s17, %s29
    %p59 = scmp.eq.s32.totalorder %s58, 0
    %s61 = sadd.s32 %s60, 1
    %s62 = scalar_select %p59, %s60, %s61
    %p65 = pneg %p59
    %p66 = scmp.eq.s32.totalorder %s10, 1
    %p67 = por %p65, %p66
    %p68 = scmp.ne.s32.totalorder %s60, %s63
    %p69 = scmp.eq.s32.totalorder %s10, 0
    %p70 = por %p68, %p69
    %p71 = scmp.ne.s32.totalorder %s60, %s63
    %p72 = scmp.eq.s32.totalorder %s15, 1
    %p73 = por %p71, %p72
    %p74 = scmp.ne.s32.totalorder %s63, %s64
    %p75 = scmp.eq.s32.totalorder %s15, 0
    %p76 = por %p74, %p75
    %p77 = scmp.ne.s32.totalorder %s63, %s64
    %p78 = scmp.eq.s32.totalorder %s16, 1
    %p79 = por %p77, %p78
    %p81 = scmp.ne.s32.totalorder %s64, %s80
    %p82 = scmp.eq.s32.totalorder %s16, 0
    %p83 = por %p81, %p82
    %s84 = ssub.s32 %s17, %s29
    %p85 = scmp.eq.s32.totalorder %s84, 0
    %s87 = sadd.s32 %s86, 1
    %s88 = scalar_select %p85, %s86, %s87
    %p91 = pneg %p85
    %p92 = scmp.eq.s32.totalorder %s10, 1
    %p93 = por %p91, %p92
    %p94 = scmp.ne.s32.totalorder %s86, %s89
    %p95 = scmp.eq.s32.totalorder %s10, 0
    %p96 = por %p94, %p95
    %p97 = scmp.ne.s32.totalorder %s86, %s89
    %p98 = scmp.eq.s32.totalorder %s15, 1
    %p99 = por %p97, %p98
    %p100 = scmp.ne.s32.totalorder %s89, %s90
    %p101 = scmp.eq.s32.totalorder %s15, 0
    %p102 = por %p100, %p101
    %p103 = scmp.ne.s32.totalorder %s89, %s90
    %p104 = scmp.eq.s32.totalorder %s16, 1
    %p105 = por %p103, %p104
    %p107 = scmp.ne.s32.totalorder %s90, %s106
    %p108 = scmp.eq.s32.totalorder %s16, 0
    %p109 = por %p107, %p108
    %s111 = sadd.s32 %s110, 1
    %p114 = scmp.eq.s32.totalorder %s10, 1
    %p115 = scmp.ne.s32.totalorder %s110, %s112
    %p116 = scmp.eq.s32.totalorder %s10, 0
    %p117 = por %p115, %p116
    %p118 = scmp.ne.s32.totalorder %s110, %s112
    %p119 = scmp.eq.s32.totalorder %s15, 1
    %p120 = por %p118, %p119
    %p121 = scmp.ne.s32.totalorder %s112, %s113
    %p122 = scmp.eq.s32.totalorder %s15, 0
    %p123 = por %p121, %p122
    %p124 = scmp.ne.s32.totalorder %s112, %s113
    %p125 = scmp.eq.s32.totalorder %s16, 1
    %p126 = por %p124, %p125
    %p128 = scmp.ne.s32.totalorder %s113, %s127
    %p129 = scmp.eq.s32.totalorder %s16, 0
    %p130 = por %p128, %p129
    %s131 = ssub.s32 %s18, %s25
    %s132 = ssub.s32 %s17, %s29
    %s133 = sor.u32 %s131, %s132
    %p134 = scmp.eq.s32.totalorder %s133, 0
    %s136 = sadd.s32 %s135, 1
    %s137 = scalar_select %p134, %s135, %s136
    %p140 = pneg %p134
    %p141 = scmp.eq.s32.totalorder %s10, 1
    %p142 = por %p140, %p141
    %p143 = scmp.ne.s32.totalorder %s135, %s138
    %p144 = scmp.eq.s32.totalorder %s10, 0
    %p145 = por %p143, %p144
    %p146 = scmp.ne.s32.totalorder %s135, %s138
    %p147 = scmp.eq.s32.totalorder %s15, 1
    %p148 = por %p146, %p147
    %p149 = scmp.ne.s32.totalorder %s138, %s139
    %p150 = scmp.eq.s32.totalorder %s15, 0
    %p151 = por %p149, %p150
    %p152 = scmp.ne.s32.totalorder %s138, %s139
    %p153 = scmp.eq.s32.totalorder %s16, 1
    %p154 = por %p152, %p153
    %p156 = scmp.ne.s32.totalorder %s139, %s155
    %p157 = scmp.eq.s32.totalorder %s16, 0
    %p158 = por %p156, %p157
    %p159 = scmp.le.s32.totalorder 1, %s10
    %p160 = scmp.lt.s32.totalorder %s10, 3
    %p161 = pnand %p159, %p160
    %p162 = pneg %p161
    // Predicated region
    $region9: #{caption_net_forward.2} parent=5 // pred_check
      _
    $region10: #{caption_net_forward.2} parent=5 // pred_check_branch
      %164 = sbr.rel (%p161) target = $region12
    $region11: #{caption_net_forward.2} parent=5 // pred_region
      %s165 = ssub.s32 %s10, 1
      // Predicated region
      $region13: #{caption_net_forward.2} parent=11 // pred_check
        %p166 = pneg %p76
      $region14: #{caption_net_forward.2} parent=11 // pred_check_branch
        %168 = sbr.rel (%p166) target = $region16
      $region15: #{caption_net_forward.2} parent=11 // pred_region
        %p169 = scmp.lt.s32.totalorder %s19, 0
        %s170 = scalar_select %p169, %s19, 0
        %s171 = smul.addr %s170, 8
        %s172 = scalar_lea.vmem %s1, %s171
      $region16: #{caption_net_forward.2} parent=11 // pred_fallthru
        _
      // Predicated region
      $region17: #{caption_net_forward.2} parent=11 // pred_check
        %p173 = pneg %p102
      $region18: #{caption_net_forward.2} parent=11 // pred_check_branch
        %175 = sbr.rel (%p173) target = $region20
      $region19: #{caption_net_forward.2} parent=11 // pred_region
        %p176 = scmp.lt.s32.totalorder %s19, 0
        %s177 = scalar_select %p176, %s19, 0
        %s178 = smul.addr %s177, 8
        %s179 = scalar_lea.vmem %s2, %s178
      $region20: #{caption_net_forward.2} parent=11 // pred_fallthru
        _
      // Predicated region
      $region21: #{caption_net_forward.2} parent=11 // pred_check
        %p180 = pneg %p123
      $region22: #{caption_net_forward.2} parent=11 // pred_check_branch
        %182 = sbr.rel (%p180) target = $region24
      $region23: #{caption_net_forward.2} parent=11 // pred_region
        _
      $region24: #{caption_net_forward.2} parent=11 // pred_fallthru
        _
    $region12: #{caption_net_forward.2} parent=5 // pred_fallthru
      _
    %p183 = scmp.lt.s32.totalorder %s10, 2
    // Predicated region
    $region25: #{caption_net_forward.2} parent=5 // pred_check
      %p184 = pneg %p183
    $region26: #{caption_net_forward.2} parent=5 // pred_check_branch
      %186 = sbr.rel (%p184) target = $region28
    $region27: #{caption_net_forward.2} parent=5 // pred_region
      // Predicated region
      $region29: #{caption_net_forward.2} parent=27 // pred_check
        %p187 = pneg %p44
      $region30: #{caption_net_forward.2} parent=27 // pred_check_branch
        %189 = sbr.rel (%p187) target = $region32
      $region31: #{caption_net_forward.2} parent=27 // pred_region
        %s190 = smul.u32 8, %s18
        %p191 = scmp.lt.s32.totalorder %s190, 15
        %s192 = scalar_select %p191, %s190, 15
        %p193 = scmp.lt.s32.totalorder %s17, 0
        %s194 = scalar_select %p193, %s17, 0
        %s195 = smul.addr %s194, 4
        %s196 = smul.addr %s192, 4
        %s197 = sadd.s32 %s195, %s196
        %s198 = smul.addr %s197, 8
        %s199 = scalar_lea.vmem %s0, %s198
        %s200 = smul.u32 8, %s18
      $region32: #{caption_net_forward.2} parent=27 // pred_fallthru
        _
    $region28: #{caption_net_forward.2} parent=5 // pred_fallthru
      _
    %p201 = scmp.le.s32.totalorder 1, %s10
    %p202 = scmp.lt.s32.totalorder %s10, 3
    %p203 = pnand %p201, %p202
    %p204 = pneg %p203
    // Predicated region
    $region33: #{caption_net_forward.2} parent=5 // pred_check
      _
    $region34: #{caption_net_forward.2} parent=5 // pred_check_branch
      %206 = sbr.rel (%p203) target = $region36
    $region35: #{caption_net_forward.2} parent=5 // pred_region
      %s207 = ssub.s32 %s10, 1
      %s208 = smul.u32 8, %s20
      %p209 = scmp.lt.s32.totalorder %s208, 15
      %s210 = scalar_select %p209, %s208, 15
      %p211 = scmp.lt.s32.totalorder %s19, 0
      %s212 = scalar_select %p211, %s19, 0
      %s213 = smul.addr %s212, 4
      %s214 = smul.addr %s210, 4
      %s215 = sadd.s32 %s213, %s214
      %s216 = smul.addr %s215, 8
      %s217 = scalar_lea.vmem %s0, %s216
      %p218 = pneg %p50
      %p219 = pneg %p47
      %p220 = scmp.lt.s32.totalorder %s19, 0
      %s221 = scalar_select %p220, %s19, 0
      %s222 = smul.addr %s221, 8
      %s223 = scalar_lea.vmem %s1, %s222
      %p224 = pneg %p76
      %p225 = pneg %p73
      %p226 = scmp.lt.s32.totalorder %s19, 0
      %s227 = scalar_select %p226, %s19, 0
      %s228 = smul.addr %s227, 8
      %s229 = scalar_lea.vmem %s2, %s228
      %p230 = pneg %p102
      %p231 = pneg %p99
      %p232 = pneg %p123
      %p233 = pneg %p120
      %p234 = pneg %p151
      %p235 = pneg %p148
      %s236 = smul.u32 8, %s20
      %p237 = scmp.lt.s32.totalorder %s236, 15
      %s238 = scalar_select %p237, %s236, 15
      %p239 = scmp.lt.s32.totalorder %s19, 0
      %s240 = scalar_select %p239, %s19, 0
      %s241 = sadd.s32 %s240, %s238
      %s242 = smul.addr %s241, 4
      %s243 = scalar_lea.vmem %s4, %s242
      %s244 = smul.u32 8, %s20
      %p245 = scmp.lt.s32.totalorder %s244, 15
      %s246 = scalar_select %p245, %s244, 15
      %p247 = scmp.lt.s32.totalorder %s19, 0
      %s248 = scalar_select %p247, %s19, 0
      %s249 = smul.addr %s248, 4
      %s250 = smul.addr %s246, 4
      %s251 = sadd.s32 %s249, %s250
      %s252 = smul.addr %s251, 8
      %s253 = scalar_lea.vmem %s0, %s252
      %s254 = smul.u32 8, %s20
      %p255 = scmp.lt.s32.totalorder %s19, 0
      %s256 = scalar_select %p255, %s19, 0
      %s257 = smul.addr %s256, 8
      %s258 = scalar_lea.vmem %s1, %s257
      %p259 = scmp.lt.s32.totalorder %s19, 0
      %s260 = scalar_select %p259, %s19, 0
      %s261 = smul.addr %s260, 8
      %s262 = scalar_lea.vmem %s2, %s261
      %s263 = smul.u32 8, %s20
      %p264 = scmp.lt.s32.totalorder %s263, 15
      %s265 = scalar_select %p264, %s263, 15
      %p266 = scmp.lt.s32.totalorder %s19, 0
      %s267 = scalar_select %p266, %s19, 0
      %s268 = sadd.s32 %s267, %s265
      %s269 = smul.addr %s268, 4
      %s270 = scalar_lea.vmem %s4, %s269
      %s271 = smul.u32 8, %s20
      %p273 = scmp.eq.s32.totalorder %s20, 0
      // Predicated region
      $region37: #{caption_net_forward.2} parent=35 // pred_check
        %p274 = pneg %p273
      $region38: #{caption_net_forward.2} parent=35 // pred_check_branch
        %276 = sbr.rel (%p274) target = $region40
      $region39: #{caption_net_forward.2} parent=35 // pred_region
        %v277 = vld [vmem:[%s258] sm:$0xff]
        %278 = vst [vmem:[#allocation2] sm:$0xff] %v277
        %v279 = vld [vmem:[%s262] sm:$0xff]
        %280 = vst [vmem:[#allocation3] sm:$0xff] %v279
      $region40: #{caption_net_forward.2} parent=35 // pred_fallthru
        _
      %v281 = vld [vmem:[%s253] sm:$0xff]
      %v282 = vld [vmem:[%s253 + $0x8] sm:$0xff]
      %v283 = vld [vmem:[%s253 + $0x10] sm:$0xff]
      %v284 = vld [vmem:[%s253 + $0x18] sm:$0xff]
      %v285 = vld [vmem:[#allocation2] sm:$0xff]
      %v286 = vpack.c.bf16 %v285, %v285
      %v287 = vld [vmem:[%s3] sm:$0xff]
      %v288 = vld [vmem:[%s3 + $0x8] sm:$0xff]
      %v289 = vld [vmem:[%s3 + $0x10] sm:$0xff]
      %v290 = vld [vmem:[%s3 + $0x18] sm:$0xff]
      %v291 = vld [vmem:[%s3 + $0x20] sm:$0xff]
      %v292 = vld [vmem:[%s3 + $0x28] sm:$0xff]
      %v293 = vld [vmem:[%s3 + $0x30] sm:$0xff]
      %v294 = vld [vmem:[%s3 + $0x38] sm:$0xff]
      %v295 = vld [vmem:[%s3 + $0x40] sm:$0xff]
      %v296 = vld [vmem:[%s3 + $0x48] sm:$0xff]
      %v297 = vld [vmem:[%s3 + $0x50] sm:$0xff]
      %v298 = vld [vmem:[%s3 + $0x58] sm:$0xff]
      %v299 = vld [vmem:[%s3 + $0x60] sm:$0xff]
      %v300 = vld [vmem:[%s3 + $0x68] sm:$0xff]
      %v301 = vld [vmem:[%s3 + $0x70] sm:$0xff]
      %v302 = vld [vmem:[%s3 + $0x78] sm:$0xff]
      %v303 = vld [vmem:[%s3 + $0x80] sm:$0xff]
      %v304 = vld [vmem:[%s3 + $0x88] sm:$0xff]
      %v305 = vld [vmem:[%s3 + $0x90] sm:$0xff]
      %v306 = vld [vmem:[%s3 + $0x98] sm:$0xff]
      %v307 = vld [vmem:[%s3 + $0xa0] sm:$0xff]
      %v308 = vld [vmem:[%s3 + $0xa8] sm:$0xff]
      %v309 = vld [vmem:[%s3 + $0xb0] sm:$0xff]
      %v310 = vld [vmem:[%s3 + $0xb8] sm:$0xff]
      %v311 = vld [vmem:[%s3 + $0xc0] sm:$0xff]
      %v312 = vld [vmem:[%s3 + $0xc8] sm:$0xff]
      %v313 = vld [vmem:[%s3 + $0xd0] sm:$0xff]
      %v314 = vld [vmem:[%s3 + $0xd8] sm:$0xff]
      %v315 = vld [vmem:[%s3 + $0xe0] sm:$0xff]
      %v316 = vld [vmem:[%s3 + $0xe8] sm:$0xff]
      %v317 = vld [vmem:[%s3 + $0xf0] sm:$0xff]
      %v318 = vld [vmem:[%s3 + $0xf8] sm:$0xff]
      %v351 = vunpack.c.l.b16 %v287
      %v352 = vunpack.c.h.b16 %v287
      %v353 = vunpack.c.l.b16 %v288
      %v354 = vunpack.c.h.b16 %v288
      %v355 = vunpack.c.l.b16 %v289
      %v356 = vunpack.c.h.b16 %v289
      %v357 = vunpack.c.l.b16 %v290
      %v358 = vunpack.c.h.b16 %v290
      %v359 = vunpack.c.l.b16 %v291
      %v360 = vunpack.c.h.b16 %v291
      %v361 = vunpack.c.l.b16 %v292
      %v362 = vunpack.c.h.b16 %v292
      %v363 = vunpack.c.l.b16 %v293
      %v364 = vunpack.c.h.b16 %v293
      %v365 = vunpack.c.l.b16 %v294
      %v366 = vunpack.c.h.b16 %v294
      %v367 = vunpack.c.l.b16 %v295
      %v368 = vunpack.c.h.b16 %v295
      %v369 = vunpack.c.l.b16 %v296
      %v370 = vunpack.c.h.b16 %v296
      %v371 = vunpack.c.l.b16 %v297
      %v372 = vunpack.c.h.b16 %v297
      %v373 = vunpack.c.l.b16 %v298
      %v374 = vunpack.c.h.b16 %v298
      %v375 = vunpack.c.l.b16 %v299
      %v376 = vunpack.c.h.b16 %v299
      %v377 = vunpack.c.l.b16 %v300
      %v378 = vunpack.c.h.b16 %v300
      %v379 = vunpack.c.l.b16 %v301
      %v380 = vunpack.c.h.b16 %v301
      %v381 = vunpack.c.l.b16 %v302
      %v382 = vunpack.c.h.b16 %v302
      %v383 = vunpack.c.l.b16 %v303
      %v384 = vunpack.c.h.b16 %v303
      %v385 = vunpack.c.l.b16 %v304
      %v386 = vunpack.c.h.b16 %v304
      %v387 = vunpack.c.l.b16 %v305
      %v388 = vunpack.c.h.b16 %v305
      %v389 = vunpack.c.l.b16 %v306
      %v390 = vunpack.c.h.b16 %v306
      %v391 = vunpack.c.l.b16 %v307
      %v392 = vunpack.c.h.b16 %v307
      %v393 = vunpack.c.l.b16 %v308
      %v394 = vunpack.c.h.b16 %v308
      %v395 = vunpack.c.l.b16 %v309
      %v396 = vunpack.c.h.b16 %v309
      %v397 = vunpack.c.l.b16 %v310
      %v398 = vunpack.c.h.b16 %v310
      %v399 = vunpack.c.l.b16 %v311
      %v400 = vunpack.c.h.b16 %v311
      %v401 = vunpack.c.l.b16 %v312
      %v402 = vunpack.c.h.b16 %v312
      %v403 = vunpack.c.l.b16 %v313
      %v404 = vunpack.c.h.b16 %v313
      %v405 = vunpack.c.l.b16 %v314
      %v406 = vunpack.c.h.b16 %v314
      %v407 = vunpack.c.l.b16 %v315
      %v408 = vunpack.c.h.b16 %v315
      %v409 = vunpack.c.l.b16 %v316
      %v410 = vunpack.c.h.b16 %v316
      %v411 = vunpack.c.l.b16 %v317
      %v412 = vunpack.c.h.b16 %v317
      %v413 = vunpack.c.l.b16 %v318
      %v414 = vunpack.c.h.b16 %v318
      %v415 = vpack.c.b16 %v355, %v351
      %v416 = vpack.c.b16 %v356, %v352
      %v417 = vpack.c.b16 %v357, %v353
      %v418 = vpack.c.b16 %v358, %v354
      %v419 = vpack.c.b16 %v363, %v359
      %v420 = vpack.c.b16 %v364, %v360
      %v421 = vpack.c.b16 %v365, %v361
      %v422 = vpack.c.b16 %v366, %v362
      %v423 = vpack.c.b16 %v371, %v367
      %v424 = vpack.c.b16 %v372, %v368
      %v425 = vpack.c.b16 %v373, %v369
      %v426 = vpack.c.b16 %v374, %v370
      %v427 = vpack.c.b16 %v379, %v375
      %v428 = vpack.c.b16 %v380, %v376
      %v429 = vpack.c.b16 %v381, %v377
      %v430 = vpack.c.b16 %v382, %v378
      %v431 = vpack.c.b16 %v387, %v383
      %v432 = vpack.c.b16 %v388, %v384
      %v433 = vpack.c.b16 %v389, %v385
      %v434 = vpack.c.b16 %v390, %v386
      %v435 = vpack.c.b16 %v395, %v391
      %v436 = vpack.c.b16 %v396, %v392
      %v437 = vpack.c.b16 %v397, %v393
      %v438 = vpack.c.b16 %v398, %v394
      %v439 = vpack.c.b16 %v403, %v399
      %v440 = vpack.c.b16 %v404, %v400
      %v441 = vpack.c.b16 %v405, %v401
      %v442 = vpack.c.b16 %v406, %v402
      %v443 = vpack.c.b16 %v411, %v407
      %v444 = vpack.c.b16 %v412, %v408
      %v445 = vpack.c.b16 %v413, %v409
      %v446 = vpack.c.b16 %v414, %v410
      %479 = vmatpush.bf16.msra.mxu0 %v443
      %480 = vmatpush.bf16.msra.mxu0 %v439
      %481 = vmatpush.bf16.msra.mxu0 %v435
      %482 = vmatpush.bf16.msra.mxu0 %v431
      %483 = vmatpush.bf16.msra.mxu0 %v427
      %484 = vmatpush.bf16.msra.mxu0 %v423
      %485 = vmatpush.bf16.msra.mxu0 %v419
      %486 = vmatpush.bf16.msra.mxu0 %v415
      %487 = vmatmul.bf16.gmra.mxu0 %v286
      %v488 = vpop.f32.mrf.mxu0
      %v489 = vadd.f32 0.0, %v488
      %v490 = vpop.f32.mrf.mxu0
      %491 = vdwg.mxu0
      %492 = vmatpush.bf16.msra.mxu0 %v444
      %493 = vmatpush.bf16.msra.mxu0 %v440
      %494 = vmatpush.bf16.msra.mxu0 %v436
      %495 = vmatpush.bf16.msra.mxu0 %v432
      %496 = vmatpush.bf16.msra.mxu0 %v428
      %497 = vmatpush.bf16.msra.mxu0 %v424
      %498 = vmatpush.bf16.msra.mxu0 %v420
      %499 = vmatpush.bf16.msra.mxu0 %v416
      %500 = vmatmul.bf16.gmra.mxu0 %v286
      %v501 = vpop.f32.mrf.mxu0
      %v502 = vadd.f32 0.0, %v501
      %v503 = vpop.f32.mrf.mxu0
      %504 = vdwg.mxu0
      %505 = vmatpush.bf16.msra.mxu0 %v445
      %506 = vmatpush.bf16.msra.mxu0 %v441
      %507 = vmatpush.bf16.msra.mxu0 %v437
      %508 = vmatpush.bf16.msra.mxu0 %v433
      %509 = vmatpush.bf16.msra.mxu0 %v429
      %510 = vmatpush.bf16.msra.mxu0 %v425
      %511 = vmatpush.bf16.msra.mxu0 %v421
      %512 = vmatpush.bf16.msra.mxu0 %v417
      %513 = vmatmul.bf16.gmra.mxu0 %v286
      %v514 = vpop.f32.mrf.mxu0
      %v515 = vadd.f32 0.0, %v514
      %v516 = vpop.f32.mrf.mxu0
      %517 = vdwg.mxu0
      %518 = vmatpush.bf16.msra.mxu0 %v446
      %519 = vmatpush.bf16.msra.mxu0 %v442
      %520 = vmatpush.bf16.msra.mxu0 %v438
      %521 = vmatpush.bf16.msra.mxu0 %v434
      %522 = vmatpush.bf16.msra.mxu0 %v430
      %523 = vmatpush.bf16.msra.mxu0 %v426
      %524 = vmatpush.bf16.msra.mxu0 %v422
      %525 = vmatpush.bf16.msra.mxu0 %v418
      %526 = vmatmul.bf16.gmra.mxu0 %v286
      %v527 = vpop.f32.mrf.mxu0
      %v528 = vadd.f32 0.0, %v527
      %v529 = vpop.f32.mrf.mxu0
      %530 = vdwg.mxu0
      %v531 = vadd.f32 %v281, %v489
      %v532 = vadd.f32 %v282, %v502
      %v533 = vadd.f32 %v283, %v515
      %v534 = vadd.f32 %v284, %v528
      %v535 = vpack.c.bf16 %v532, %v531
      %v536 = vpack.c.bf16 %v534, %v533
      %v537 = vxor.u32 %v535, 2147516416
      %v538 = vunpack.c.l.bf16 %v537
      %v539 = vmul.f32 %v538, 1.442695
      %v540 = vpow.pop %v539
      %v541 = vpack.c.bf16 %v540, %v540
      %v542 = vunpack.c.l.bf16 %v541
      %v543 = vadd.f32 %v542, 1.0
      %v544 = vpack.c.bf16 %v543, %v543
      %v545 = vunpack.c.h.bf16 1065369472
      %v546 = vunpack.c.l.bf16 1065369472
      %v547 = vunpack.c.h.bf16 %v544
      %v548 = vunpack.c.l.bf16 %v544
      %v549 = vrcp.pop %v547
      %v550 = vmul.f32 %v545, %v549
      %v551 = vrcp.pop %v548
      %v552 = vmul.f32 %v546, %v551
      %v553 = vpack.c.bf16 %v550, %v552
      %v554 = vunpack.c.l.bf16 %v553
      %v556 = vrot.slane %v535, 4
      %v558 = vxor.u32 %v556, 2147516416
      %v559 = vunpack.c.l.bf16 %v558
      %v560 = vmul.f32 %v559, 1.442695
      %v561 = vpow.pop %v560
      %v562 = vpack.c.bf16 %v561, %v561
      %v563 = vunpack.c.l.bf16 %v562
      %v564 = vadd.f32 %v563, 1.0
      %v565 = vpack.c.bf16 %v564, %v564
      %v566 = vunpack.c.h.bf16 %v565
      %v567 = vunpack.c.l.bf16 %v565
      %v568 = vrcp.pop %v566
      %v569 = vmul.f32 %v545, %v568
      %v570 = vrcp.pop %v567
      %v571 = vmul.f32 %v546, %v570
      %v572 = vpack.c.bf16 %v569, %v571
      %v573 = vunpack.c.l.bf16 %v572
      %v574 = vunpack.c.l.bf16 %v536
      %v575 = vtanh.pop %v574
      %v576 = vpack.c.bf16 %v575, %v575
      %v577 = vunpack.c.l.bf16 %v576
      %v579 = vrot.slane %v536, 4
      %v581 = vxor.u32 %v579, 2147516416
      %v582 = vunpack.c.l.bf16 %v581
      %v583 = vmul.f32 %v582, 1.442695
      %v584 = vpow.pop %v583
      %v585 = vpack.c.bf16 %v584, %v584
      %v586 = vunpack.c.l.bf16 %v585
      %v587 = vadd.f32 %v586, 1.0
      %v588 = vpack.c.bf16 %v587, %v587
      %v589 = vunpack.c.h.bf16 %v588
      %v590 = vunpack.c.l.bf16 %v588
      %v591 = vrcp.pop %v589
      %v592 = vmul.f32 %v545, %v591
      %v593 = vrcp.pop %v590
      %v594 = vmul.f32 %v546, %v593
      %v595 = vpack.c.bf16 %v592, %v594
      %v596 = vunpack.c.l.bf16 %v595
      %v597 = vld [vmem:[#allocation3] sm:$0xff]
      %v598 = vmul.f32 %v573, %v597
      %v599 = vmul.f32 %v554, %v577
      %v600 = vadd.f32 %v598, %v599
      %v601 = vtanh.pop %v600
      %v602 = vmul.f32 %v596, %v601
      %603 = vst [vmem:[#allocation3] sm:$0xff] %v600
      %604 = vst [vmem:[#allocation2] sm:$0xff] %v602
      %v605 = vpack.c.bf16 %v602, %v602
      %606 = vst [vmem:[%s270] sm:$0xf] %v605
      %s607 = scalar_lea.vmem %s253, 32
      %v608 = vld [vmem:[%s607] sm:$0xff]
      %v609 = vld [vmem:[%s607 + $0x8] sm:$0xff]
      %v610 = vld [vmem:[%s607 + $0x10] sm:$0xff]
      %v611 = vld [vmem:[%s607 + $0x18] sm:$0xff]
      %v612 = vld [vmem:[#allocation2] sm:$0xff]
      %v613 = vpack.c.bf16 %v612, %v612
      %v614 = vld [vmem:[%s3] sm:$0xff]
      %v615 = vld [vmem:[%s3 + $0x8] sm:$0xff]
      %v616 = vld [vmem:[%s3 + $0x10] sm:$0xff]
      %v617 = vld [vmem:[%s3 + $0x18] sm:$0xff]
      %v618 = vld [vmem:[%s3 + $0x20] sm:$0xff]
      %v619 = vld [vmem:[%s3 + $0x28] sm:$0xff]
      %v620 = vld [vmem:[%s3 + $0x30] sm:$0xff]
      %v621 = vld [vmem:[%s3 + $0x38] sm:$0xff]
      %v622 = vld [vmem:[%s3 + $0x40] sm:$0xff]
      %v623 = vld [vmem:[%s3 + $0x48] sm:$0xff]
      %v624 = vld [vmem:[%s3 + $0x50] sm:$0xff]
      %v625 = vld [vmem:[%s3 + $0x58] sm:$0xff]
      %v626 = vld [vmem:[%s3 + $0x60] sm:$0xff]
      %v627 = vld [vmem:[%s3 + $0x68] sm:$0xff]
      %v628 = vld [vmem:[%s3 + $0x70] sm:$0xff]
      %v629 = vld [vmem:[%s3 + $0x78] sm:$0xff]
      %v630 = vld [vmem:[%s3 + $0x80] sm:$0xff]
      %v631 = vld [vmem:[%s3 + $0x88] sm:$0xff]
      %v632 = vld [vmem:[%s3 + $0x90] sm:$0xff]
      %v633 = vld [vmem:[%s3 + $0x98] sm:$0xff]
      %v634 = vld [vmem:[%s3 + $0xa0] sm:$0xff]
      %v635 = vld [vmem:[%s3 + $0xa8] sm:$0xff]
      %v636 = vld [vmem:[%s3 + $0xb0] sm:$0xff]
      %v637 = vld [vmem:[%s3 + $0xb8] sm:$0xff]
      %v638 = vld [vmem:[%s3 + $0xc0] sm:$0xff]
      %v639 = vld [vmem:[%s3 + $0xc8] sm:$0xff]
      %v640 = vld [vmem:[%s3 + $0xd0] sm:$0xff]
      %v641 = vld [vmem:[%s3 + $0xd8] sm:$0xff]
      %v642 = vld [vmem:[%s3 + $0xe0] sm:$0xff]
      %v643 = vld [vmem:[%s3 + $0xe8] sm:$0xff]
      %v644 = vld [vmem:[%s3 + $0xf0] sm:$0xff]
      %v645 = vld [vmem:[%s3 + $0xf8] sm:$0xff]
      %v678 = vunpack.c.l.b16 %v614
      %v679 = vunpack.c.h.b16 %v614
      %v680 = vunpack.c.l.b16 %v615
      %v681 = vunpack.c.h.b16 %v615
      %v682 = vunpack.c.l.b16 %v616
      %v683 = vunpack.c.h.b16 %v616
      %v684 = vunpack.c.l.b16 %v617
      %v685 = vunpack.c.h.b16 %v617
      %v686 = vunpack.c.l.b16 %v618
      %v687 = vunpack.c.h.b16 %v618
      %v688 = vunpack.c.l.b16 %v619
      %v689 = vunpack.c.h.b16 %v619
      %v690 = vunpack.c.l.b16 %v620
      %v691 = vunpack.c.h.b16 %v620
      %v692 = vunpack.c.l.b16 %v621
      %v693 = vunpack.c.h.b16 %v621
      %v694 = vunpack.c.l.b16 %v622
      %v695 = vunpack.c.h.b16 %v622
      %v696 = vunpack.c.l.b16 %v623
      %v697 = vunpack.c.h.b16 %v623
      %v698 = vunpack.c.l.b16 %v624
      %v699 = vunpack.c.h.b16 %v624
      %v700 = vunpack.c.l.b16 %v625
      %v701 = vunpack.c.h.b16 %v625
      %v702 = vunpack.c.l.b16 %v626
      %v703 = vunpack.c.h.b16 %v626
      %v704 = vunpack.c.l.b16 %v627
      %v705 = vunpack.c.h.b16 %v627
      %v706 = vunpack.c.l.b16 %v628
      %v707 = vunpack.c.h.b16 %v628
      %v708 = vunpack.c.l.b16 %v629
      %v709 = vunpack.c.h.b16 %v629
      %v710 = vunpack.c.l.b16 %v630
      %v711 = vunpack.c.h.b16 %v630
      %v712 = vunpack.c.l.b16 %v631
      %v713 = vunpack.c.h.b16 %v631
      %v714 = vunpack.c.l.b16 %v632
      %v715 = vunpack.c.h.b16 %v632
      %v716 = vunpack.c.l.b16 %v633
      %v717 = vunpack.c.h.b16 %v633
      %v718 = vunpack.c.l.b16 %v634
      %v719 = vunpack.c.h.b16 %v634
      %v720 = vunpack.c.l.b16 %v635
      %v721 = vunpack.c.h.b16 %v635
      %v722 = vunpack.c.l.b16 %v636
      %v723 = vunpack.c.h.b16 %v636
      %v724 = vunpack.c.l.b16 %v637
      %v725 = vunpack.c.h.b16 %v637
      %v726 = vunpack.c.l.b16 %v638
      %v727 = vunpack.c.h.b16 %v638
      %v728 = vunpack.c.l.b16 %v639
      %v729 = vunpack.c.h.b16 %v639
      %v730 = vunpack.c.l.b16 %v640
      %v731 = vunpack.c.h.b16 %v640
      %v732 = vunpack.c.l.b16 %v641
      %v733 = vunpack.c.h.b16 %v641
      %v734 = vunpack.c.l.b16 %v642
      %v735 = vunpack.c.h.b16 %v642
      %v736 = vunpack.c.l.b16 %v643
      %v737 = vunpack.c.h.b16 %v643
      %v738 = vunpack.c.l.b16 %v644
      %v739 = vunpack.c.h.b16 %v644
      %v740 = vunpack.c.l.b16 %v645
      %v741 = vunpack.c.h.b16 %v645
      %v742 = vpack.c.b16 %v682, %v678
      %v743 = vpack.c.b16 %v683, %v679
      %v744 = vpack.c.b16 %v684, %v680
      %v745 = vpack.c.b16 %v685, %v681
      %v746 = vpack.c.b16 %v690, %v686
      %v747 = vpack.c.b16 %v691, %v687
      %v748 = vpack.c.b16 %v692, %v688
      %v749 = vpack.c.b16 %v693, %v689
      %v750 = vpack.c.b16 %v698, %v694
      %v751 = vpack.c.b16 %v699, %v695
      %v752 = vpack.c.b16 %v700, %v696
      %v753 = vpack.c.b16 %v701, %v697
      %v754 = vpack.c.b16 %v706, %v702
      %v755 = vpack.c.b16 %v707, %v703
      %v756 = vpack.c.b16 %v708, %v704
      %v757 = vpack.c.b16 %v709, %v705
      %v758 = vpack.c.b16 %v714, %v710
      %v759 = vpack.c.b16 %v715, %v711
      %v760 = vpack.c.b16 %v716, %v712
      %v761 = vpack.c.b16 %v717, %v713
      %v762 = vpack.c.b16 %v722, %v718
      %v763 = vpack.c.b16 %v723, %v719
      %v764 = vpack.c.b16 %v724, %v720
      %v765 = vpack.c.b16 %v725, %v721
      %v766 = vpack.c.b16 %v730, %v726
      %v767 = vpack.c.b16 %v731, %v727
      %v768 = vpack.c.b16 %v732, %v728
      %v769 = vpack.c.b16 %v733, %v729
      %v770 = vpack.c.b16 %v738, %v734
      %v771 = vpack.c.b16 %v739, %v735
      %v772 = vpack.c.b16 %v740, %v736
      %v773 = vpack.c.b16 %v741, %v737
      %806 = vmatpush.bf16.msra.mxu0 %v770
      %807 = vmatpush.bf16.msra.mxu0 %v766
      %808 = vmatpush.bf16.msra.mxu0 %v762
      %809 = vmatpush.bf16.msra.mxu0 %v758
      %810 = vmatpush.bf16.msra.mxu0 %v754
      %811 = vmatpush.bf16.msra.mxu0 %v750
      %812 = vmatpush.bf16.msra.mxu0 %v746
      %813 = vmatpush.bf16.msra.mxu0 %v742
      %814 = vmatmul.bf16.gmra.mxu0 %v613
      %v815 = vpop.f32.mrf.mxu0
      %v816 = vadd.f32 0.0, %v815
      %v817 = vpop.f32.mrf.mxu0
      %818 = vdwg.mxu0
      %819 = vmatpush.bf16.msra.mxu0 %v771
      %820 = vmatpush.bf16.msra.mxu0 %v767
      %821 = vmatpush.bf16.msra.mxu0 %v763
      %822 = vmatpush.bf16.msra.mxu0 %v759
      %823 = vmatpush.bf16.msra.mxu0 %v755
      %824 = vmatpush.bf16.msra.mxu0 %v751
      %825 = vmatpush.bf16.msra.mxu0 %v747
      %826 = vmatpush.bf16.msra.mxu0 %v743
      %827 = vmatmul.bf16.gmra.mxu0 %v613
      %v828 = vpop.f32.mrf.mxu0
      %v829 = vadd.f32 0.0, %v828
      %v830 = vpop.f32.mrf.mxu0
      %831 = vdwg.mxu0
      %832 = vmatpush.bf16.msra.mxu0 %v772
      %833 = vmatpush.bf16.msra.mxu0 %v768
      %834 = vmatpush.bf16.msra.mxu0 %v764
      %835 = vmatpush.bf16.msra.mxu0 %v760
      %836 = vmatpush.bf16.msra.mxu0 %v756
      %837 = vmatpush.bf16.msra.mxu0 %v752
      %838 = vmatpush.bf16.msra.mxu0 %v748
      %839 = vmatpush.bf16.msra.mxu0 %v744
      %840 = vmatmul.bf16.gmra.mxu0 %v613
      %v841 = vpop.f32.mrf.mxu0
      %v842 = vadd.f32 0.0, %v841
      %v843 = vpop.f32.mrf.mxu0
      %844 = vdwg.mxu0
      %845 = vmatpush.bf16.msra.mxu0 %v773
      %846 = vmatpush.bf16.msra.mxu0 %v769
      %847 = vmatpush.bf16.msra.mxu0 %v765
      %848 = vmatpush.bf16.msra.mxu0 %v761
      %849 = vmatpush.bf16.msra.mxu0 %v757
      %850 = vmatpush.bf16.msra.mxu0 %v753
      %851 = vmatpush.bf16.msra.mxu0 %v749
      %852 = vmatpush.bf16.msra.mxu0 %v745
      %853 = vmatmul.bf16.gmra.mxu0 %v613
      %v854 = vpop.f32.mrf.mxu0
      %v855 = vadd.f32 0.0, %v854
      %v856 = vpop.f32.mrf.mxu0
      %857 = vdwg.mxu0
      %v858 = vadd.f32 %v608, %v816
      %v859 = vadd.f32 %v609, %v829
      %v860 = vadd.f32 %v610, %v842
      %v861 = vadd.f32 %v611, %v855
      %v862 = vpack.c.bf16 %v859, %v858
      %v863 = vpack.c.bf16 %v861, %v860
      %v864 = vxor.u32 %v862, 2147516416
      %v865 = vunpack.c.l.bf16 %v864
      %v866 = vmul.f32 %v865, 1.442695
      %v867 = vpow.pop %v866
      %v868 = vpack.c.bf16 %v867, %v867
      %v869 = vunpack.c.l.bf16 %v868
      %v870 = vadd.f32 %v869, 1.0
      %v871 = vpack.c.bf16 %v870, %v870
      %v872 = vunpack.c.h.bf16 %v871
      %v873 = vunpack.c.l.bf16 %v871
      %v874 = vrcp.pop %v872
      %v875 = vmul.f32 %v545, %v874
      %v876 = vrcp.pop %v873
      %v877 = vmul.f32 %v546, %v876
      %v878 = vpack.c.bf16 %v875, %v877
      %v879 = vunpack.c.l.bf16 %v878
      %v881 = vrot.slane %v862, 4
      %v883 = vxor.u32 %v881, 2147516416
      %v884 = vunpack.c.l.bf16 %v883
      %v885 = vmul.f32 %v884, 1.442695
      %v886 = vpow.pop %v885
      %v887 = vpack.c.bf16 %v886, %v886
      %v888 = vunpack.c.l.bf16 %v887
      %v889 = vadd.f32 %v888, 1.0
      %v890 = vpack.c.bf16 %v889, %v889
      %v891 = vunpack.c.h.bf16 %v890
      %v892 = vunpack.c.l.bf16 %v890
      %v893 = vrcp.pop %v891
      %v894 = vmul.f32 %v545, %v893
      %v895 = vrcp.pop %v892
      %v896 = vmul.f32 %v546, %v895
      %v897 = vpack.c.bf16 %v894, %v896
      %v898 = vunpack.c.l.bf16 %v897
      %v899 = vunpack.c.l.bf16 %v863
      %v900 = vtanh.pop %v899
      %v901 = vpack.c.bf16 %v900, %v900
      %v902 = vunpack.c.l.bf16 %v901
      %v904 = vrot.slane %v863, 4
      %v906 = vxor.u32 %v904, 2147516416
      %v907 = vunpack.c.l.bf16 %v906
      %v908 = vmul.f32 %v907, 1.442695
      %v909 = vpow.pop %v908
      %v910 = vpack.c.bf16 %v909, %v909
      %v911 = vunpack.c.l.bf16 %v910
      %v912 = vadd.f32 %v911, 1.0
      %v913 = vpack.c.bf16 %v912, %v912
      %v914 = vunpack.c.h.bf16 %v913
      %v915 = vunpack.c.l.bf16 %v913
      %v916 = vrcp.pop %v914
      %v917 = vmul.f32 %v545, %v916
      %v918 = vrcp.pop %v915
      %v919 = vmul.f32 %v546, %v918
      %v920 = vpack.c.bf16 %v917, %v919
      %v921 = vunpack.c.l.bf16 %v920
      %v922 = vld [vmem:[#allocation3] sm:$0xff]
      %v923 = vmul.f32 %v898, %v922
      %v924 = vmul.f32 %v879, %v902
      %v925 = vadd.f32 %v923, %v924
      %v926 = vtanh.pop %v925
      %v927 = vmul.f32 %v921, %v926
      %928 = vst [vmem:[#allocation3] sm:$0xff] %v925
      %929 = vst [vmem:[#allocation2] sm:$0xff] %v927
      %v930 = vpack.c.bf16 %v927, %v927
      %s931 = scalar_lea.vmem %s270, 4
      %932 = vst [vmem:[%s931] sm:$0xf] %v930
      %s933 = scalar_lea.vmem %s253, 64
      %v934 = vld [vmem:[%s933] sm:$0xff]
      %v935 = vld [vmem:[%s933 + $0x8] sm:$0xff]
      %v936 = vld [vmem:[%s933 + $0x10] sm:$0xff]
      %v937 = vld [vmem:[%s933 + $0x18] sm:$0xff]
      %v938 = vld [vmem:[#allocation2] sm:$0xff]
      %v939 = vpack.c.bf16 %v938, %v938
      %v940 = vld [vmem:[%s3] sm:$0xff]
      %v941 = vld [vmem:[%s3 + $0x8] sm:$0xff]
      %v942 = vld [vmem:[%s3 + $0x10] sm:$0xff]
      %v943 = vld [vmem:[%s3 + $0x18] sm:$0xff]
      %v944 = vld [vmem:[%s3 + $0x20] sm:$0xff]
      %v945 = vld [vmem:[%s3 + $0x28] sm:$0xff]
      %v946 = vld [vmem:[%s3 + $0x30] sm:$0xff]
      %v947 = vld [vmem:[%s3 + $0x38] sm:$0xff]
      %v948 = vld [vmem:[%s3 + $0x40] sm:$0xff]
      %v949 = vld [vmem:[%s3 + $0x48] sm:$0xff]
      %v950 = vld [vmem:[%s3 + $0x50] sm:$0xff]
      %v951 = vld [vmem:[%s3 + $0x58] sm:$0xff]
      %v952 = vld [vmem:[%s3 + $0x60] sm:$0xff]
      %v953 = vld [vmem:[%s3 + $0x68] sm:$0xff]
      %v954 = vld [vmem:[%s3 + $0x70] sm:$0xff]
      %v955 = vld [vmem:[%s3 + $0x78] sm:$0xff]
      %v956 = vld [vmem:[%s3 + $0x80] sm:$0xff]
      %v957 = vld [vmem:[%s3 + $0x88] sm:$0xff]
      %v958 = vld [vmem:[%s3 + $0x90] sm:$0xff]
      %v959 = vld [vmem:[%s3 + $0x98] sm:$0xff]
      %v960 = vld [vmem:[%s3 + $0xa0] sm:$0xff]
      %v961 = vld [vmem:[%s3 + $0xa8] sm:$0xff]
      %v962 = vld [vmem:[%s3 + $0xb0] sm:$0xff]
      %v963 = vld [vmem:[%s3 + $0xb8] sm:$0xff]
      %v964 = vld [vmem:[%s3 + $0xc0] sm:$0xff]
      %v965 = vld [vmem:[%s3 + $0xc8] sm:$0xff]
      %v966 = vld [vmem:[%s3 + $0xd0] sm:$0xff]
      %v967 = vld [vmem:[%s3 + $0xd8] sm:$0xff]
      %v968 = vld [vmem:[%s3 + $0xe0] sm:$0xff]
      %v969 = vld [vmem:[%s3 + $0xe8] sm:$0xff]
      %v970 = vld [vmem:[%s3 + $0xf0] sm:$0xff]
      %v971 = vld [vmem:[%s3 + $0xf8] sm:$0xff]
      %v1004 = vunpack.c.l.b16 %v940
      %v1005 = vunpack.c.h.b16 %v940
      %v1006 = vunpack.c.l.b16 %v941
      %v1007 = vunpack.c.h.b16 %v941
      %v1008 = vunpack.c.l.b16 %v942
      %v1009 = vunpack.c.h.b16 %v942
      %v1010 = vunpack.c.l.b16 %v943
      %v1011 = vunpack.c.h.b16 %v943
      %v1012 = vunpack.c.l.b16 %v944
      %v1013 = vunpack.c.h.b16 %v944
      %v1014 = vunpack.c.l.b16 %v945
      %v1015 = vunpack.c.h.b16 %v945
      %v1016 = vunpack.c.l.b16 %v946
      %v1017 = vunpack.c.h.b16 %v946
      %v1018 = vunpack.c.l.b16 %v947
      %v1019 = vunpack.c.h.b16 %v947
      %v1020 = vunpack.c.l.b16 %v948
      %v1021 = vunpack.c.h.b16 %v948
      %v1022 = vunpack.c.l.b16 %v949
      %v1023 = vunpack.c.h.b16 %v949
      %v1024 = vunpack.c.l.b16 %v950
      %v1025 = vunpack.c.h.b16 %v950
      %v1026 = vunpack.c.l.b16 %v951
      %v1027 = vunpack.c.h.b16 %v951
      %v1028 = vunpack.c.l.b16 %v952
      %v1029 = vunpack.c.h.b16 %v952
      %v1030 = vunpack.c.l.b16 %v953
      %v1031 = vunpack.c.h.b16 %v953
      %v1032 = vunpack.c.l.b16 %v954
      %v1033 = vunpack.c.h.b16 %v954
      %v1034 = vunpack.c.l.b16 %v955
      %v1035 = vunpack.c.h.b16 %v955
      %v1036 = vunpack.c.l.b16 %v956
      %v1037 = vunpack.c.h.b16 %v956
      %v1038 = vunpack.c.l.b16 %v957
      %v1039 = vunpack.c.h.b16 %v957
      %v1040 = vunpack.c.l.b16 %v958
      %v1041 = vunpack.c.h.b16 %v958
      %v1042 = vunpack.c.l.b16 %v959
      %v1043 = vunpack.c.h.b16 %v959
      %v1044 = vunpack.c.l.b16 %v960
      %v1045 = vunpack.c.h.b16 %v960
      %v1046 = vunpack.c.l.b16 %v961
      %v1047 = vunpack.c.h.b16 %v961
      %v1048 = vunpack.c.l.b16 %v962
      %v1049 = vunpack.c.h.b16 %v962
      %v1050 = vunpack.c.l.b16 %v963
      %v1051 = vunpack.c.h.b16 %v963
      %v1052 = vunpack.c.l.b16 %v964
      %v1053 = vunpack.c.h.b16 %v964
      %v1054 = vunpack.c.l.b16 %v965
      %v1055 = vunpack.c.h.b16 %v965
      %v1056 = vunpack.c.l.b16 %v966
      %v1057 = vunpack.c.h.b16 %v966
      %v1058 = vunpack.c.l.b16 %v967
      %v1059 = vunpack.c.h.b16 %v967
      %v1060 = vunpack.c.l.b16 %v968
      %v1061 = vunpack.c.h.b16 %v968
      %v1062 = vunpack.c.l.b16 %v969
      %v1063 = vunpack.c.h.b16 %v969
      %v1064 = vunpack.c.l.b16 %v970
      %v1065 = vunpack.c.h.b16 %v970
      %v1066 = vunpack.c.l.b16 %v971
      %v1067 = vunpack.c.h.b16 %v971
      %v1068 = vpack.c.b16 %v1008, %v1004
      %v1069 = vpack.c.b16 %v1009, %v1005
      %v1070 = vpack.c.b16 %v1010, %v1006
      %v1071 = vpack.c.b16 %v1011, %v1007
      %v1072 = vpack.c.b16 %v1016, %v1012
      %v1073 = vpack.c.b16 %v1017, %v1013
      %v1074 = vpack.c.b16 %v1018, %v1014
      %v1075 = vpack.c.b16 %v1019, %v1015
      %v1076 = vpack.c.b16 %v1024, %v1020
      %v1077 = vpack.c.b16 %v1025, %v1021
      %v1078 = vpack.c.b16 %v1026, %v1022
      %v1079 = vpack.c.b16 %v1027, %v1023
      %v1080 = vpack.c.b16 %v1032, %v1028
      %v1081 = vpack.c.b16 %v1033, %v1029
      %v1082 = vpack.c.b16 %v1034, %v1030
      %v1083 = vpack.c.b16 %v1035, %v1031
      %v1084 = vpack.c.b16 %v1040, %v1036
      %v1085 = vpack.c.b16 %v1041, %v1037
      %v1086 = vpack.c.b16 %v1042, %v1038
      %v1087 = vpack.c.b16 %v1043, %v1039
      %v1088 = vpack.c.b16 %v1048, %v1044
      %v1089 = vpack.c.b16 %v1049, %v1045
      %v1090 = vpack.c.b16 %v1050, %v1046
      %v1091 = vpack.c.b16 %v1051, %v1047
      %v1092 = vpack.c.b16 %v1056, %v1052
      %v1093 = vpack.c.b16 %v1057, %v1053
      %v1094 = vpack.c.b16 %v1058, %v1054
      %v1095 = vpack.c.b16 %v1059, %v1055
      %v1096 = vpack.c.b16 %v1064, %v1060
      %v1097 = vpack.c.b16 %v1065, %v1061
      %v1098 = vpack.c.b16 %v1066, %v1062
      %v1099 = vpack.c.b16 %v1067, %v1063
      %1132 = vmatpush.bf16.msra.mxu0 %v1096
      %1133 = vmatpush.bf16.msra.mxu0 %v1092
      %1134 = vmatpush.bf16.msra.mxu0 %v1088
      %1135 = vmatpush.bf16.msra.mxu0 %v1084
      %1136 = vmatpush.bf16.msra.mxu0 %v1080
      %1137 = vmatpush.bf16.msra.mxu0 %v1076
      %1138 = vmatpush.bf16.msra.mxu0 %v1072
      %1139 = vmatpush.bf16.msra.mxu0 %v1068
      %1140 = vmatmul.bf16.gmra.mxu0 %v939
      %v1141 = vpop.f32.mrf.mxu0
      %v1142 = vadd.f32 0.0, %v1141
      %v1143 = vpop.f32.mrf.mxu0
      %1144 = vdwg.mxu0
      %1145 = vmatpush.bf16.msra.mxu0 %v1097
      %1146 = vmatpush.bf16.msra.mxu0 %v1093
      %1147 = vmatpush.bf16.msra.mxu0 %v1089
      %1148 = vmatpush.bf16.msra.mxu0 %v1085
      %1149 = vmatpush.bf16.msra.mxu0 %v1081
      %1150 = vmatpush.bf16.msra.mxu0 %v1077
      %1151 = vmatpush.bf16.msra.mxu0 %v1073
      %1152 = vmatpush.bf16.msra.mxu0 %v1069
      %1153 = vmatmul.bf16.gmra.mxu0 %v939
      %v1154 = vpop.f32.mrf.mxu0
      %v1155 = vadd.f32 0.0, %v1154
      %v1156 = vpop.f32.mrf.mxu0
      %1157 = vdwg.mxu0
      %1158 = vmatpush.bf16.msra.mxu0 %v1098
      %1159 = vmatpush.bf16.msra.mxu0 %v1094
      %1160 = vmatpush.bf16.msra.mxu0 %v1090
      %1161 = vmatpush.bf16.msra.mxu0 %v1086
      %1162 = vmatpush.bf16.msra.mxu0 %v1082
      %1163 = vmatpush.bf16.msra.mxu0 %v1078
      %1164 = vmatpush.bf16.msra.mxu0 %v1074
      %1165 = vmatpush.bf16.msra.mxu0 %v1070
      %1166 = vmatmul.bf16.gmra.mxu0 %v939
      %v1167 = vpop.f32.mrf.mxu0
      %v1168 = vadd.f32 0.0, %v1167
      %v1169 = vpop.f32.mrf.mxu0
      %1170 = vdwg.mxu0
      %1171 = vmatpush.bf16.msra.mxu0 %v1099
      %1172 = vmatpush.bf16.msra.mxu0 %v1095
      %1173 = vmatpush.bf16.msra.mxu0 %v1091
      %1174 = vmatpush.bf16.msra.mxu0 %v1087
      %1175 = vmatpush.bf16.msra.mxu0 %v1083
      %1176 = vmatpush.bf16.msra.mxu0 %v1079
      %1177 = vmatpush.bf16.msra.mxu0 %v1075
      %1178 = vmatpush.bf16.msra.mxu0 %v1071
      %1179 = vmatmul.bf16.gmra.mxu0 %v939
      %v1180 = vpop.f32.mrf.mxu0
      %v1181 = vadd.f32 0.0, %v1180
      %v1182 = vpop.f32.mrf.mxu0
      %1183 = vdwg.mxu0
      %v1184 = vadd.f32 %v934, %v1142
      %v1185 = vadd.f32 %v935, %v1155
      %v1186 = vadd.f32 %v936, %v1168
      %v1187 = vadd.f32 %v937, %v1181
      %v1188 = vpack.c.bf16 %v1185, %v1184
      %v1189 = vpack.c.bf16 %v1187, %v1186
      %v1190 = vxor.u32 %v1188, 2147516416
      %v1191 = vunpack.c.l.bf16 %v1190
      %v1192 = vmul.f32 %v1191, 1.442695
      %v1193 = vpow.pop %v1192
      %v1194 = vpack.c.bf16 %v1193, %v1193
      %v1195 = vunpack.c.l.bf16 %v1194
      %v1196 = vadd.f32 %v1195, 1.0
      %v1197 = vpack.c.bf16 %v1196, %v1196
      %v1198 = vunpack.c.h.bf16 %v1197
      %v1199 = vunpack.c.l.bf16 %v1197
      %v1200 = vrcp.pop %v1198
      %v1201 = vmul.f32 %v545, %v1200
      %v1202 = vrcp.pop %v1199
      %v1203 = vmul.f32 %v546, %v1202
      %v1204 = vpack.c.bf16 %v1201, %v1203
      %v1205 = vunpack.c.l.bf16 %v1204
      %v1207 = vrot.slane %v1188, 4
      %v1209 = vxor.u32 %v1207, 2147516416
      %v1210 = vunpack.c.l.bf16 %v1209
      %v1211 = vmul.f32 %v1210, 1.442695
      %v1212 = vpow.pop %v1211
      %v1213 = vpack.c.bf16 %v1212, %v1212
      %v1214 = vunpack.c.l.bf16 %v1213
      %v1215 = vadd.f32 %v1214, 1.0
      %v1216 = vpack.c.bf16 %v1215, %v1215
      %v1217 = vunpack.c.h.bf16 %v1216
      %v1218 = vunpack.c.l.bf16 %v1216
      %v1219 = vrcp.pop %v1217
      %v1220 = vmul.f32 %v545, %v1219
      %v1221 = vrcp.pop %v1218
      %v1222 = vmul.f32 %v546, %v1221
      %v1223 = vpack.c.bf16 %v1220, %v1222
      %v1224 = vunpack.c.l.bf16 %v1223
      %v1225 = vunpack.c.l.bf16 %v1189
      %v1226 = vtanh.pop %v1225
      %v1227 = vpack.c.bf16 %v1226, %v1226
      %v1228 = vunpack.c.l.bf16 %v1227
      %v1230 = vrot.slane %v1189, 4
      %v1232 = vxor.u32 %v1230, 2147516416
      %v1233 = vunpack.c.l.bf16 %v1232
      %v1234 = vmul.f32 %v1233, 1.442695
      %v1235 = vpow.pop %v1234
      %v1236 = vpack.c.bf16 %v1235, %v1235
      %v1237 = vunpack.c.l.bf16 %v1236
      %v1238 = vadd.f32 %v1237, 1.0
      %v1239 = vpack.c.bf16 %v1238, %v1238
      %v1240 = vunpack.c.h.bf16 %v1239
      %v1241 = vunpack.c.l.bf16 %v1239
      %v1242 = vrcp.pop %v1240
      %v1243 = vmul.f32 %v545, %v1242
      %v1244 = vrcp.pop %v1241
      %v1245 = vmul.f32 %v546, %v1244
      %v1246 = vpack.c.bf16 %v1243, %v1245
      %v1247 = vunpack.c.l.bf16 %v1246
      %v1248 = vld [vmem:[#allocation3] sm:$0xff]
      %v1249 = vmul.f32 %v1224, %v1248
      %v1250 = vmul.f32 %v1205, %v1228
      %v1251 = vadd.f32 %v1249, %v1250
      %v1252 = vtanh.pop %v1251
      %v1253 = vmul.f32 %v1247, %v1252
      %1254 = vst [vmem:[#allocation3] sm:$0xff] %v1251
      %1255 = vst [vmem:[#allocation2] sm:$0xff] %v1253
      %v1256 = vpack.c.bf16 %v1253, %v1253
      %s1257 = scalar_lea.vmem %s270, 8
      %1258 = vst [vmem:[%s1257] sm:$0xf] %v1256
      %s1259 = scalar_lea.vmem %s253, 96
      %v1260 = vld [vmem:[%s1259] sm:$0xff]
      %v1261 = vld [vmem:[%s1259 + $0x8] sm:$0xff]
      %v1262 = vld [vmem:[%s1259 + $0x10] sm:$0xff]
      %v1263 = vld [vmem:[%s1259 + $0x18] sm:$0xff]
      %v1264 = vld [vmem:[#allocation2] sm:$0xff]
      %v1265 = vpack.c.bf16 %v1264, %v1264
      %v1266 = vld [vmem:[%s3] sm:$0xff]
      %v1267 = vld [vmem:[%s3 + $0x8] sm:$0xff]
      %v1268 = vld [vmem:[%s3 + $0x10] sm:$0xff]
      %v1269 = vld [vmem:[%s3 + $0x18] sm:$0xff]
      %v1270 = vld [vmem:[%s3 + $0x20] sm:$0xff]
      %v1271 = vld [vmem:[%s3 + $0x28] sm:$0xff]
      %v1272 = vld [vmem:[%s3 + $0x30] sm:$0xff]
      %v1273 = vld [vmem:[%s3 + $0x38] sm:$0xff]
      %v1274 = vld [vmem:[%s3 + $0x40] sm:$0xff]
      %v1275 = vld [vmem:[%s3 + $0x48] sm:$0xff]
      %v1276 = vld [vmem:[%s3 + $0x50] sm:$0xff]
      %v1277 = vld [vmem:[%s3 + $0x58] sm:$0xff]
      %v1278 = vld [vmem:[%s3 + $0x60] sm:$0xff]
      %v1279 = vld [vmem:[%s3 + $0x68] sm:$0xff]
      %v1280 = vld [vmem:[%s3 + $0x70] sm:$0xff]
      %v1281 = vld [vmem:[%s3 + $0x78] sm:$0xff]
      %v1282 = vld [vmem:[%s3 + $0x80] sm:$0xff]
      %v1283 = vld [vmem:[%s3 + $0x88] sm:$0xff]
      %v1284 = vld [vmem:[%s3 + $0x90] sm:$0xff]
      %v1285 = vld [vmem:[%s3 + $0x98] sm:$0xff]
      %v1286 = vld [vmem:[%s3 + $0xa0] sm:$0xff]
      %v1287 = vld [vmem:[%s3 + $0xa8] sm:$0xff]
      %v1288 = vld [vmem:[%s3 + $0xb0] sm:$0xff]
      %v1289 = vld [vmem:[%s3 + $0xb8] sm:$0xff]
      %v1290 = vld [vmem:[%s3 + $0xc0] sm:$0xff]
      %v1291 = vld [vmem:[%s3 + $0xc8] sm:$0xff]
      %v1292 = vld [vmem:[%s3 + $0xd0] sm:$0xff]
      %v1293 = vld [vmem:[%s3 + $0xd8] sm:$0xff]
      %v1294 = vld [vmem:[%s3 + $0xe0] sm:$0xff]
      %v1295 = vld [vmem:[%s3 + $0xe8] sm:$0xff]
      %v1296 = vld [vmem:[%s3 + $0xf0] sm:$0xff]
      %v1297 = vld [vmem:[%s3 + $0xf8] sm:$0xff]
      %v1330 = vunpack.c.l.b16 %v1266
      %v1331 = vunpack.c.h.b16 %v1266
      %v1332 = vunpack.c.l.b16 %v1267
      %v1333 = vunpack.c.h.b16 %v1267
      %v1334 = vunpack.c.l.b16 %v1268
      %v1335 = vunpack.c.h.b16 %v1268
      %v1336 = vunpack.c.l.b16 %v1269
      %v1337 = vunpack.c.h.b16 %v1269
      %v1338 = vunpack.c.l.b16 %v1270
      %v1339 = vunpack.c.h.b16 %v1270
      %v1340 = vunpack.c.l.b16 %v1271
      %v1341 = vunpack.c.h.b16 %v1271
      %v1342 = vunpack.c.l.b16 %v1272
      %v1343 = vunpack.c.h.b16 %v1272
      %v1344 = vunpack.c.l.b16 %v1273
      %v1345 = vunpack.c.h.b16 %v1273
      %v1346 = vunpack.c.l.b16 %v1274
      %v1347 = vunpack.c.h.b16 %v1274
      %v1348 = vunpack.c.l.b16 %v1275
      %v1349 = vunpack.c.h.b16 %v1275
      %v1350 = vunpack.c.l.b16 %v1276
      %v1351 = vunpack.c.h.b16 %v1276
      %v1352 = vunpack.c.l.b16 %v1277
      %v1353 = vunpack.c.h.b16 %v1277
      %v1354 = vunpack.c.l.b16 %v1278
      %v1355 = vunpack.c.h.b16 %v1278
      %v1356 = vunpack.c.l.b16 %v1279
      %v1357 = vunpack.c.h.b16 %v1279
      %v1358 = vunpack.c.l.b16 %v1280
      %v1359 = vunpack.c.h.b16 %v1280
      %v1360 = vunpack.c.l.b16 %v1281
      %v1361 = vunpack.c.h.b16 %v1281
      %v1362 = vunpack.c.l.b16 %v1282
      %v1363 = vunpack.c.h.b16 %v1282
      %v1364 = vunpack.c.l.b16 %v1283
      %v1365 = vunpack.c.h.b16 %v1283
      %v1366 = vunpack.c.l.b16 %v1284
      %v1367 = vunpack.c.h.b16 %v1284
      %v1368 = vunpack.c.l.b16 %v1285
      %v1369 = vunpack.c.h.b16 %v1285
      %v1370 = vunpack.c.l.b16 %v1286
      %v1371 = vunpack.c.h.b16 %v1286
      %v1372 = vunpack.c.l.b16 %v1287
      %v1373 = vunpack.c.h.b16 %v1287
      %v1374 = vunpack.c.l.b16 %v1288
      %v1375 = vunpack.c.h.b16 %v1288
      %v1376 = vunpack.c.l.b16 %v1289
      %v1377 = vunpack.c.h.b16 %v1289
      %v1378 = vunpack.c.l.b16 %v1290
      %v1379 = vunpack.c.h.b16 %v1290
      %v1380 = vunpack.c.l.b16 %v1291
      %v1381 = vunpack.c.h.b16 %v1291
      %v1382 = vunpack.c.l.b16 %v1292
      %v1383 = vunpack.c.h.b16 %v1292
      %v1384 = vunpack.c.l.b16 %v1293
      %v1385 = vunpack.c.h.b16 %v1293
      %v1386 = vunpack.c.l.b16 %v1294
      %v1387 = vunpack.c.h.b16 %v1294
      %v1388 = vunpack.c.l.b16 %v1295
      %v1389 = vunpack.c.h.b16 %v1295
      %v1390 = vunpack.c.l.b16 %v1296
      %v1391 = vunpack.c.h.b16 %v1296
      %v1392 = vunpack.c.l.b16 %v1297
      %v1393 = vunpack.c.h.b16 %v1297
      %v1394 = vpack.c.b16 %v1334, %v1330
      %v1395 = vpack.c.b16 %v1335, %v1331
      %v1396 = vpack.c.b16 %v1336, %v1332
      %v1397 = vpack.c.b16 %v1337, %v1333
      %v1398 = vpack.c.b16 %v1342, %v1338
      %v1399 = vpack.c.b16 %v1343, %v1339
      %v1400 = vpack.c.b16 %v1344, %v1340
      %v1401 = vpack.c.b16 %v1345, %v1341
      %v1402 = vpack.c.b16 %v1350, %v1346
      %v1403 = vpack.c.b16 %v1351, %v1347
      %v1404 = vpack.c.b16 %v1352, %v1348
      %v1405 = vpack.c.b16 %v1353, %v1349
      %v1406 = vpack.c.b16 %v1358, %v1354
      %v1407 = vpack.c.b16 %v1359, %v1355
      %v1408 = vpack.c.b16 %v1360, %v1356
      %v1409 = vpack.c.b16 %v1361, %v1357
      %v1410 = vpack.c.b16 %v1366, %v1362
      %v1411 = vpack.c.b16 %v1367, %v1363
      %v1412 = vpack.c.b16 %v1368, %v1364
      %v1413 = vpack.c.b16 %v1369, %v1365
      %v1414 = vpack.c.b16 %v1374, %v1370
      %v1415 = vpack.c.b16 %v1375, %v1371
      %v1416 = vpack.c.b16 %v1376, %v1372
      %v1417 = vpack.c.b16 %v1377, %v1373
      %v1418 = vpack.c.b16 %v1382, %v1378
      %v1419 = vpack.c.b16 %v1383, %v1379
      %v1420 = vpack.c.b16 %v1384, %v1380
      %v1421 = vpack.c.b16 %v1385, %v1381
      %v1422 = vpack.c.b16 %v1390, %v1386
      %v1423 = vpack.c.b16 %v1391, %v1387
      %v1424 = vpack.c.b16 %v1392, %v1388
      %v1425 = vpack.c.b16 %v1393, %v1389
      %1458 = vmatpush.bf16.msra.mxu0 %v1422
      %1459 = vmatpush.bf16.msra.mxu0 %v1418
      %1460 = vmatpush.bf16.msra.mxu0 %v1414
      %1461 = vmatpush.bf16.msra.mxu0 %v1410
      %1462 = vmatpush.bf16.msra.mxu0 %v1406
      %1463 = vmatpush.bf16.msra.mxu0 %v1402
      %1464 = vmatpush.bf16.msra.mxu0 %v1398
      %1465 = vmatpush.bf16.msra.mxu0 %v1394
      %1466 = vmatmul.bf16.gmra.mxu0 %v1265
      %v1467 = vpop.f32.mrf.mxu0
      %v1468 = vadd.f32 0.0, %v1467
      %v1469 = vpop.f32.mrf.mxu0
      %1470 = vdwg.mxu0
      %1471 = vmatpush.bf16.msra.mxu0 %v1423
      %1472 = vmatpush.bf16.msra.mxu0 %v1419
      %1473 = vmatpush.bf16.msra.mxu0 %v1415
      %1474 = vmatpush.bf16.msra.mxu0 %v1411
      %1475 = vmatpush.bf16.msra.mxu0 %v1407
      %1476 = vmatpush.bf16.msra.mxu0 %v1403
      %1477 = vmatpush.bf16.msra.mxu0 %v1399
      %1478 = vmatpush.bf16.msra.mxu0 %v1395
      %1479 = vmatmul.bf16.gmra.mxu0 %v1265
      %v1480 = vpop.f32.mrf.mxu0
      %v1481 = vadd.f32 0.0, %v1480
      %v1482 = vpop.f32.mrf.mxu0
      %1483 = vdwg.mxu0
      %1484 = vmatpush.bf16.msra.mxu0 %v1424
      %1485 = vmatpush.bf16.msra.mxu0 %v1420
      %1486 = vmatpush.bf16.msra.mxu0 %v1416
      %1487 = vmatpush.bf16.msra.mxu0 %v1412
      %1488 = vmatpush.bf16.msra.mxu0 %v1408
      %1489 = vmatpush.bf16.msra.mxu0 %v1404
      %1490 = vmatpush.bf16.msra.mxu0 %v1400
      %1491 = vmatpush.bf16.msra.mxu0 %v1396
      %1492 = vmatmul.bf16.gmra.mxu0 %v1265
      %v1493 = vpop.f32.mrf.mxu0
      %v1494 = vadd.f32 0.0, %v1493
      %v1495 = vpop.f32.mrf.mxu0
      %1496 = vdwg.mxu0
      %1497 = vmatpush.bf16.msra.mxu0 %v1425
      %1498 = vmatpush.bf16.msra.mxu0 %v1421
      %1499 = vmatpush.bf16.msra.mxu0 %v1417
      %1500 = vmatpush.bf16.msra.mxu0 %v1413
      %1501 = vmatpush.bf16.msra.mxu0 %v1409
      %1502 = vmatpush.bf16.msra.mxu0 %v1405
      %1503 = vmatpush.bf16.msra.mxu0 %v1401
      %1504 = vmatpush.bf16.msra.mxu0 %v1397
      %1505 = vmatmul.bf16.gmra.mxu0 %v1265
      %v1506 = vpop.f32.mrf.mxu0
      %v1507 = vadd.f32 0.0, %v1506
      %v1508 = vpop.f32.mrf.mxu0
      %1509 = vdwg.mxu0
      %v1510 = vadd.f32 %v1260, %v1468
      %v1511 = vadd.f32 %v1261, %v1481
      %v1512 = vadd.f32 %v1262, %v1494
      %v1513 = vadd.f32 %v1263, %v1507
      %v1514 = vpack.c.bf16 %v1511, %v1510
      %v1515 = vpack.c.bf16 %v1513, %v1512
      %v1516 = vxor.u32 %v1514, 2147516416
      %v1517 = vunpack.c.l.bf16 %v1516
      %v1518 = vmul.f32 %v1517, 1.442695
      %v1519 = vpow.pop %v1518
      %v1520 = vpack.c.bf16 %v1519, %v1519
      %v1521 = vunpack.c.l.bf16 %v1520
      %v1522 = vadd.f32 %v1521, 1.0
      %v1523 = vpack.c.bf16 %v1522, %v1522
      %v1524 = vunpack.c.h.bf16 %v1523
      %v1525 = vunpack.c.l.bf16 %v1523
      %v1526 = vrcp.pop %v1524
      %v1527 = vmul.f32 %v545, %v1526
      %v1528 = vrcp.pop %v1525
      %v1529 = vmul.f32 %v546, %v1528
      %v1530 = vpack.c.bf16 %v1527, %v1529
      %v1531 = vunpack.c.l.bf16 %v1530
      %v1533 = vrot.slane %v1514, 4
      %v1535 = vxor.u32 %v1533, 2147516416
      %v1536 = vunpack.c.l.bf16 %v1535
      %v1537 = vmul.f32 %v1536, 1.442695
      %v1538 = vpow.pop %v1537
      %v1539 = vpack.c.bf16 %v1538, %v1538
      %v1540 = vunpack.c.l.bf16 %v1539
      %v1541 = vadd.f32 %v1540, 1.0
      %v1542 = vpack.c.bf16 %v1541, %v1541
      %v1543 = vunpack.c.h.bf16 %v1542
      %v1544 = vunpack.c.l.bf16 %v1542
      %v1545 = vrcp.pop %v1543
      %v1546 = vmul.f32 %v545, %v1545
      %v1547 = vrcp.pop %v1544
      %v1548 = vmul.f32 %v546, %v1547
      %v1549 = vpack.c.bf16 %v1546, %v1548
      %v1550 = vunpack.c.l.bf16 %v1549
      %v1551 = vunpack.c.l.bf16 %v1515
      %v1552 = vtanh.pop %v1551
      %v1553 = vpack.c.bf16 %v1552, %v1552
      %v1554 = vunpack.c.l.bf16 %v1553
      %v1556 = vrot.slane %v1515, 4
      %v1558 = vxor.u32 %v1556, 2147516416
      %v1559 = vunpack.c.l.bf16 %v1558
      %v1560 = vmul.f32 %v1559, 1.442695
      %v1561 = vpow.pop %v1560
      %v1562 = vpack.c.bf16 %v1561, %v1561
      %v1563 = vunpack.c.l.bf16 %v1562
      %v1564 = vadd.f32 %v1563, 1.0
      %v1565 = vpack.c.bf16 %v1564, %v1564
      %v1566 = vunpack.c.h.bf16 %v1565
      %v1567 = vunpack.c.l.bf16 %v1565
      %v1568 = vrcp.pop %v1566
      %v1569 = vmul.f32 %v545, %v1568
      %v1570 = vrcp.pop %v1567
      %v1571 = vmul.f32 %v546, %v1570
      %v1572 = vpack.c.bf16 %v1569, %v1571
      %v1573 = vunpack.c.l.bf16 %v1572
      %v1574 = vld [vmem:[#allocation3] sm:$0xff]
      %v1575 = vmul.f32 %v1550, %v1574
      %v1576 = vmul.f32 %v1531, %v1554
      %v1577 = vadd.f32 %v1575, %v1576
      %v1578 = vtanh.pop %v1577
      %v1579 = vmul.f32 %v1573, %v1578
      %1580 = vst [vmem:[#allocation3] sm:$0xff] %v1577
      %1581 = vst [vmem:[#allocation2] sm:$0xff] %v1579
      %v1582 = vpack.c.bf16 %v1579, %v1579
      %s1583 = scalar_lea.vmem %s270, 12
      %1584 = vst [vmem:[%s1583] sm:$0xf] %v1582
      %s1585 = scalar_lea.vmem %s253, 128
      %v1586 = vld [vmem:[%s1585] sm:$0xff]
      %v1587 = vld [vmem:[%s1585 + $0x8] sm:$0xff]
      %v1588 = vld [vmem:[%s1585 + $0x10] sm:$0xff]
      %v1589 = vld [vmem:[%s1585 + $0x18] sm:$0xff]
      %v1590 = vld [vmem:[#allocation2] sm:$0xff]
      %v1591 = vpack.c.bf16 %v1590, %v1590
      %v1592 = vld [vmem:[%s3] sm:$0xff]
      %v1593 = vld [vmem:[%s3 + $0x8] sm:$0xff]
      %v1594 = vld [vmem:[%s3 + $0x10] sm:$0xff]
      %v1595 = vld [vmem:[%s3 + $0x18] sm:$0xff]
      %v1596 = vld [vmem:[%s3 + $0x20] sm:$0xff]
      %v1597 = vld [vmem:[%s3 + $0x28] sm:$0xff]
      %v1598 = vld [vmem:[%s3 + $0x30] sm:$0xff]
      %v1599 = vld [vmem:[%s3 + $0x38] sm:$0xff]
      %v1600 = vld [vmem:[%s3 + $0x40] sm:$0xff]
      %v1601 = vld [vmem:[%s3 + $0x48] sm:$0xff]
      %v1602 = vld [vmem:[%s3 + $0x50] sm:$0xff]
      %v1603 = vld [vmem:[%s3 + $0x58] sm:$0xff]
      %v1604 = vld [vmem:[%s3 + $0x60] sm:$0xff]
      %v1605 = vld [vmem:[%s3 + $0x68] sm:$0xff]
      %v1606 = vld [vmem:[%s3 + $0x70] sm:$0xff]
      %v1607 = vld [vmem:[%s3 + $0x78] sm:$0xff]
      %v1608 = vld [vmem:[%s3 + $0x80] sm:$0xff]
      %v1609 = vld [vmem:[%s3 + $0x88] sm:$0xff]
      %v1610 = vld [vmem:[%s3 + $0x90] sm:$0xff]
      %v1611 = vld [vmem:[%s3 + $0x98] sm:$0xff]
      %v1612 = vld [vmem:[%s3 + $0xa0] sm:$0xff]
      %v1613 = vld [vmem:[%s3 + $0xa8] sm:$0xff]
      %v1614 = vld [vmem:[%s3 + $0xb0] sm:$0xff]
      %v1615 = vld [vmem:[%s3 + $0xb8] sm:$0xff]
      %v1616 = vld [vmem:[%s3 + $0xc0] sm:$0xff]
      %v1617 = vld [vmem:[%s3 + $0xc8] sm:$0xff]
      %v1618 = vld [vmem:[%s3 + $0xd0] sm:$0xff]
      %v1619 = vld [vmem:[%s3 + $0xd8] sm:$0xff]
      %v1620 = vld [vmem:[%s3 + $0xe0] sm:$0xff]
      %v1621 = vld [vmem:[%s3 + $0xe8] sm:$0xff]
      %v1622 = vld [vmem:[%s3 + $0xf0] sm:$0xff]
      %v1623 = vld [vmem:[%s3 + $0xf8] sm:$0xff]
      %v1656 = vunpack.c.l.b16 %v1592
      %v1657 = vunpack.c.h.b16 %v1592
      %v1658 = vunpack.c.l.b16 %v1593
      %v1659 = vunpack.c.h.b16 %v1593
      %v1660 = vunpack.c.l.b16 %v1594
      %v1661 = vunpack.c.h.b16 %v1594
      %v1662 = vunpack.c.l.b16 %v1595
      %v1663 = vunpack.c.h.b16 %v1595
      %v1664 = vunpack.c.l.b16 %v1596
      %v1665 = vunpack.c.h.b16 %v1596
      %v1666 = vunpack.c.l.b16 %v1597
      %v1667 = vunpack.c.h.b16 %v1597
      %v1668 = vunpack.c.l.b16 %v1598
      %v1669 = vunpack.c.h.b16 %v1598
      %v1670 = vunpack.c.l.b16 %v1599
      %v1671 = vunpack.c.h.b16 %v1599
      %v1672 = vunpack.c.l.b16 %v1600
      %v1673 = vunpack.c.h.b16 %v1600
      %v1674 = vunpack.c.l.b16 %v1601
      %v1675 = vunpack.c.h.b16 %v1601
      %v1676 = vunpack.c.l.b16 %v1602
      %v1677 = vunpack.c.h.b16 %v1602
      %v1678 = vunpack.c.l.b16 %v1603
      %v1679 = vunpack.c.h.b16 %v1603
      %v1680 = vunpack.c.l.b16 %v1604
      %v1681 = vunpack.c.h.b16 %v1604
      %v1682 = vunpack.c.l.b16 %v1605
      %v1683 = vunpack.c.h.b16 %v1605
      %v1684 = vunpack.c.l.b16 %v1606
      %v1685 = vunpack.c.h.b16 %v1606
      %v1686 = vunpack.c.l.b16 %v1607
      %v1687 = vunpack.c.h.b16 %v1607
      %v1688 = vunpack.c.l.b16 %v1608
      %v1689 = vunpack.c.h.b16 %v1608
      %v1690 = vunpack.c.l.b16 %v1609
      %v1691 = vunpack.c.h.b16 %v1609
      %v1692 = vunpack.c.l.b16 %v1610
      %v1693 = vunpack.c.h.b16 %v1610
      %v1694 = vunpack.c.l.b16 %v1611
      %v1695 = vunpack.c.h.b16 %v1611
      %v1696 = vunpack.c.l.b16 %v1612
      %v1697 = vunpack.c.h.b16 %v1612
      %v1698 = vunpack.c.l.b16 %v1613
      %v1699 = vunpack.c.h.b16 %v1613
      %v1700 = vunpack.c.l.b16 %v1614
      %v1701 = vunpack.c.h.b16 %v1614
      %v1702 = vunpack.c.l.b16 %v1615
      %v1703 = vunpack.c.h.b16 %v1615
      %v1704 = vunpack.c.l.b16 %v1616
      %v1705 = vunpack.c.h.b16 %v1616
      %v1706 = vunpack.c.l.b16 %v1617
      %v1707 = vunpack.c.h.b16 %v1617
      %v1708 = vunpack.c.l.b16 %v1618
      %v1709 = vunpack.c.h.b16 %v1618
      %v1710 = vunpack.c.l.b16 %v1619
      %v1711 = vunpack.c.h.b16 %v1619
      %v1712 = vunpack.c.l.b16 %v1620
      %v1713 = vunpack.c.h.b16 %v1620
      %v1714 = vunpack.c.l.b16 %v1621
      %v1715 = vunpack.c.h.b16 %v1621
      %v1716 = vunpack.c.l.b16 %v1622
      %v1717 = vunpack.c.h.b16 %v1622
      %v1718 = vunpack.c.l.b16 %v1623
      %v1719 = vunpack.c.h.b16 %v1623
      %v1720 = vpack.c.b16 %v1660, %v1656
      %v1721 = vpack.c.b16 %v1661, %v1657
      %v1722 = vpack.c.b16 %v1662, %v1658
      %v1723 = vpack.c.b16 %v1663, %v1659
      %v1724 = vpack.c.b16 %v1668, %v1664
      %v1725 = vpack.c.b16 %v1669, %v1665
      %v1726 = vpack.c.b16 %v1670, %v1666
      %v1727 = vpack.c.b16 %v1671, %v1667
      %v1728 = vpack.c.b16 %v1676, %v1672
      %v1729 = vpack.c.b16 %v1677, %v1673
      %v1730 = vpack.c.b16 %v1678, %v1674
      %v1731 = vpack.c.b16 %v1679, %v1675
      %v1732 = vpack.c.b16 %v1684, %v1680
      %v1733 = vpack.c.b16 %v1685, %v1681
      %v1734 = vpack.c.b16 %v1686, %v1682
      %v1735 = vpack.c.b16 %v1687, %v1683
      %v1736 = vpack.c.b16 %v1692, %v1688
      %v1737 = vpack.c.b16 %v1693, %v1689
      %v1738 = vpack.c.b16 %v1694, %v1690
      %v1739 = vpack.c.b16 %v1695, %v1691
      %v1740 = vpack.c.b16 %v1700, %v1696
      %v1741 = vpack.c.b16 %v1701, %v1697
      %v1742 = vpack.c.b16 %v1702, %v1698
      %v1743 = vpack.c.b16 %v1703, %v1699
      %v1744 = vpack.c.b16 %v1708, %v1704
      %v1745 = vpack.c.b16 %v1709, %v1705
      %v1746 = vpack.c.b16 %v1710, %v1706
      %v1747 = vpack.c.b16 %v1711, %v1707
      %v1748 = vpack.c.b16 %v1716, %v1712
      %v1749 = vpack.c.b16 %v1717, %v1713
      %v1750 = vpack.c.b16 %v1718, %v1714
      %v1751 = vpack.c.b16 %v1719, %v1715
      %1784 = vmatpush.bf16.msra.mxu0 %v1748
      %1785 = vmatpush.bf16.msra.mxu0 %v1744
      %1786 = vmatpush.bf16.msra.mxu0 %v1740
      %1787 = vmatpush.bf16.msra.mxu0 %v1736
      %1788 = vmatpush.bf16.msra.mxu0 %v1732
      %1789 = vmatpush.bf16.msra.mxu0 %v1728
      %1790 = vmatpush.bf16.msra.mxu0 %v1724
      %1791 = vmatpush.bf16.msra.mxu0 %v1720
      %1792 = vmatmul.bf16.gmra.mxu0 %v1591
      %v1793 = vpop.f32.mrf.mxu0
      %v1794 = vadd.f32 0.0, %v1793
      %v1795 = vpop.f32.mrf.mxu0
      %1796 = vdwg.mxu0
      %1797 = vmatpush.bf16.msra.mxu0 %v1749
      %1798 = vmatpush.bf16.msra.mxu0 %v1745
      %1799 = vmatpush.bf16.msra.mxu0 %v1741
      %1800 = vmatpush.bf16.msra.mxu0 %v1737
      %1801 = vmatpush.bf16.msra.mxu0 %v1733
      %1802 = vmatpush.bf16.msra.mxu0 %v1729
      %1803 = vmatpush.bf16.msra.mxu0 %v1725
      %1804 = vmatpush.bf16.msra.mxu0 %v1721
      %1805 = vmatmul.bf16.gmra.mxu0 %v1591
      %v1806 = vpop.f32.mrf.mxu0
      %v1807 = vadd.f32 0.0, %v1806
      %v1808 = vpop.f32.mrf.mxu0
      %1809 = vdwg.mxu0
      %1810 = vmatpush.bf16.msra.mxu0 %v1750
      %1811 = vmatpush.bf16.msra.mxu0 %v1746
      %1812 = vmatpush.bf16.msra.mxu0 %v1742
      %1813 = vmatpush.bf16.msra.mxu0 %v1738
      %1814 = vmatpush.bf16.msra.mxu0 %v1734
      %1815 = vmatpush.bf16.msra.mxu0 %v1730
      %1816 = vmatpush.bf16.msra.mxu0 %v1726
      %1817 = vmatpush.bf16.msra.mxu0 %v1722
      %1818 = vmatmul.bf16.gmra.mxu0 %v1591
      %v1819 = vpop.f32.mrf.mxu0
      %v1820 = vadd.f32 0.0, %v1819
      %v1821 = vpop.f32.mrf.mxu0
      %1822 = vdwg.mxu0
      %1823 = vmatpush.bf16.msra.mxu0 %v1751
      %1824 = vmatpush.bf16.msra.mxu0 %v1747
      %1825 = vmatpush.bf16.msra.mxu0 %v1743
      %1826 = vmatpush.bf16.msra.mxu0 %v1739
      %1827 = vmatpush.bf16.msra.mxu0 %v1735
      %1828 = vmatpush.bf16.msra.mxu0 %v1731
      %1829 = vmatpush.bf16.msra.mxu0 %v1727
      %1830 = vmatpush.bf16.msra.mxu0 %v1723
      %1831 = vmatmul.bf16.gmra.mxu0 %v1591
      %v1832 = vpop.f32.mrf.mxu0
      %v1833 = vadd.f32 0.0, %v1832
      %v1834 = vpop.f32.mrf.mxu0
      %1835 = vdwg.mxu0
      %v1836 = vadd.f32 %v1586, %v1794
      %v1837 = vadd.f32 %v1587, %v1807
      %v1838 = vadd.f32 %v1588, %v1820
      %v1839 = vadd.f32 %v1589, %v1833
      %v1840 = vpack.c.bf16 %v1837, %v1836
      %v1841 = vpack.c.bf16 %v1839, %v1838
      %v1842 = vxor.u32 %v1840, 2147516416
      %v1843 = vunpack.c.l.bf16 %v1842
      %v1844 = vmul.f32 %v1843, 1.442695
      %v1845 = vpow.pop %v1844
      %v1846 = vpack.c.bf16 %v1845, %v1845
      %v1847 = vunpack.c.l.bf16 %v1846
      %v1848 = vadd.f32 %v1847, 1.0
      %v1849 = vpack.c.bf16 %v1848, %v1848
      %v1850 = vunpack.c.h.bf16 %v1849
      %v1851 = vunpack.c.l.bf16 %v1849
      %v1852 = vrcp.pop %v1850
      %v1853 = vmul.f32 %v545, %v1852
      %v1854 = vrcp.pop %v1851
      %v1855 = vmul.f32 %v546, %v1854
      %v1856 = vpack.c.bf16 %v1853, %v1855
      %v1857 = vunpack.c.l.bf16 %v1856
      %v1859 = vrot.slane %v1840, 4
      %v1861 = vxor.u32 %v1859, 2147516416
      %v1862 = vunpack.c.l.bf16 %v1861
      %v1863 = vmul.f32 %v1862, 1.442695
      %v1864 = vpow.pop %v1863
      %v1865 = vpack.c.bf16 %v1864, %v1864
      %v1866 = vunpack.c.l.bf16 %v1865
      %v1867 = vadd.f32 %v1866, 1.0
      %v1868 = vpack.c.bf16 %v1867, %v1867
      %v1869 = vunpack.c.h.bf16 %v1868
      %v1870 = vunpack.c.l.bf16 %v1868
      %v1871 = vrcp.pop %v1869
      %v1872 = vmul.f32 %v545, %v1871
      %v1873 = vrcp.pop %v1870
      %v1874 = vmul.f32 %v546, %v1873
      %v1875 = vpack.c.bf16 %v1872, %v1874
      %v1876 = vunpack.c.l.bf16 %v1875
      %v1877 = vunpack.c.l.bf16 %v1841
      %v1878 = vtanh.pop %v1877
      %v1879 = vpack.c.bf16 %v1878, %v1878
      %v1880 = vunpack.c.l.bf16 %v1879
      %v1882 = vrot.slane %v1841, 4
      %v1884 = vxor.u32 %v1882, 2147516416
      %v1885 = vunpack.c.l.bf16 %v1884
      %v1886 = vmul.f32 %v1885, 1.442695
      %v1887 = vpow.pop %v1886
      %v1888 = vpack.c.bf16 %v1887, %v1887
      %v1889 = vunpack.c.l.bf16 %v1888
      %v1890 = vadd.f32 %v1889, 1.0
      %v1891 = vpack.c.bf16 %v1890, %v1890
      %v1892 = vunpack.c.h.bf16 %v1891
      %v1893 = vunpack.c.l.bf16 %v1891
      %v1894 = vrcp.pop %v1892
      %v1895 = vmul.f32 %v545, %v1894
      %v1896 = vrcp.pop %v1893
      %v1897 = vmul.f32 %v546, %v1896
      %v1898 = vpack.c.bf16 %v1895, %v1897
      %v1899 = vunpack.c.l.bf16 %v1898
      %v1900 = vld [vmem:[#allocation3] sm:$0xff]
      %v1901 = vmul.f32 %v1876, %v1900
      %v1902 = vmul.f32 %v1857, %v1880
      %v1903 = vadd.f32 %v1901, %v1902
      %v1904 = vtanh.pop %v1903
      %v1905 = vmul.f32 %v1899, %v1904
      %1906 = vst [vmem:[#allocation3] sm:$0xff] %v1903
      %1907 = vst [vmem:[#allocation2] sm:$0xff] %v1905
      %v1908 = vpack.c.bf16 %v1905, %v1905
      %s1909 = scalar_lea.vmem %s270, 16
      %1910 = vst [vmem:[%s1909] sm:$0xf] %v1908
      %s1911 = scalar_lea.vmem %s253, 160
      %v1912 = vld [vmem:[%s1911] sm:$0xff]
      %v1913 = vld [vmem:[%s1911 + $0x8] sm:$0xff]
      %v1914 = vld [vmem:[%s1911 + $0x10] sm:$0xff]
      %v1915 = vld [vmem:[%s1911 + $0x18] sm:$0xff]
      %v1916 = vld [vmem:[#allocation2] sm:$0xff]
      %v1917 = vpack.c.bf16 %v1916, %v1916
      %v1918 = vld [vmem:[%s3] sm:$0xff]
      %v1919 = vld [vmem:[%s3 + $0x8] sm:$0xff]
      %v1920 = vld [vmem:[%s3 + $0x10] sm:$0xff]
      %v1921 = vld [vmem:[%s3 + $0x18] sm:$0xff]
      %v1922 = vld [vmem:[%s3 + $0x20] sm:$0xff]
      %v1923 = vld [vmem:[%s3 + $0x28] sm:$0xff]
      %v1924 = vld [vmem:[%s3 + $0x30] sm:$0xff]
      %v1925 = vld [vmem:[%s3 + $0x38] sm:$0xff]
      %v1926 = vld [vmem:[%s3 + $0x40] sm:$0xff]
      %v1927 = vld [vmem:[%s3 + $0x48] sm:$0xff]
      %v1928 = vld [vmem:[%s3 + $0x50] sm:$0xff]
      %v1929 = vld [vmem:[%s3 + $0x58] sm:$0xff]
      %v1930 = vld [vmem:[%s3 + $0x60] sm:$0xff]
      %v1931 = vld [vmem:[%s3 + $0x68] sm:$0xff]
      %v1932 = vld [vmem:[%s3 + $0x70] sm:$0xff]
      %v1933 = vld [vmem:[%s3 + $0x78] sm:$0xff]
      %v1934 = vld [vmem:[%s3 + $0x80] sm:$0xff]
      %v1935 = vld [vmem:[%s3 + $0x88] sm:$0xff]
      %v1936 = vld [vmem:[%s3 + $0x90] sm:$0xff]
      %v1937 = vld [vmem:[%s3 + $0x98] sm:$0xff]
      %v1938 = vld [vmem:[%s3 + $0xa0] sm:$0xff]
      %v1939 = vld [vmem:[%s3 + $0xa8] sm:$0xff]
      %v1940 = vld [vmem:[%s3 + $0xb0] sm:$0xff]
      %v1941 = vld [vmem:[%s3 + $0xb8] sm:$0xff]
      %v1942 = vld [vmem:[%s3 + $0xc0] sm:$0xff]
      %v1943 = vld [vmem:[%s3 + $0xc8] sm:$0xff]
      %v1944 = vld [vmem:[%s3 + $0xd0] sm:$0xff]
      %v1945 = vld [vmem:[%s3 + $0xd8] sm:$0xff]
      %v1946 = vld [vmem:[%s3 + $0xe0] sm:$0xff]
      %v1947 = vld [vmem:[%s3 + $0xe8] sm:$0xff]
      %v1948 = vld [vmem:[%s3 + $0xf0] sm:$0xff]
      %v1949 = vld [vmem:[%s3 + $0xf8] sm:$0xff]
      %v1982 = vunpack.c.l.b16 %v1918
      %v1983 = vunpack.c.h.b16 %v1918
      %v1984 = vunpack.c.l.b16 %v1919
      %v1985 = vunpack.c.h.b16 %v1919
      %v1986 = vunpack.c.l.b16 %v1920
      %v1987 = vunpack.c.h.b16 %v1920
      %v1988 = vunpack.c.l.b16 %v1921
      %v1989 = vunpack.c.h.b16 %v1921
      %v1990 = vunpack.c.l.b16 %v1922
      %v1991 = vunpack.c.h.b16 %v1922
      %v1992 = vunpack.c.l.b16 %v1923
      %v1993 = vunpack.c.h.b16 %v1923
      %v1994 = vunpack.c.l.b16 %v1924
      %v1995 = vunpack.c.h.b16 %v1924
      %v1996 = vunpack.c.l.b16 %v1925
      %v1997 = vunpack.c.h.b16 %v1925
      %v1998 = vunpack.c.l.b16 %v1926
      %v1999 = vunpack.c.h.b16 %v1926
      %v2000 = vunpack.c.l.b16 %v1927
      %v2001 = vunpack.c.h.b16 %v1927
      %v2002 = vunpack.c.l.b16 %v1928
      %v2003 = vunpack.c.h.b16 %v1928
      %v2004 = vunpack.c.l.b16 %v1929
      %v2005 = vunpack.c.h.b16 %v1929
      %v2006 = vunpack.c.l.b16 %v1930
      %v2007 = vunpack.c.h.b16 %v1930
      %v2008 = vunpack.c.l.b16 %v1931
      %v2009 = vunpack.c.h.b16 %v1931
      %v2010 = vunpack.c.l.b16 %v1932
      %v2011 = vunpack.c.h.b16 %v1932
      %v2012 = vunpack.c.l.b16 %v1933
      %v2013 = vunpack.c.h.b16 %v1933
      %v2014 = vunpack.c.l.b16 %v1934
      %v2015 = vunpack.c.h.b16 %v1934
      %v2016 = vunpack.c.l.b16 %v1935
      %v2017 = vunpack.c.h.b16 %v1935
      %v2018 = vunpack.c.l.b16 %v1936
      %v2019 = vunpack.c.h.b16 %v1936
      %v2020 = vunpack.c.l.b16 %v1937
      %v2021 = vunpack.c.h.b16 %v1937
      %v2022 = vunpack.c.l.b16 %v1938
      %v2023 = vunpack.c.h.b16 %v1938
      %v2024 = vunpack.c.l.b16 %v1939
      %v2025 = vunpack.c.h.b16 %v1939
      %v2026 = vunpack.c.l.b16 %v1940
      %v2027 = vunpack.c.h.b16 %v1940
      %v2028 = vunpack.c.l.b16 %v1941
      %v2029 = vunpack.c.h.b16 %v1941
      %v2030 = vunpack.c.l.b16 %v1942
      %v2031 = vunpack.c.h.b16 %v1942
      %v2032 = vunpack.c.l.b16 %v1943
      %v2033 = vunpack.c.h.b16 %v1943
      %v2034 = vunpack.c.l.b16 %v1944
      %v2035 = vunpack.c.h.b16 %v1944
      %v2036 = vunpack.c.l.b16 %v1945
      %v2037 = vunpack.c.h.b16 %v1945
      %v2038 = vunpack.c.l.b16 %v1946
      %v2039 = vunpack.c.h.b16 %v1946
      %v2040 = vunpack.c.l.b16 %v1947
      %v2041 = vunpack.c.h.b16 %v1947
      %v2042 = vunpack.c.l.b16 %v1948
      %v2043 = vunpack.c.h.b16 %v1948
      %v2044 = vunpack.c.l.b16 %v1949
      %v2045 = vunpack.c.h.b16 %v1949
      %v2046 = vpack.c.b16 %v1986, %v1982
      %v2047 = vpack.c.b16 %v1987, %v1983
      %v2048 = vpack.c.b16 %v1988, %v1984
      %v2049 = vpack.c.b16 %v1989, %v1985
      %v2050 = vpack.c.b16 %v1994, %v1990
      %v2051 = vpack.c.b16 %v1995, %v1991
      %v2052 = vpack.c.b16 %v1996, %v1992
      %v2053 = vpack.c.b16 %v1997, %v1993
      %v2054 = vpack.c.b16 %v2002, %v1998
      %v2055 = vpack.c.b16 %v2003, %v1999
      %v2056 = vpack.c.b16 %v2004, %v2000
      %v2057 = vpack.c.b16 %v2005, %v2001
      %v2058 = vpack.c.b16 %v2010, %v2006
      %v2059 = vpack.c.b16 %v2011, %v2007
      %v2060 = vpack.c.b16 %v2012, %v2008
      %v2061 = vpack.c.b16 %v2013, %v2009
      %v2062 = vpack.c.b16 %v2018, %v2014
      %v2063 = vpack.c.b16 %v2019, %v2015
      %v2064 = vpack.c.b16 %v2020, %v2016
      %v2065 = vpack.c.b16 %v2021, %v2017
      %v2066 = vpack.c.b16 %v2026, %v2022
      %v2067 = vpack.c.b16 %v2027, %v2023
      %v2068 = vpack.c.b16 %v2028, %v2024
      %v2069 = vpack.c.b16 %v2029, %v2025
      %v2070 = vpack.c.b16 %v2034, %v2030
      %v2071 = vpack.c.b16 %v2035, %v2031
      %v2072 = vpack.c.b16 %v2036, %v2032
      %v2073 = vpack.c.b16 %v2037, %v2033
      %v2074 = vpack.c.b16 %v2042, %v2038
      %v2075 = vpack.c.b16 %v2043, %v2039
      %v2076 = vpack.c.b16 %v2044, %v2040
      %v2077 = vpack.c.b16 %v2045, %v2041
      %2110 = vmatpush.bf16.msra.mxu0 %v2074
      %2111 = vmatpush.bf16.msra.mxu0 %v2070
      %2112 = vmatpush.bf16.msra.mxu0 %v2066
      %2113 = vmatpush.bf16.msra.mxu0 %v2062
      %2114 = vmatpush.bf16.msra.mxu0 %v2058
      %2115 = vmatpush.bf16.msra.mxu0 %v2054
      %2116 = vmatpush.bf16.msra.mxu0 %v2050
      %2117 = vmatpush.bf16.msra.mxu0 %v2046
      %2118 = vmatmul.bf16.gmra.mxu0 %v1917
      %v2119 = vpop.f32.mrf.mxu0
      %v2120 = vadd.f32 0.0, %v2119
      %v2121 = vpop.f32.mrf.mxu0
      %2122 = vdwg.mxu0
      %2123 = vmatpush.bf16.msra.mxu0 %v2075
      %2124 = vmatpush.bf16.msra.mxu0 %v2071
      %2125 = vmatpush.bf16.msra.mxu0 %v2067
      %2126 = vmatpush.bf16.msra.mxu0 %v2063
      %2127 = vmatpush.bf16.msra.mxu0 %v2059
      %2128 = vmatpush.bf16.msra.mxu0 %v2055
      %2129 = vmatpush.bf16.msra.mxu0 %v2051
      %2130 = vmatpush.bf16.msra.mxu0 %v2047
      %2131 = vmatmul.bf16.gmra.mxu0 %v1917
      %v2132 = vpop.f32.mrf.mxu0
      %v2133 = vadd.f32 0.0, %v2132
      %v2134 = vpop.f32.mrf.mxu0
      %2135 = vdwg.mxu0
      %2136 = vmatpush.bf16.msra.mxu0 %v2076
      %2137 = vmatpush.bf16.msra.mxu0 %v2072
      %2138 = vmatpush.bf16.msra.mxu0 %v2068
      %2139 = vmatpush.bf16.msra.mxu0 %v2064
      %2140 = vmatpush.bf16.msra.mxu0 %v2060
      %2141 = vmatpush.bf16.msra.mxu0 %v2056
      %2142 = vmatpush.bf16.msra.mxu0 %v2052
      %2143 = vmatpush.bf16.msra.mxu0 %v2048
      %2144 = vmatmul.bf16.gmra.mxu0 %v1917
      %v2145 = vpop.f32.mrf.mxu0
      %v2146 = vadd.f32 0.0, %v2145
      %v2147 = vpop.f32.mrf.mxu0
      %2148 = vdwg.mxu0
      %2149 = vmatpush.bf16.msra.mxu0 %v2077
      %2150 = vmatpush.bf16.msra.mxu0 %v2073
      %2151 = vmatpush.bf16.msra.mxu0 %v2069
      %2152 = vmatpush.bf16.msra.mxu0 %v2065
      %2153 = vmatpush.bf16.msra.mxu0 %v2061
      %2154 = vmatpush.bf16.msra.mxu0 %v2057
      %2155 = vmatpush.bf16.msra.mxu0 %v2053
      %2156 = vmatpush.bf16.msra.mxu0 %v2049
      %2157 = vmatmul.bf16.gmra.mxu0 %v1917
      %v2158 = vpop.f32.mrf.mxu0
      %v2159 = vadd.f32 0.0, %v2158
      %v2160 = vpop.f32.mrf.mxu0
      %2161 = vdwg.mxu0
      %v2162 = vadd.f32 %v1912, %v2120
      %v2163 = vadd.f32 %v1913, %v2133
      %v2164 = vadd.f32 %v1914, %v2146
      %v2165 = vadd.f32 %v1915, %v2159
      %v2166 = vpack.c.bf16 %v2163, %v2162
      %v2167 = vpack.c.bf16 %v2165, %v2164
      %v2168 = vxor.u32 %v2166, 2147516416
      %v2169 = vunpack.c.l.bf16 %v2168
      %v2170 = vmul.f32 %v2169, 1.442695
      %v2171 = vpow.pop %v2170
      %v2172 = vpack.c.bf16 %v2171, %v2171
      %v2173 = vunpack.c.l.bf16 %v2172
      %v2174 = vadd.f32 %v2173, 1.0
      %v2175 = vpack.c.bf16 %v2174, %v2174
      %v2176 = vunpack.c.h.bf16 %v2175
      %v2177 = vunpack.c.l.bf16 %v2175
      %v2178 = vrcp.pop %v2176
      %v2179 = vmul.f32 %v545, %v2178
      %v2180 = vrcp.pop %v2177
      %v2181 = vmul.f32 %v546, %v2180
      %v2182 = vpack.c.bf16 %v2179, %v2181
      %v2183 = vunpack.c.l.bf16 %v2182
      %v2185 = vrot.slane %v2166, 4
      %v2187 = vxor.u32 %v2185, 2147516416
      %v2188 = vunpack.c.l.bf16 %v2187
      %v2189 = vmul.f32 %v2188, 1.442695
      %v2190 = vpow.pop %v2189
      %v2191 = vpack.c.bf16 %v2190, %v2190
      %v2192 = vunpack.c.l.bf16 %v2191
      %v2193 = vadd.f32 %v2192, 1.0
      %v2194 = vpack.c.bf16 %v2193, %v2193
      %v2195 = vunpack.c.h.bf16 %v2194
      %v2196 = vunpack.c.l.bf16 %v2194
      %v2197 = vrcp.pop %v2195
      %v2198 = vmul.f32 %v545, %v2197
      %v2199 = vrcp.pop %v2196
      %v2200 = vmul.f32 %v546, %v2199
      %v2201 = vpack.c.bf16 %v2198, %v2200
      %v2202 = vunpack.c.l.bf16 %v2201
      %v2203 = vunpack.c.l.bf16 %v2167
      %v2204 = vtanh.pop %v2203
      %v2205 = vpack.c.bf16 %v2204, %v2204
      %v2206 = vunpack.c.l.bf16 %v2205
      %v2208 = vrot.slane %v2167, 4
      %v2210 = vxor.u32 %v2208, 2147516416
      %v2211 = vunpack.c.l.bf16 %v2210
      %v2212 = vmul.f32 %v2211, 1.442695
      %v2213 = vpow.pop %v2212
      %v2214 = vpack.c.bf16 %v2213, %v2213
      %v2215 = vunpack.c.l.bf16 %v2214
      %v2216 = vadd.f32 %v2215, 1.0
      %v2217 = vpack.c.bf16 %v2216, %v2216
      %v2218 = vunpack.c.h.bf16 %v2217
      %v2219 = vunpack.c.l.bf16 %v2217
      %v2220 = vrcp.pop %v2218
      %v2221 = vmul.f32 %v545, %v2220
      %v2222 = vrcp.pop %v2219
      %v2223 = vmul.f32 %v546, %v2222
      %v2224 = vpack.c.bf16 %v2221, %v2223
      %v2225 = vunpack.c.l.bf16 %v2224
      %v2226 = vld [vmem:[#allocation3] sm:$0xff]
      %v2227 = vmul.f32 %v2202, %v2226
      %v2228 = vmul.f32 %v2183, %v2206
      %v2229 = vadd.f32 %v2227, %v2228
      %v2230 = vtanh.pop %v2229
      %v2231 = vmul.f32 %v2225, %v2230
      %2232 = vst [vmem:[#allocation3] sm:$0xff] %v2229
      %2233 = vst [vmem:[#allocation2] sm:$0xff] %v2231
      %v2234 = vpack.c.bf16 %v2231, %v2231
      %s2235 = scalar_lea.vmem %s270, 20
      %2236 = vst [vmem:[%s2235] sm:$0xf] %v2234
      %s2237 = scalar_lea.vmem %s253, 192
      %v2238 = vld [vmem:[%s2237] sm:$0xff]
      %v2239 = vld [vmem:[%s2237 + $0x8] sm:$0xff]
      %v2240 = vld [vmem:[%s2237 + $0x10] sm:$0xff]
      %v2241 = vld [vmem:[%s2237 + $0x18] sm:$0xff]
      %v2242 = vld [vmem:[#allocation2] sm:$0xff]
      %v2243 = vpack.c.bf16 %v2242, %v2242
      %v2244 = vld [vmem:[%s3] sm:$0xff]
      %v2245 = vld [vmem:[%s3 + $0x8] sm:$0xff]
      %v2246 = vld [vmem:[%s3 + $0x10] sm:$0xff]
      %v2247 = vld [vmem:[%s3 + $0x18] sm:$0xff]
      %v2248 = vld [vmem:[%s3 + $0x20] sm:$0xff]
      %v2249 = vld [vmem:[%s3 + $0x28] sm:$0xff]
      %v2250 = vld [vmem:[%s3 + $0x30] sm:$0xff]
      %v2251 = vld [vmem:[%s3 + $0x38] sm:$0xff]
      %v2252 = vld [vmem:[%s3 + $0x40] sm:$0xff]
      %v2253 = vld [vmem:[%s3 + $0x48] sm:$0xff]
      %v2254 = vld [vmem:[%s3 + $0x50] sm:$0xff]
      %v2255 = vld [vmem:[%s3 + $0x58] sm:$0xff]
      %v2256 = vld [vmem:[%s3 + $0x60] sm:$0xff]
      %v2257 = vld [vmem:[%s3 + $0x68] sm:$0xff]
      %v2258 = vld [vmem:[%s3 + $0x70] sm:$0xff]
      %v2259 = vld [vmem:[%s3 + $0x78] sm:$0xff]
      %v2260 = vld [vmem:[%s3 + $0x80] sm:$0xff]
      %v2261 = vld [vmem:[%s3 + $0x88] sm:$0xff]
      %v2262 = vld [vmem:[%s3 + $0x90] sm:$0xff]
      %v2263 = vld [vmem:[%s3 + $0x98] sm:$0xff]
      %v2264 = vld [vmem:[%s3 + $0xa0] sm:$0xff]
      %v2265 = vld [vmem:[%s3 + $0xa8] sm:$0xff]
      %v2266 = vld [vmem:[%s3 + $0xb0] sm:$0xff]
      %v2267 = vld [vmem:[%s3 + $0xb8] sm:$0xff]
      %v2268 = vld [vmem:[%s3 + $0xc0] sm:$0xff]
      %v2269 = vld [vmem:[%s3 + $0xc8] sm:$0xff]
      %v2270 = vld [vmem:[%s3 + $0xd0] sm:$0xff]
      %v2271 = vld [vmem:[%s3 + $0xd8] sm:$0xff]
      %v2272 = vld [vmem:[%s3 + $0xe0] sm:$0xff]
      %v2273 = vld [vmem:[%s3 + $0xe8] sm:$0xff]
      %v2274 = vld [vmem:[%s3 + $0xf0] sm:$0xff]
      %v2275 = vld [vmem:[%s3 + $0xf8] sm:$0xff]
      %v2308 = vunpack.c.l.b16 %v2244
      %v2309 = vunpack.c.h.b16 %v2244
      %v2310 = vunpack.c.l.b16 %v2245
      %v2311 = vunpack.c.h.b16 %v2245
      %v2312 = vunpack.c.l.b16 %v2246
      %v2313 = vunpack.c.h.b16 %v2246
      %v2314 = vunpack.c.l.b16 %v2247
      %v2315 = vunpack.c.h.b16 %v2247
      %v2316 = vunpack.c.l.b16 %v2248
      %v2317 = vunpack.c.h.b16 %v2248
      %v2318 = vunpack.c.l.b16 %v2249
      %v2319 = vunpack.c.h.b16 %v2249
      %v2320 = vunpack.c.l.b16 %v2250
      %v2321 = vunpack.c.h.b16 %v2250
      %v2322 = vunpack.c.l.b16 %v2251
      %v2323 = vunpack.c.h.b16 %v2251
      %v2324 = vunpack.c.l.b16 %v2252
      %v2325 = vunpack.c.h.b16 %v2252
      %v2326 = vunpack.c.l.b16 %v2253
      %v2327 = vunpack.c.h.b16 %v2253
      %v2328 = vunpack.c.l.b16 %v2254
      %v2329 = vunpack.c.h.b16 %v2254
      %v2330 = vunpack.c.l.b16 %v2255
      %v2331 = vunpack.c.h.b16 %v2255
      %v2332 = vunpack.c.l.b16 %v2256
      %v2333 = vunpack.c.h.b16 %v2256
      %v2334 = vunpack.c.l.b16 %v2257
      %v2335 = vunpack.c.h.b16 %v2257
      %v2336 = vunpack.c.l.b16 %v2258
      %v2337 = vunpack.c.h.b16 %v2258
      %v2338 = vunpack.c.l.b16 %v2259
      %v2339 = vunpack.c.h.b16 %v2259
      %v2340 = vunpack.c.l.b16 %v2260
      %v2341 = vunpack.c.h.b16 %v2260
      %v2342 = vunpack.c.l.b16 %v2261
      %v2343 = vunpack.c.h.b16 %v2261
      %v2344 = vunpack.c.l.b16 %v2262
      %v2345 = vunpack.c.h.b16 %v2262
      %v2346 = vunpack.c.l.b16 %v2263
      %v2347 = vunpack.c.h.b16 %v2263
      %v2348 = vunpack.c.l.b16 %v2264
      %v2349 = vunpack.c.h.b16 %v2264
      %v2350 = vunpack.c.l.b16 %v2265
      %v2351 = vunpack.c.h.b16 %v2265
      %v2352 = vunpack.c.l.b16 %v2266
      %v2353 = vunpack.c.h.b16 %v2266
      %v2354 = vunpack.c.l.b16 %v2267
      %v2355 = vunpack.c.h.b16 %v2267
      %v2356 = vunpack.c.l.b16 %v2268
      %v2357 = vunpack.c.h.b16 %v2268
      %v2358 = vunpack.c.l.b16 %v2269
      %v2359 = vunpack.c.h.b16 %v2269
      %v2360 = vunpack.c.l.b16 %v2270
      %v2361 = vunpack.c.h.b16 %v2270
      %v2362 = vunpack.c.l.b16 %v2271
      %v2363 = vunpack.c.h.b16 %v2271
      %v2364 = vunpack.c.l.b16 %v2272
      %v2365 = vunpack.c.h.b16 %v2272
      %v2366 = vunpack.c.l.b16 %v2273
      %v2367 = vunpack.c.h.b16 %v2273
      %v2368 = vunpack.c.l.b16 %v2274
      %v2369 = vunpack.c.h.b16 %v2274
      %v2370 = vunpack.c.l.b16 %v2275
      %v2371 = vunpack.c.h.b16 %v2275
      %v2372 = vpack.c.b16 %v2312, %v2308
      %v2373 = vpack.c.b16 %v2313, %v2309
      %v2374 = vpack.c.b16 %v2314, %v2310
      %v2375 = vpack.c.b16 %v2315, %v2311
      %v2376 = vpack.c.b16 %v2320, %v2316
      %v2377 = vpack.c.b16 %v2321, %v2317
      %v2378 = vpack.c.b16 %v2322, %v2318
      %v2379 = vpack.c.b16 %v2323, %v2319
      %v2380 = vpack.c.b16 %v2328, %v2324
      %v2381 = vpack.c.b16 %v2329, %v2325
      %v2382 = vpack.c.b16 %v2330, %v2326
      %v2383 = vpack.c.b16 %v2331, %v2327
      %v2384 = vpack.c.b16 %v2336, %v2332
      %v2385 = vpack.c.b16 %v2337, %v2333
      %v2386 = vpack.c.b16 %v2338, %v2334
      %v2387 = vpack.c.b16 %v2339, %v2335
      %v2388 = vpack.c.b16 %v2344, %v2340
      %v2389 = vpack.c.b16 %v2345, %v2341
      %v2390 = vpack.c.b16 %v2346, %v2342
      %v2391 = vpack.c.b16 %v2347, %v2343
      %v2392 = vpack.c.b16 %v2352, %v2348
      %v2393 = vpack.c.b16 %v2353, %v2349
      %v2394 = vpack.c.b16 %v2354, %v2350
      %v2395 = vpack.c.b16 %v2355, %v2351
      %v2396 = vpack.c.b16 %v2360, %v2356
      %v2397 = vpack.c.b16 %v2361, %v2357
      %v2398 = vpack.c.b16 %v2362, %v2358
      %v2399 = vpack.c.b16 %v2363, %v2359
      %v2400 = vpack.c.b16 %v2368, %v2364
      %v2401 = vpack.c.b16 %v2369, %v2365
      %v2402 = vpack.c.b16 %v2370, %v2366
      %v2403 = vpack.c.b16 %v2371, %v2367
      %2436 = vmatpush.bf16.msra.mxu0 %v2400
      %2437 = vmatpush.bf16.msra.mxu0 %v2396
      %2438 = vmatpush.bf16.msra.mxu0 %v2392
      %2439 = vmatpush.bf16.msra.mxu0 %v2388
      %2440 = vmatpush.bf16.msra.mxu0 %v2384
      %2441 = vmatpush.bf16.msra.mxu0 %v2380
      %2442 = vmatpush.bf16.msra.mxu0 %v2376
      %2443 = vmatpush.bf16.msra.mxu0 %v2372
      %2444 = vmatmul.bf16.gmra.mxu0 %v2243
      %v2445 = vpop.f32.mrf.mxu0
      %v2446 = vadd.f32 0.0, %v2445
      %v2447 = vpop.f32.mrf.mxu0
      %2448 = vdwg.mxu0
      %2449 = vmatpush.bf16.msra.mxu0 %v2401
      %2450 = vmatpush.bf16.msra.mxu0 %v2397
      %2451 = vmatpush.bf16.msra.mxu0 %v2393
      %2452 = vmatpush.bf16.msra.mxu0 %v2389
      %2453 = vmatpush.bf16.msra.mxu0 %v2385
      %2454 = vmatpush.bf16.msra.mxu0 %v2381
      %2455 = vmatpush.bf16.msra.mxu0 %v2377
      %2456 = vmatpush.bf16.msra.mxu0 %v2373
      %2457 = vmatmul.bf16.gmra.mxu0 %v2243
      %v2458 = vpop.f32.mrf.mxu0
      %v2459 = vadd.f32 0.0, %v2458
      %v2460 = vpop.f32.mrf.mxu0
      %2461 = vdwg.mxu0
      %2462 = vmatpush.bf16.msra.mxu0 %v2402
      %2463 = vmatpush.bf16.msra.mxu0 %v2398
      %2464 = vmatpush.bf16.msra.mxu0 %v2394
      %2465 = vmatpush.bf16.msra.mxu0 %v2390
      %2466 = vmatpush.bf16.msra.mxu0 %v2386
      %2467 = vmatpush.bf16.msra.mxu0 %v2382
      %2468 = vmatpush.bf16.msra.mxu0 %v2378
      %2469 = vmatpush.bf16.msra.mxu0 %v2374
      %2470 = vmatmul.bf16.gmra.mxu0 %v2243
      %v2471 = vpop.f32.mrf.mxu0
      %v2472 = vadd.f32 0.0, %v2471
      %v2473 = vpop.f32.mrf.mxu0
      %2474 = vdwg.mxu0
      %2475 = vmatpush.bf16.msra.mxu0 %v2403
      %2476 = vmatpush.bf16.msra.mxu0 %v2399
      %2477 = vmatpush.bf16.msra.mxu0 %v2395
      %2478 = vmatpush.bf16.msra.mxu0 %v2391
      %2479 = vmatpush.bf16.msra.mxu0 %v2387
      %2480 = vmatpush.bf16.msra.mxu0 %v2383
      %2481 = vmatpush.bf16.msra.mxu0 %v2379
      %2482 = vmatpush.bf16.msra.mxu0 %v2375
      %2483 = vmatmul.bf16.gmra.mxu0 %v2243
      %v2484 = vpop.f32.mrf.mxu0
      %v2485 = vadd.f32 0.0, %v2484
      %v2486 = vpop.f32.mrf.mxu0
      %2487 = vdwg.mxu0
      %v2488 = vadd.f32 %v2238, %v2446
      %v2489 = vadd.f32 %v2239, %v2459
      %v2490 = vadd.f32 %v2240, %v2472
      %v2491 = vadd.f32 %v2241, %v2485
      %v2492 = vpack.c.bf16 %v2489, %v2488
      %v2493 = vpack.c.bf16 %v2491, %v2490
      %v2494 = vxor.u32 %v2492, 2147516416
      %v2495 = vunpack.c.l.bf16 %v2494
      %v2496 = vmul.f32 %v2495, 1.442695
      %v2497 = vpow.pop %v2496
      %v2498 = vpack.c.bf16 %v2497, %v2497
      %v2499 = vunpack.c.l.bf16 %v2498
      %v2500 = vadd.f32 %v2499, 1.0
      %v2501 = vpack.c.bf16 %v2500, %v2500
      %v2502 = vunpack.c.h.bf16 %v2501
      %v2503 = vunpack.c.l.bf16 %v2501
      %v2504 = vrcp.pop %v2502
      %v2505 = vmul.f32 %v545, %v2504
      %v2506 = vrcp.pop %v2503
      %v2507 = vmul.f32 %v546, %v2506
      %v2508 = vpack.c.bf16 %v2505, %v2507
      %v2509 = vunpack.c.l.bf16 %v2508
      %v2511 = vrot.slane %v2492, 4
      %v2513 = vxor.u32 %v2511, 2147516416
      %v2514 = vunpack.c.l.bf16 %v2513
      %v2515 = vmul.f32 %v2514, 1.442695
      %v2516 = vpow.pop %v2515
      %v2517 = vpack.c.bf16 %v2516, %v2516
      %v2518 = vunpack.c.l.bf16 %v2517
      %v2519 = vadd.f32 %v2518, 1.0
      %v2520 = vpack.c.bf16 %v2519, %v2519
      %v2521 = vunpack.c.h.bf16 %v2520
      %v2522 = vunpack.c.l.bf16 %v2520
      %v2523 = vrcp.pop %v2521
      %v2524 = vmul.f32 %v545, %v2523
      %v2525 = vrcp.pop %v2522
      %v2526 = vmul.f32 %v546, %v2525
      %v2527 = vpack.c.bf16 %v2524, %v2526
      %v2528 = vunpack.c.l.bf16 %v2527
      %v2529 = vunpack.c.l.bf16 %v2493
      %v2530 = vtanh.pop %v2529
      %v2531 = vpack.c.bf16 %v2530, %v2530
      %v2532 = vunpack.c.l.bf16 %v2531
      %v2534 = vrot.slane %v2493, 4
      %v2536 = vxor.u32 %v2534, 2147516416
      %v2537 = vunpack.c.l.bf16 %v2536
      %v2538 = vmul.f32 %v2537, 1.442695
      %v2539 = vpow.pop %v2538
      %v2540 = vpack.c.bf16 %v2539, %v2539
      %v2541 = vunpack.c.l.bf16 %v2540
      %v2542 = vadd.f32 %v2541, 1.0
      %v2543 = vpack.c.bf16 %v2542, %v2542
      %v2544 = vunpack.c.h.bf16 %v2543
      %v2545 = vunpack.c.l.bf16 %v2543
      %v2546 = vrcp.pop %v2544
      %v2547 = vmul.f32 %v545, %v2546
      %v2548 = vrcp.pop %v2545
      %v2549 = vmul.f32 %v546, %v2548
      %v2550 = vpack.c.bf16 %v2547, %v2549
      %v2551 = vunpack.c.l.bf16 %v2550
      %v2552 = vld [vmem:[#allocation3] sm:$0xff]
      %v2553 = vmul.f32 %v2528, %v2552
      %v2554 = vmul.f32 %v2509, %v2532
      %v2555 = vadd.f32 %v2553, %v2554
      %v2556 = vtanh.pop %v2555
      %v2557 = vmul.f32 %v2551, %v2556
      %2558 = vst [vmem:[#allocation3] sm:$0xff] %v2555
      %2559 = vst [vmem:[#allocation2] sm:$0xff] %v2557
      %v2560 = vpack.c.bf16 %v2557, %v2557
      %s2561 = scalar_lea.vmem %s270, 24
      %2562 = vst [vmem:[%s2561] sm:$0xf] %v2560
      %s2563 = scalar_lea.vmem %s253, 224
      %v2564 = vld [vmem:[%s2563] sm:$0xff]
      %v2565 = vld [vmem:[%s2563 + $0x8] sm:$0xff]
      %v2566 = vld [vmem:[%s2563 + $0x10] sm:$0xff]
      %v2567 = vld [vmem:[%s2563 + $0x18] sm:$0xff]
      %v2568 = vld [vmem:[#allocation2] sm:$0xff]
      %v2569 = vpack.c.bf16 %v2568, %v2568
      %v2570 = vld [vmem:[%s3] sm:$0xff]
      %v2571 = vld [vmem:[%s3 + $0x8] sm:$0xff]
      %v2572 = vld [vmem:[%s3 + $0x10] sm:$0xff]
      %v2573 = vld [vmem:[%s3 + $0x18] sm:$0xff]
      %v2574 = vld [vmem:[%s3 + $0x20] sm:$0xff]
      %v2575 = vld [vmem:[%s3 + $0x28] sm:$0xff]
      %v2576 = vld [vmem:[%s3 + $0x30] sm:$0xff]
      %v2577 = vld [vmem:[%s3 + $0x38] sm:$0xff]
      %v2578 = vld [vmem:[%s3 + $0x40] sm:$0xff]
      %v2579 = vld [vmem:[%s3 + $0x48] sm:$0xff]
      %v2580 = vld [vmem:[%s3 + $0x50] sm:$0xff]
      %v2581 = vld [vmem:[%s3 + $0x58] sm:$0xff]
      %v2582 = vld [vmem:[%s3 + $0x60] sm:$0xff]
      %v2583 = vld [vmem:[%s3 + $0x68] sm:$0xff]
      %v2584 = vld [vmem:[%s3 + $0x70] sm:$0xff]
      %v2585 = vld [vmem:[%s3 + $0x78] sm:$0xff]
      %v2586 = vld [vmem:[%s3 + $0x80] sm:$0xff]
      %v2587 = vld [vmem:[%s3 + $0x88] sm:$0xff]
      %v2588 = vld [vmem:[%s3 + $0x90] sm:$0xff]
      %v2589 = vld [vmem:[%s3 + $0x98] sm:$0xff]
      %v2590 = vld [vmem:[%s3 + $0xa0] sm:$0xff]
      %v2591 = vld [vmem:[%s3 + $0xa8] sm:$0xff]
      %v2592 = vld [vmem:[%s3 + $0xb0] sm:$0xff]
      %v2593 = vld [vmem:[%s3 + $0xb8] sm:$0xff]
      %v2594 = vld [vmem:[%s3 + $0xc0] sm:$0xff]
      %v2595 = vld [vmem:[%s3 + $0xc8] sm:$0xff]
      %v2596 = vld [vmem:[%s3 + $0xd0] sm:$0xff]
      %v2597 = vld [vmem:[%s3 + $0xd8] sm:$0xff]
      %v2598 = vld [vmem:[%s3 + $0xe0] sm:$0xff]
      %v2599 = vld [vmem:[%s3 + $0xe8] sm:$0xff]
      %v2600 = vld [vmem:[%s3 + $0xf0] sm:$0xff]
      %v2601 = vld [vmem:[%s3 + $0xf8] sm:$0xff]
      %v2634 = vunpack.c.l.b16 %v2570
      %v2635 = vunpack.c.h.b16 %v2570
      %v2636 = vunpack.c.l.b16 %v2571
      %v2637 = vunpack.c.h.b16 %v2571
      %v2638 = vunpack.c.l.b16 %v2572
      %v2639 = vunpack.c.h.b16 %v2572
      %v2640 = vunpack.c.l.b16 %v2573
      %v2641 = vunpack.c.h.b16 %v2573
      %v2642 = vunpack.c.l.b16 %v2574
      %v2643 = vunpack.c.h.b16 %v2574
      %v2644 = vunpack.c.l.b16 %v2575
      %v2645 = vunpack.c.h.b16 %v2575
      %v2646 = vunpack.c.l.b16 %v2576
      %v2647 = vunpack.c.h.b16 %v2576
      %v2648 = vunpack.c.l.b16 %v2577
      %v2649 = vunpack.c.h.b16 %v2577
      %v2650 = vunpack.c.l.b16 %v2578
      %v2651 = vunpack.c.h.b16 %v2578
      %v2652 = vunpack.c.l.b16 %v2579
      %v2653 = vunpack.c.h.b16 %v2579
      %v2654 = vunpack.c.l.b16 %v2580
      %v2655 = vunpack.c.h.b16 %v2580
      %v2656 = vunpack.c.l.b16 %v2581
      %v2657 = vunpack.c.h.b16 %v2581
      %v2658 = vunpack.c.l.b16 %v2582
      %v2659 = vunpack.c.h.b16 %v2582
      %v2660 = vunpack.c.l.b16 %v2583
      %v2661 = vunpack.c.h.b16 %v2583
      %v2662 = vunpack.c.l.b16 %v2584
      %v2663 = vunpack.c.h.b16 %v2584
      %v2664 = vunpack.c.l.b16 %v2585
      %v2665 = vunpack.c.h.b16 %v2585
      %v2666 = vunpack.c.l.b16 %v2586
      %v2667 = vunpack.c.h.b16 %v2586
      %v2668 = vunpack.c.l.b16 %v2587
      %v2669 = vunpack.c.h.b16 %v2587
      %v2670 = vunpack.c.l.b16 %v2588
      %v2671 = vunpack.c.h.b16 %v2588
      %v2672 = vunpack.c.l.b16 %v2589
      %v2673 = vunpack.c.h.b16 %v2589
      %v2674 = vunpack.c.l.b16 %v2590
      %v2675 = vunpack.c.h.b16 %v2590
      %v2676 = vunpack.c.l.b16 %v2591
      %v2677 = vunpack.c.h.b16 %v2591
      %v2678 = vunpack.c.l.b16 %v2592
      %v2679 = vunpack.c.h.b16 %v2592
      %v2680 = vunpack.c.l.b16 %v2593
      %v2681 = vunpack.c.h.b16 %v2593
      %v2682 = vunpack.c.l.b16 %v2594
      %v2683 = vunpack.c.h.b16 %v2594
      %v2684 = vunpack.c.l.b16 %v2595
      %v2685 = vunpack.c.h.b16 %v2595
      %v2686 = vunpack.c.l.b16 %v2596
      %v2687 = vunpack.c.h.b16 %v2596
      %v2688 = vunpack.c.l.b16 %v2597
      %v2689 = vunpack.c.h.b16 %v2597
      %v2690 = vunpack.c.l.b16 %v2598
      %v2691 = vunpack.c.h.b16 %v2598
      %v2692 = vunpack.c.l.b16 %v2599
      %v2693 = vunpack.c.h.b16 %v2599
      %v2694 = vunpack.c.l.b16 %v2600
      %v2695 = vunpack.c.h.b16 %v2600
      %v2696 = vunpack.c.l.b16 %v2601
      %v2697 = vunpack.c.h.b16 %v2601
      %v2698 = vpack.c.b16 %v2638, %v2634
      %v2699 = vpack.c.b16 %v2639, %v2635
      %v2700 = vpack.c.b16 %v2640, %v2636
      %v2701 = vpack.c.b16 %v2641, %v2637
      %v2702 = vpack.c.b16 %v2646, %v2642
      %v2703 = vpack.c.b16 %v2647, %v2643
      %v2704 = vpack.c.b16 %v2648, %v2644
      %v2705 = vpack.c.b16 %v2649, %v2645
      %v2706 = vpack.c.b16 %v2654, %v2650
      %v2707 = vpack.c.b16 %v2655, %v2651
      %v2708 = vpack.c.b16 %v2656, %v2652
      %v2709 = vpack.c.b16 %v2657, %v2653
      %v2710 = vpack.c.b16 %v2662, %v2658
      %v2711 = vpack.c.b16 %v2663, %v2659
      %v2712 = vpack.c.b16 %v2664, %v2660
      %v2713 = vpack.c.b16 %v2665, %v2661
      %v2714 = vpack.c.b16 %v2670, %v2666
      %v2715 = vpack.c.b16 %v2671, %v2667
      %v2716 = vpack.c.b16 %v2672, %v2668
      %v2717 = vpack.c.b16 %v2673, %v2669
      %v2718 = vpack.c.b16 %v2678, %v2674
      %v2719 = vpack.c.b16 %v2679, %v2675
      %v2720 = vpack.c.b16 %v2680, %v2676
      %v2721 = vpack.c.b16 %v2681, %v2677
      %v2722 = vpack.c.b16 %v2686, %v2682
      %v2723 = vpack.c.b16 %v2687, %v2683
      %v2724 = vpack.c.b16 %v2688, %v2684
      %v2725 = vpack.c.b16 %v2689, %v2685
      %v2726 = vpack.c.b16 %v2694, %v2690
      %v2727 = vpack.c.b16 %v2695, %v2691
      %v2728 = vpack.c.b16 %v2696, %v2692
      %v2729 = vpack.c.b16 %v2697, %v2693
      %2762 = vmatpush.bf16.msra.mxu0 %v2726
      %2763 = vmatpush.bf16.msra.mxu0 %v2722
      %2764 = vmatpush.bf16.msra.mxu0 %v2718
      %2765 = vmatpush.bf16.msra.mxu0 %v2714
      %2766 = vmatpush.bf16.msra.mxu0 %v2710
      %2767 = vmatpush.bf16.msra.mxu0 %v2706
      %2768 = vmatpush.bf16.msra.mxu0 %v2702
      %2769 = vmatpush.bf16.msra.mxu0 %v2698
      %2770 = vmatmul.bf16.gmra.mxu0 %v2569
      %v2771 = vpop.f32.mrf.mxu0
      %v2772 = vadd.f32 0.0, %v2771
      %v2773 = vpop.f32.mrf.mxu0
      %2774 = vdwg.mxu0
      %2775 = vmatpush.bf16.msra.mxu0 %v2727
      %2776 = vmatpush.bf16.msra.mxu0 %v2723
      %2777 = vmatpush.bf16.msra.mxu0 %v2719
      %2778 = vmatpush.bf16.msra.mxu0 %v2715
      %2779 = vmatpush.bf16.msra.mxu0 %v2711
      %2780 = vmatpush.bf16.msra.mxu0 %v2707
      %2781 = vmatpush.bf16.msra.mxu0 %v2703
      %2782 = vmatpush.bf16.msra.mxu0 %v2699
      %2783 = vmatmul.bf16.gmra.mxu0 %v2569
      %v2784 = vpop.f32.mrf.mxu0
      %v2785 = vadd.f32 0.0, %v2784
      %v2786 = vpop.f32.mrf.mxu0
      %2787 = vdwg.mxu0
      %2788 = vmatpush.bf16.msra.mxu0 %v2728
      %2789 = vmatpush.bf16.msra.mxu0 %v2724
      %2790 = vmatpush.bf16.msra.mxu0 %v2720
      %2791 = vmatpush.bf16.msra.mxu0 %v2716
      %2792 = vmatpush.bf16.msra.mxu0 %v2712
      %2793 = vmatpush.bf16.msra.mxu0 %v2708
      %2794 = vmatpush.bf16.msra.mxu0 %v2704
      %2795 = vmatpush.bf16.msra.mxu0 %v2700
      %2796 = vmatmul.bf16.gmra.mxu0 %v2569
      %v2797 = vpop.f32.mrf.mxu0
      %v2798 = vadd.f32 0.0, %v2797
      %v2799 = vpop.f32.mrf.mxu0
      %2800 = vdwg.mxu0
      %2801 = vmatpush.bf16.msra.mxu0 %v2729
      %2802 = vmatpush.bf16.msra.mxu0 %v2725
      %2803 = vmatpush.bf16.msra.mxu0 %v2721
      %2804 = vmatpush.bf16.msra.mxu0 %v2717
      %2805 = vmatpush.bf16.msra.mxu0 %v2713
      %2806 = vmatpush.bf16.msra.mxu0 %v2709
      %2807 = vmatpush.bf16.msra.mxu0 %v2705
      %2808 = vmatpush.bf16.msra.mxu0 %v2701
      %2809 = vmatmul.bf16.gmra.mxu0 %v2569
      %v2810 = vpop.f32.mrf.mxu0
      %v2811 = vadd.f32 0.0, %v2810
      %v2812 = vpop.f32.mrf.mxu0
      %2813 = vdwg.mxu0
      %v2814 = vadd.f32 %v2564, %v2772
      %v2815 = vadd.f32 %v2565, %v2785
      %v2816 = vadd.f32 %v2566, %v2798
      %v2817 = vadd.f32 %v2567, %v2811
      %v2818 = vpack.c.bf16 %v2815, %v2814
      %v2819 = vpack.c.bf16 %v2817, %v2816
      %v2820 = vxor.u32 %v2818, 2147516416
      %v2821 = vunpack.c.l.bf16 %v2820
      %v2822 = vmul.f32 %v2821, 1.442695
      %v2823 = vpow.pop %v2822
      %v2824 = vpack.c.bf16 %v2823, %v2823
      %v2825 = vunpack.c.l.bf16 %v2824
      %v2826 = vadd.f32 %v2825, 1.0
      %v2827 = vpack.c.bf16 %v2826, %v2826
      %v2828 = vunpack.c.h.bf16 %v2827
      %v2829 = vunpack.c.l.bf16 %v2827
      %v2830 = vrcp.pop %v2828
      %v2831 = vmul.f32 %v545, %v2830
      %v2832 = vrcp.pop %v2829
      %v2833 = vmul.f32 %v546, %v2832
      %v2834 = vpack.c.bf16 %v2831, %v2833
      %v2835 = vunpack.c.l.bf16 %v2834
      %v2837 = vrot.slane %v2818, 4
      %v2839 = vxor.u32 %v2837, 2147516416
      %v2840 = vunpack.c.l.bf16 %v2839
      %v2841 = vmul.f32 %v2840, 1.442695
      %v2842 = vpow.pop %v2841
      %v2843 = vpack.c.bf16 %v2842, %v2842
      %v2844 = vunpack.c.l.bf16 %v2843
      %v2845 = vadd.f32 %v2844, 1.0
      %v2846 = vpack.c.bf16 %v2845, %v2845
      %v2847 = vunpack.c.h.bf16 %v2846
      %v2848 = vunpack.c.l.bf16 %v2846
      %v2849 = vrcp.pop %v2847
      %v2850 = vmul.f32 %v545, %v2849
      %v2851 = vrcp.pop %v2848
      %v2852 = vmul.f32 %v546, %v2851
      %v2853 = vpack.c.bf16 %v2850, %v2852
      %v2854 = vunpack.c.l.bf16 %v2853
      %v2855 = vunpack.c.l.bf16 %v2819
      %v2856 = vtanh.pop %v2855
      %v2857 = vpack.c.bf16 %v2856, %v2856
      %v2858 = vunpack.c.l.bf16 %v2857
      %v2860 = vrot.slane %v2819, 4
      %v2862 = vxor.u32 %v2860, 2147516416
      %v2863 = vunpack.c.l.bf16 %v2862
      %v2864 = vmul.f32 %v2863, 1.442695
      %v2865 = vpow.pop %v2864
      %v2866 = vpack.c.bf16 %v2865, %v2865
      %v2867 = vunpack.c.l.bf16 %v2866
      %v2868 = vadd.f32 %v2867, 1.0
      %v2869 = vpack.c.bf16 %v2868, %v2868
      %v2870 = vunpack.c.h.bf16 %v2869
      %v2871 = vunpack.c.l.bf16 %v2869
      %v2872 = vrcp.pop %v2870
      %v2873 = vmul.f32 %v545, %v2872
      %v2874 = vrcp.pop %v2871
      %v2875 = vmul.f32 %v546, %v2874
      %v2876 = vpack.c.bf16 %v2873, %v2875
      %v2877 = vunpack.c.l.bf16 %v2876
      %v2878 = vld [vmem:[#allocation3] sm:$0xff]
      %v2879 = vmul.f32 %v2854, %v2878
      %v2880 = vmul.f32 %v2835, %v2858
      %v2881 = vadd.f32 %v2879, %v2880
      %v2882 = vtanh.pop %v2881
      %v2883 = vmul.f32 %v2877, %v2882
      %2884 = vst [vmem:[#allocation3] sm:$0xff] %v2881
      %2885 = vst [vmem:[#allocation2] sm:$0xff] %v2883
      %v2886 = vpack.c.bf16 %v2883, %v2883
      %s2887 = scalar_lea.vmem %s270, 28
      %2888 = vst [vmem:[%s2887] sm:$0xf] %v2886
      %s2889 = smul.u32 8, %s20
      %p2890 = scmp.lt.s32.totalorder %s2889, 15
      %s2891 = scalar_select %p2890, %s2889, 15
      %p2892 = scmp.lt.s32.totalorder %s19, 0
      %s2893 = scalar_select %p2892, %s19, 0
      %s2894 = sadd.s32 %s2893, %s2891
      %s2895 = smul.addr %s2894, 4
      %s2896 = scalar_lea.vmem %s4, %s2895
      // Predicated region
      $region41: #{caption_net_forward.2} parent=35 // pred_check
        %p2897 = pneg %p148
      $region42: #{caption_net_forward.2} parent=35 // pred_check_branch
        %2899 = sbr.rel (%p2897) target = $region44
      $region43: #{caption_net_forward.2} parent=35 // pred_region
        %s2900 = smul.u32 8, %s20
      $region44: #{caption_net_forward.2} parent=35 // pred_fallthru
        _
    $region36: #{caption_net_forward.2} parent=5 // pred_fallthru
      _
    %p2901 = scmp.le.s32.totalorder 2, %s10
    // Predicated region
    $region45: #{caption_net_forward.2} parent=5 // pred_check
      %p2902 = pneg %p2901
    $region46: #{caption_net_forward.2} parent=5 // pred_check_branch
      %2904 = sbr.rel (%p2902) target = $region48
    $region47: #{caption_net_forward.2} parent=5 // pred_region
      %s2905 = ssub.s32 %s10, 2
      // Predicated region
      $region49: #{caption_net_forward.2} parent=47 // pred_check
        %p2906 = pneg %p154
      $region50: #{caption_net_forward.2} parent=47 // pred_check_branch
        %2908 = sbr.rel (%p2906) target = $region52
      $region51: #{caption_net_forward.2} parent=47 // pred_region
        %s2909 = smul.u32 8, %s22
        %p2910 = scmp.lt.s32.totalorder %s2909, 15
        %s2911 = scalar_select %p2910, %s2909, 15
        %p2912 = scmp.lt.s32.totalorder %s21, 0
        %s2913 = scalar_select %p2912, %s21, 0
        %s2914 = sadd.s32 %s2913, %s2911
        %s2915 = smul.addr %s2914, 4
        %s2916 = scalar_lea.vmem %s4, %s2915
      $region52: #{caption_net_forward.2} parent=47 // pred_fallthru
        _
    $region48: #{caption_net_forward.2} parent=5 // pred_fallthru
      _
  $region6: #{caption_net_forward.2} parent=0 // loop_footer
    %s14 = sadd.s32 1, %s10
  $region7: #{caption_net_forward.2} parent=0 // loop_footer_branch
    %9 = sbr.rel target = $region3
  $region8: #{caption_net_forward.2} parent=0 // loop_exit
    _

</llo_original>
